<compile_context>
chip_gen: v7x
topology: tpu7x:2x2x1
jax: 0.10.0
libtpu: 0.0.40
codegen_flags: <defaults>
</compile_context>

<pallas_src>
import jax
import jax.numpy as jnp
from jax.experimental import pallas as pl
from jax.experimental.pallas import tpu as pltpu

C1 = 128        # conv1d_1 out channels
C2 = 64         # conv1d_2 out channels
C2P = 128       # conv1d_2 out channels padded to a full lane width
K1 = 7          # conv1d_1 kernel size (padding 3)
K2 = 5          # conv1d_2 kernel size (padding 2)
OUT_L = 64      # AdaptiveMaxPool1d target length
HALO = K2 // 2  # conv2 halo rows (2)
TOP = 8         # sublane-aligned top pad in the conv2 scratch buffer
BOT = 8         # bottom pad rows (>= HALO, multiple of 8)


def _gelu(x):
    # exact (erf-based) GELU — matches torch.nn.functional.gelu default
    return 0.5 * x * (1.0 + jax.lax.erf(x * 0.7071067811865476))


def spectral_kernel(xc_ref, w1_ref, s1_ref, b1_ref, w2_ref, s2_ref, b2_ref,
                    out_ref, pad2_ref):
    L = xc_ref.shape[1]          # sequence length
    L2 = L // 2                  # length after MaxPool1d(2)
    win = L2 // OUT_L            # adaptive-pool window (uniform case)

    # ---- conv1d_1 as ONE im2col matmul: (L, F1) @ (F1, C1) on the MXU ----
    acc = jnp.dot(xc_ref[0], w1_ref[...], preferred_element_type=jnp.float32)

    # ---- folded eval-mode BatchNorm1d (+ conv bias) then exact GELU ----
    y1 = _gelu(acc * s1_ref[...] + b1_ref[...])

    # ---- MaxPool1d(2) entirely in registers ----
    pooled = jnp.max(y1.reshape(L2, 2, C1), axis=1)

    # ---- conv1d_2 input with zero halos; only halo rows are (re)zeroed and
    #      the bulk write starts sublane-aligned at TOP = 8 ----
    pad2_ref[0:TOP, :] = jnp.zeros((TOP, C1), jnp.float32)
    pad2_ref[TOP + L2:TOP + L2 + BOT, :] = jnp.zeros((BOT, C1), jnp.float32)
    pad2_ref[TOP:TOP + L2, :] = pooled

    # ---- conv1d_2 (kernel 5, padding 2): K2 shifted (L2,C1)@(C1,C2P) matmuls ----
    acc2 = jnp.zeros((L2, C2P), jnp.float32)
    for k in range(K2):
        acc2 = acc2 + jnp.dot(
            pad2_ref[TOP - HALO + k:TOP - HALO + k + L2, :], w2_ref[k],
            preferred_element_type=jnp.float32)

    # ---- folded BatchNorm1d + GELU (padded channels stay exactly 0) ----
    z = _gelu(acc2 * s2_ref[...] + b2_ref[...])

    # ---- AdaptiveMaxPool1d(64): uniform windows, in registers; lane-dense store
    out_ref[0] = jnp.max(z.reshape(OUT_L, win, C2P), axis=1).astype(out_ref.dtype)


def init_params(key, in_channels):
    ks = jax.random.split(key, 12)
    p = {}
    # Conv1d weights/bias (PyTorch layout: (C_out, C_in, K))
    p["w1"] = 0.1 * jax.random.normal(ks[0], (C1, in_channels, K1), jnp.float32)
    p["b1"] = 0.1 * jax.random.normal(ks[1], (C1,), jnp.float32)
    p["w2"] = 0.05 * jax.random.normal(ks[2], (C2, C1, K2), jnp.float32)
    p["b2"] = 0.1 * jax.random.normal(ks[3], (C2,), jnp.float32)
    # BatchNorm1d parameters + running stats (eval-mode)
    p["g1"] = 1.0 + 0.1 * jax.random.normal(ks[4], (C1,), jnp.float32)
    p["beta1"] = 0.1 * jax.random.normal(ks[5], (C1,), jnp.float32)
    p["rm1"] = 0.1 * jax.random.normal(ks[6], (C1,), jnp.float32)
    p["rv1"] = 1.0 + 0.1 * jnp.abs(jax.random.normal(ks[7], (C1,), jnp.float32))
    p["g2"] = 1.0 + 0.1 * jax.random.normal(ks[8], (C2,), jnp.float32)
    p["beta2"] = 0.1 * jax.random.normal(ks[9], (C2,), jnp.float32)
    p["rm2"] = 0.1 * jax.random.normal(ks[10], (C2,), jnp.float32)
    p["rv2"] = 1.0 + 0.1 * jnp.abs(jax.random.normal(ks[11], (C2,), jnp.float32))
    return p


def spectral_stream(x_ncl, p, eps=1e-5):
    """x_ncl: (B, in_channels, L) like PyTorch. Returns (B, 64, 64) NCL."""
    B, Cin, L = x_ncl.shape
    assert L % 2 == 0 and (L // 2) % OUT_L == 0, (
        "demo supports L even with (L//2) a multiple of 64 (uniform adaptive pool)")
    L2 = L // 2

    # channels-last; zero-pad length for conv1 (padding=3) in the wrapper glue
    x = jnp.transpose(x_ncl, (0, 2, 1)).astype(jnp.float32)       # (B, L, Cin)
    xpad = jnp.pad(x, ((0, 0), (K1 // 2, K1 // 2), (0, 0)))        # (B, L+K1-1, Cin)

    # im2col for conv1: feature f = k*Cin + cin  ->  xpad[:, i+k, cin]
    cols = jnp.concatenate([xpad[:, k:k + L, :] for k in range(K1)], axis=-1)
    Kf = K1 * Cin
    F1 = ((Kf + 7) // 8) * 8                                       # 28 -> 32 lanes
    cols = jnp.pad(cols, ((0, 0), (0, 0), (0, F1 - Kf)))           # (B, L, F1)

    # weights: (C_out, C_in, K) -> (K, C_in, C_out); w1 flattened to (F1, C1)
    w1 = jnp.transpose(p["w1"], (2, 1, 0)).reshape(Kf, C1)
    w1 = jnp.pad(w1, ((0, F1 - Kf), (0, 0)))                       # (F1, C1)
    w2 = jnp.transpose(p["w2"], (2, 1, 0))                         # (K2, C1, C2)
    w2 = jnp.pad(w2, ((0, 0), (0, 0), (0, C2P - C2)))              # (K2, C1, C2P)

    # fold conv bias + eval-mode BatchNorm into per-channel scale / shift
    inv1 = p["g1"] / jnp.sqrt(p["rv1"] + eps)
    s1 = inv1.reshape(1, C1)
    b1 = ((p["b1"] - p["rm1"]) * inv1 + p["beta1"]).reshape(1, C1)
    inv2 = p["g2"] / jnp.sqrt(p["rv2"] + eps)
    s2 = jnp.pad(inv2, (0, C2P - C2)).reshape(1, C2P)
    b2 = jnp.pad((p["b2"] - p["rm2"]) * inv2 + p["beta2"],
                 (0, C2P - C2)).reshape(1, C2P)

    out = pl.pallas_call(
        spectral_kernel,
        out_shape=jax.ShapeDtypeStruct((B, OUT_L, C2P), jnp.float32),
        grid=(B,),
        in_specs=[
            pl.BlockSpec((1, L, F1), lambda b: (b, 0, 0)),
            pl.BlockSpec((F1, C1), lambda b: (0, 0)),
            pl.BlockSpec((1, C1), lambda b: (0, 0)),
            pl.BlockSpec((1, C1), lambda b: (0, 0)),
            pl.BlockSpec((K2, C1, C2P), lambda b: (0, 0, 0)),
            pl.BlockSpec((1, C2P), lambda b: (0, 0)),
            pl.BlockSpec((1, C2P), lambda b: (0, 0)),
        ],
        out_specs=pl.BlockSpec((1, OUT_L, C2P), lambda b: (b, 0, 0)),
        scratch_shapes=[
            pltpu.VMEM((TOP + L2 + BOT, C1), jnp.float32),   # padded conv2 input
        ],
        compiler_params=pltpu.CompilerParams(
            dimension_semantics=("parallel",)),              # megacore on v7x
    )(cols, w1, s1, b1, w2, s2, b2)

    out = out[:, :, :C2]                       # drop padded output channels
    return jnp.transpose(out, (0, 2, 1))       # back to PyTorch NCL: (B, 64, 64)


def spectral_ref(x_ncl, p, eps=1e-5):
    """Pure-JAX reference of the PyTorch forward (eval-mode BN)."""
    hp = jax.lax.Precision.HIGHEST

    def conv1d(x, w, b, pad):
        y = jax.lax.conv_general_dilated(
            x, w, window_strides=(1,), padding=[(pad, pad)],
            dimension_numbers=("NCH", "OIH", "NCH"), precision=hp)
        return y + b[None, :, None]

    def bn(x, g, beta, rm, rv):
        return ((x - rm[None, :, None]) / jnp.sqrt(rv[None, :, None] + eps)
                * g[None, :, None] + beta[None, :, None])

    gelu = lambda t: jax.nn.gelu(t, approximate=False)
    B = x_ncl.shape[0]
    y = gelu(bn(conv1d(x_ncl, p["w1"], p["b1"], 3),
                p["g1"], p["beta1"], p["rm1"], p["rv1"]))
    L = y.shape[-1]
    y = y.reshape(B, C1, L // 2, 2).max(-1)                 # MaxPool1d(2)
    y = gelu(bn(conv1d(y, p["w2"], p["b2"], 2),
                p["g2"], p["beta2"], p["rm2"], p["rv2"]))
    L2 = y.shape[-1]
    y = y.reshape(B, C2, OUT_L, L2 // OUT_L).max(-1)        # AdaptiveMaxPool1d(64)
    return y


if __name__ == "__main__":
    key = jax.random.PRNGKey(0)
    kx, kp = jax.random.split(key)

    B, Cin, L = 2, 4, 256          # (batch, in_channels, sequence length)
    x = jax.random.normal(kx, (B, Cin, L), jnp.float32)
    params = init_params(kp, Cin)

    y = spectral_stream(x, params)
    jax.block_until_ready(y)
    assert y.shape == (B, C2, OUT_L), y.shape
    assert bool(jnp.all(jnp.isfinite(y)))

    y_ref = spectral_ref(x, params)
    err = float(jnp.max(jnp.abs(y - y_ref)))
    assert jnp.allclose(y, y_ref, atol=2e-3, rtol=2e-3), f"max abs err {err}"
    print("KERNEL_OK")
</pallas_src>

<mosaic_0001>
module attributes {stable_mosaic.version = 11 : i64} {
  func.func @spectral_kernel(%arg0: i32, %arg1: memref<1x256x32xf32, #tpu.memory_space<vmem>>, %arg2: memref<32x128xf32, #tpu.memory_space<vmem>>, %arg3: memref<1x128xf32, #tpu.memory_space<vmem>>, %arg4: memref<1x128xf32, #tpu.memory_space<vmem>>, %arg5: memref<5x128x128xf32, #tpu.memory_space<vmem>>, %arg6: memref<1x128xf32, #tpu.memory_space<vmem>>, %arg7: memref<1x128xf32, #tpu.memory_space<vmem>>, %arg8: memref<1x64x128xf32, #tpu.memory_space<vmem>>, %arg9: memref<144x128xf32, #tpu.memory_space<vmem>>) attributes {dimension_semantics = [#tpu.dimension_semantics<parallel>], iteration_bounds = array<i64: 2>, scalar_prefetch = 0 : i64, scratch_operands = 1 : i64, tpu.core_type = #tpu.core_type<tc>, window_params = [{transform_indices = @transform_0, window_bounds = array<i64: 1, 256, 32>}, {pipeline_mode = #tpu.pipeline_mode<synchronous>, transform_indices = @transform_1, window_bounds = array<i64: 32, 128>}, {pipeline_mode = #tpu.pipeline_mode<synchronous>, transform_indices = @transform_2, window_bounds = array<i64: 1, 128>}, {pipeline_mode = #tpu.pipeline_mode<synchronous>, transform_indices = @transform_3, window_bounds = array<i64: 1, 128>}, {pipeline_mode = #tpu.pipeline_mode<synchronous>, transform_indices = @transform_4, window_bounds = array<i64: 5, 128, 128>}, {pipeline_mode = #tpu.pipeline_mode<synchronous>, transform_indices = @transform_5, window_bounds = array<i64: 1, 128>}, {pipeline_mode = #tpu.pipeline_mode<synchronous>, transform_indices = @transform_6, window_bounds = array<i64: 1, 128>}, {transform_indices = @transform_7, window_bounds = array<i64: 1, 64, 128>}]} {
    %c0 = arith.constant 0 : index
    %c0_0 = arith.constant 0 : index
    %c0_1 = arith.constant 0 : index
    %0 = vector.load %arg1[%c0, %c0_0, %c0_1] : memref<1x256x32xf32, #tpu.memory_space<vmem>>, vector<1x256x32xf32>
    %1 = vector.shape_cast %0 : vector<1x256x32xf32> to vector<256x32xf32>
    %c0_2 = arith.constant 0 : index
    %c0_3 = arith.constant 0 : index
    %2 = vector.load %arg2[%c0_2, %c0_3] : memref<32x128xf32, #tpu.memory_space<vmem>>, vector<32x128xf32>
    %cst = arith.constant dense<0.000000e+00> : vector<256x128xf32>
    %3 = tpu.matmul %1, %2, %cst {dimension_numbers = #tpu.dot_dimension_numbers<[1], [0], [0], [1], [0, 0, 1, 1], [], []>} : vector<256x32xf32>, vector<32x128xf32>, vector<256x128xf32> -> vector<256x128xf32>
    %c0_4 = arith.constant 0 : index
    %c0_5 = arith.constant 0 : index
    %4 = vector.load %arg3[%c0_4, %c0_5] : memref<1x128xf32, #tpu.memory_space<vmem>>, vector<1x128xf32>
    %5 = vector.broadcast %4 : vector<1x128xf32> to vector<256x128xf32>
    %6 = arith.mulf %3, %5 : vector<256x128xf32>
    %c0_6 = arith.constant 0 : index
    %c0_7 = arith.constant 0 : index
    %7 = vector.load %arg4[%c0_6, %c0_7] : memref<1x128xf32, #tpu.memory_space<vmem>>, vector<1x128xf32>
    %8 = vector.broadcast %7 : vector<1x128xf32> to vector<256x128xf32>
    %9 = arith.addf %6, %8 : vector<256x128xf32>
    %cst_8 = arith.constant 5.000000e-01 : f32
    %10 = vector.broadcast %cst_8 : f32 to vector<256x128xf32>
    %11 = arith.mulf %10, %9 : vector<256x128xf32>
    %cst_9 = arith.constant 0.707106769 : f32
    %12 = vector.broadcast %cst_9 : f32 to vector<256x128xf32>
    %13 = arith.mulf %9, %12 : vector<256x128xf32>
    %14 = math.erf %13 : vector<256x128xf32>
    %cst_10 = arith.constant 1.000000e+00 : f32
    %15 = vector.broadcast %cst_10 : f32 to vector<256x128xf32>
    %16 = arith.addf %15, %14 : vector<256x128xf32>
    %17 = arith.mulf %11, %16 : vector<256x128xf32>
    %18 = vector.shape_cast %17 : vector<256x128xf32> to vector<128x2x128xf32>
    %cst_11 = arith.constant dense<0xFF800000> : vector<128x128xf32>
    %19 = vector.multi_reduction <maximumf>, %18, %cst_11 [1] : vector<128x2x128xf32> to vector<128x128xf32>
    %cst_12 = arith.constant 0.000000e+00 : f32
    %20 = vector.broadcast %cst_12 : f32 to vector<8x128xf32>
    %c0_13 = arith.constant 0 : index
    %c0_14 = arith.constant 0 : index
    %21 = vector.load %arg9[%c0_13, %c0_14] : memref<144x128xf32, #tpu.memory_space<vmem>>, vector<8x128xf32>
    tpu.vector_store %arg9[%c0_13, %c0_14], %20 {strides = array<i32>} : memref<144x128xf32, #tpu.memory_space<vmem>>, vector<8x128xf32>,
    %cst_15 = arith.constant 0.000000e+00 : f32
    %22 = vector.broadcast %cst_15 : f32 to vector<8x128xf32>
    %c136 = arith.constant 136 : index
    %c0_16 = arith.constant 0 : index
    %23 = vector.load %arg9[%c136, %c0_16] : memref<144x128xf32, #tpu.memory_space<vmem>>, vector<8x128xf32>
    tpu.vector_store %arg9[%c136, %c0_16], %22 {strides = array<i32>} : memref<144x128xf32, #tpu.memory_space<vmem>>, vector<8x128xf32>,
    %c8 = arith.constant 8 : index
    %c0_17 = arith.constant 0 : index
    %24 = vector.load %arg9[%c8, %c0_17] : memref<144x128xf32, #tpu.memory_space<vmem>>, vector<128x128xf32>
    tpu.vector_store %arg9[%c8, %c0_17], %19 {strides = array<i32>} : memref<144x128xf32, #tpu.memory_space<vmem>>, vector<128x128xf32>,
    %cst_18 = arith.constant 0.000000e+00 : f32
    %25 = vector.broadcast %cst_18 : f32 to vector<128x128xf32>
    %c6 = arith.constant 6 : index
    %c0_19 = arith.constant 0 : index
    %26 = vector.load %arg9[%c6, %c0_19] : memref<144x128xf32, #tpu.memory_space<vmem>>, vector<128x128xf32>
    %c0_20 = arith.constant 0 : index
    %c0_21 = arith.constant 0 : index
    %c0_22 = arith.constant 0 : index
    %27 = vector.load %arg5[%c0_20, %c0_21, %c0_22] : memref<5x128x128xf32, #tpu.memory_space<vmem>>, vector<1x128x128xf32>
    %28 = vector.shape_cast %27 : vector<1x128x128xf32> to vector<128x128xf32>
    %cst_23 = arith.constant dense<0.000000e+00> : vector<128x128xf32>
    %29 = tpu.matmul %26, %28, %cst_23 {dimension_numbers = #tpu.dot_dimension_numbers<[1], [0], [0], [1], [0, 0, 1, 1], [], []>} : vector<128x128xf32>, vector<128x128xf32>, vector<128x128xf32> -> vector<128x128xf32>
    %30 = arith.addf %25, %29 : vector<128x128xf32>
    %c7 = arith.constant 7 : index
    %c0_24 = arith.constant 0 : index
    %31 = vector.load %arg9[%c7, %c0_24] : memref<144x128xf32, #tpu.memory_space<vmem>>, vector<128x128xf32>
    %c1 = arith.constant 1 : index
    %c0_25 = arith.constant 0 : index
    %c0_26 = arith.constant 0 : index
    %32 = vector.load %arg5[%c1, %c0_25, %c0_26] : memref<5x128x128xf32, #tpu.memory_space<vmem>>, vector<1x128x128xf32>
    %33 = vector.shape_cast %32 : vector<1x128x128xf32> to vector<128x128xf32>
    %cst_27 = arith.constant dense<0.000000e+00> : vector<128x128xf32>
    %34 = tpu.matmul %31, %33, %cst_27 {dimension_numbers = #tpu.dot_dimension_numbers<[1], [0], [0], [1], [0, 0, 1, 1], [], []>} : vector<128x128xf32>, vector<128x128xf32>, vector<128x128xf32> -> vector<128x128xf32>
    %35 = arith.addf %30, %34 : vector<128x128xf32>
    %c8_28 = arith.constant 8 : index
    %c0_29 = arith.constant 0 : index
    %36 = vector.load %arg9[%c8_28, %c0_29] : memref<144x128xf32, #tpu.memory_space<vmem>>, vector<128x128xf32>
    %c2 = arith.constant 2 : index
    %c0_30 = arith.constant 0 : index
    %c0_31 = arith.constant 0 : index
    %37 = vector.load %arg5[%c2, %c0_30, %c0_31] : memref<5x128x128xf32, #tpu.memory_space<vmem>>, vector<1x128x128xf32>
    %38 = vector.shape_cast %37 : vector<1x128x128xf32> to vector<128x128xf32>
    %cst_32 = arith.constant dense<0.000000e+00> : vector<128x128xf32>
    %39 = tpu.matmul %36, %38, %cst_32 {dimension_numbers = #tpu.dot_dimension_numbers<[1], [0], [0], [1], [0, 0, 1, 1], [], []>} : vector<128x128xf32>, vector<128x128xf32>, vector<128x128xf32> -> vector<128x128xf32>
    %40 = arith.addf %35, %39 : vector<128x128xf32>
    %c9 = arith.constant 9 : index
    %c0_33 = arith.constant 0 : index
    %41 = vector.load %arg9[%c9, %c0_33] : memref<144x128xf32, #tpu.memory_space<vmem>>, vector<128x128xf32>
    %c3 = arith.constant 3 : index
    %c0_34 = arith.constant 0 : index
    %c0_35 = arith.constant 0 : index
    %42 = vector.load %arg5[%c3, %c0_34, %c0_35] : memref<5x128x128xf32, #tpu.memory_space<vmem>>, vector<1x128x128xf32>
    %43 = vector.shape_cast %42 : vector<1x128x128xf32> to vector<128x128xf32>
    %cst_36 = arith.constant dense<0.000000e+00> : vector<128x128xf32>
    %44 = tpu.matmul %41, %43, %cst_36 {dimension_numbers = #tpu.dot_dimension_numbers<[1], [0], [0], [1], [0, 0, 1, 1], [], []>} : vector<128x128xf32>, vector<128x128xf32>, vector<128x128xf32> -> vector<128x128xf32>
    %45 = arith.addf %40, %44 : vector<128x128xf32>
    %c10 = arith.constant 10 : index
    %c0_37 = arith.constant 0 : index
    %46 = vector.load %arg9[%c10, %c0_37] : memref<144x128xf32, #tpu.memory_space<vmem>>, vector<128x128xf32>
    %c4 = arith.constant 4 : index
    %c0_38 = arith.constant 0 : index
    %c0_39 = arith.constant 0 : index
    %47 = vector.load %arg5[%c4, %c0_38, %c0_39] : memref<5x128x128xf32, #tpu.memory_space<vmem>>, vector<1x128x128xf32>
    %48 = vector.shape_cast %47 : vector<1x128x128xf32> to vector<128x128xf32>
    %cst_40 = arith.constant dense<0.000000e+00> : vector<128x128xf32>
    %49 = tpu.matmul %46, %48, %cst_40 {dimension_numbers = #tpu.dot_dimension_numbers<[1], [0], [0], [1], [0, 0, 1, 1], [], []>} : vector<128x128xf32>, vector<128x128xf32>, vector<128x128xf32> -> vector<128x128xf32>
    %50 = arith.addf %45, %49 : vector<128x128xf32>
    %c0_41 = arith.constant 0 : index
    %c0_42 = arith.constant 0 : index
    %51 = vector.load %arg6[%c0_41, %c0_42] : memref<1x128xf32, #tpu.memory_space<vmem>>, vector<1x128xf32>
    %52 = vector.broadcast %51 : vector<1x128xf32> to vector<128x128xf32>
    %53 = arith.mulf %50, %52 : vector<128x128xf32>
    %c0_43 = arith.constant 0 : index
    %c0_44 = arith.constant 0 : index
    %54 = vector.load %arg7[%c0_43, %c0_44] : memref<1x128xf32, #tpu.memory_space<vmem>>, vector<1x128xf32>
    %55 = vector.broadcast %54 : vector<1x128xf32> to vector<128x128xf32>
    %56 = arith.addf %53, %55 : vector<128x128xf32>
    %cst_45 = arith.constant 5.000000e-01 : f32
    %57 = vector.broadcast %cst_45 : f32 to vector<128x128xf32>
    %58 = arith.mulf %57, %56 : vector<128x128xf32>
    %cst_46 = arith.constant 0.707106769 : f32
    %59 = vector.broadcast %cst_46 : f32 to vector<128x128xf32>
    %60 = arith.mulf %56, %59 : vector<128x128xf32>
    %61 = math.erf %60 : vector<128x128xf32>
    %cst_47 = arith.constant 1.000000e+00 : f32
    %62 = vector.broadcast %cst_47 : f32 to vector<128x128xf32>
    %63 = arith.addf %62, %61 : vector<128x128xf32>
    %64 = arith.mulf %58, %63 : vector<128x128xf32>
    %65 = vector.shape_cast %64 : vector<128x128xf32> to vector<64x2x128xf32>
    %cst_48 = arith.constant dense<0xFF800000> : vector<64x128xf32>
    %66 = vector.multi_reduction <maximumf>, %65, %cst_48 [1] : vector<64x2x128xf32> to vector<64x128xf32>
    %c0_49 = arith.constant 0 : index
    %c0_50 = arith.constant 0 : index
    %c0_51 = arith.constant 0 : index
    %67 = vector.load %arg8[%c0_49, %c0_50, %c0_51] : memref<1x64x128xf32, #tpu.memory_space<vmem>>, vector<1x64x128xf32>
    %68 = vector.shape_cast %67 : vector<1x64x128xf32> to vector<64x128xf32>
    %69 = vector.shape_cast %66 : vector<64x128xf32> to vector<1x64x128xf32>
    tpu.vector_store %arg8[%c0_49, %c0_50, %c0_51], %69 {strides = array<i32>} : memref<1x64x128xf32, #tpu.memory_space<vmem>>, vector<1x64x128xf32>,
    return
  }
  func.func @transform_0(%arg0: i32) -> (i32, i32, i32) {
    %c0_i32 = arith.constant 0 : i32
    %c0_i32_0 = arith.constant 0 : i32
    %c0_i32_1 = arith.constant 0 : i32
    return %arg0, %c0_i32, %c0_i32_0 : i32, i32, i32
  }
  func.func @transform_1(%arg0: i32) -> (i32, i32) {
    %c0_i32 = arith.constant 0 : i32
    %c0_i32_0 = arith.constant 0 : i32
    %c0_i32_1 = arith.constant 0 : i32
    return %c0_i32, %c0_i32_0 : i32, i32
  }
  func.func @transform_2(%arg0: i32) -> (i32, i32) {
    %c0_i32 = arith.constant 0 : i32
    %c0_i32_0 = arith.constant 0 : i32
    %c0_i32_1 = arith.constant 0 : i32
    return %c0_i32, %c0_i32_0 : i32, i32
  }
  func.func @transform_3(%arg0: i32) -> (i32, i32) {
    %c0_i32 = arith.constant 0 : i32
    %c0_i32_0 = arith.constant 0 : i32
    %c0_i32_1 = arith.constant 0 : i32
    return %c0_i32, %c0_i32_0 : i32, i32
  }
  func.func @transform_4(%arg0: i32) -> (i32, i32, i32) {
    %c0_i32 = arith.constant 0 : i32
    %c0_i32_0 = arith.constant 0 : i32
    %c0_i32_1 = arith.constant 0 : i32
    %c0_i32_2 = arith.constant 0 : i32
    return %c0_i32, %c0_i32_0, %c0_i32_1 : i32, i32, i32
  }
  func.func @transform_5(%arg0: i32) -> (i32, i32) {
    %c0_i32 = arith.constant 0 : i32
    %c0_i32_0 = arith.constant 0 : i32
    %c0_i32_1 = arith.constant 0 : i32
    return %c0_i32, %c0_i32_0 : i32, i32
  }
  func.func @transform_6(%arg0: i32) -> (i32, i32) {
    %c0_i32 = arith.constant 0 : i32
    %c0_i32_0 = arith.constant 0 : i32
    %c0_i32_1 = arith.constant 0 : i32
    return %c0_i32, %c0_i32_0 : i32, i32
  }
  func.func @transform_7(%arg0: i32) -> (i32, i32, i32) {
    %c0_i32 = arith.constant 0 : i32
    %c0_i32_0 = arith.constant 0 : i32
    %c0_i32_1 = arith.constant 0 : i32
    return %arg0, %c0_i32, %c0_i32_0 : i32, i32, i32
  }
}

</mosaic_0001>

<llo_original>
// kernel: tpu_custom_call.1
$region0: #{tpu_custom_call.1}
  #allocation0 [shape = 'u32[]', space=smem, size = 0x4, offset = 0x4, fixed_abs, tag = 'smem constant byte address 0x4 - core index']
  #allocation1 [shape = 'u32[144,128]{1,0:T(1,128)}', space=vmem, size = 0x12000, scoped, tag = 'internal scratch']
  #allocation2 [shape = 'f32[144,128]{1,0:T(8,128)}', space=vmem, size = 0x12000, scoped, tag = 'scratch operand']
  %s0 = inlined_call_operand.vmem [shape: f32[2,256,32], index: 0, kind: input, shape index: {}]
  %s1 = inlined_call_operand.hbm [shape: f32[32,128], index: 1, kind: input, shape index: {}]
  %s2 = inlined_call_operand.vmem [shape: f32[1,128], index: 2, kind: input, shape index: {}]
  %s3 = inlined_call_operand.vmem [shape: f32[1,128], index: 3, kind: input, shape index: {}]
  %s4 = inlined_call_operand.vmem [shape: f32[5,128,128], index: 4, kind: input, shape index: {}]
  %s5 = inlined_call_operand.vmem [shape: f32[1,128], index: 5, kind: input, shape index: {}]
  %s6 = inlined_call_operand.vmem [shape: f32[1,128], index: 6, kind: input, shape index: {}]
  %s7 = inlined_call_operand.hbm [shape: f32[2,64,128], index: 7, kind: output, shape index: {}]
  %s8 = sld [smem:[#allocation0]]
  $region65: #{tpu_custom_call.1} parent=0
    _
  %s10 = ssub.s32 1, %s8
  %s11 = scalar_select 0, %s10, %s8
  $region1: #{tpu_custom_call.1} parent=0
    #allocation3 [shape = 'u8[16384]{0}', space=vmem, size = 0x4000, scoped, tag = 'input window, operand 1, single buffered']
    #allocation4 [shape = 's32[2]{0}', space=sflag, size = 0x8, scoped, tag = 'scoped memory for tpu_custom_call.1']
    #allocation5 [shape = 's32[2]{0}', space=sflag, size = 0x8, scoped, tag = 'scoped memory for tpu_custom_call.1']
    #allocation6 [shape = 'u8[65536]{0}', space=vmem, size = 0x10000, scoped, tag = 'output window, operand 0']
    %12 = vsyncpa [#allocation4], 0
    %13 = vsyncpa [#allocation5], 0
    %s14 = scalar_lea.sflag [#allocation5], 1
    %15 = vsyncpa %s14, 0
    loop: start=0, step=1, limit=4
    $region2: #{tpu_custom_call.1} parent=1 // loop_pre_header
      _
    $region3: #{tpu_custom_call.1} parent=1 // loop_header
      %s17 = sphi 0, %s21
      %p18 = scmp.ge.s32.totalorder %s17, 4
      %s27 = sphi 0, %s29
      %s30 = sphi 0, %s27
      %s31 = sphi 0, %s30
      %s47 = sphi 0, %s31
      %s51 = sphi 0, %s51
      %s53 = sphi 0, %s51
      %s54 = sphi 0, %s53
      %s68 = sphi 0, %s54
      %s72 = sphi 0, %s72
      %s74 = sphi 0, %s72
      %s75 = sphi 0, %s74
      %s89 = sphi 0, %s75
      %s93 = sphi 0, %s93
      %s95 = sphi 0, %s93
      %s96 = sphi 0, %s95
      %s110 = sphi 0, %s96
      %s114 = sphi 0, %s114
      %s116 = sphi 0, %s114
      %s117 = sphi 0, %s116
      %s131 = sphi 0, %s117
      %s135 = sphi 0, %s135
      %s137 = sphi 0, %s135
      %s138 = sphi 0, %s137
      %s152 = sphi 0, %s138
      %s156 = sphi 0, %s156
      %s158 = sphi 0, %s156
      %s159 = sphi 0, %s158
      %s173 = sphi 0, %s159
      %s179 = sphi 0, %s181
      %s182 = sphi 0, %s179
      %s183 = sphi 0, %s182
      %s199 = sphi 0, %s183
    $region4: #{tpu_custom_call.1} parent=1 // loop_header_branch
      %20 = sbr.rel (%p18) target = $region8
    $region5: #{tpu_custom_call.1} parent=1 // loop_body
      %s22 = ssub.s32 %s17, 1
      %s23 = ssub.s32 %s17, 2
      %s24 = sadd.s32 %s17, 1
      %s25 = ssub.s32 %s17, %s24
      %p26 = scmp.eq.s32.totalorder %s25, 0
      %s28 = sadd.s32 %s27, 1
      %s29 = scalar_select %p26, %s27, %s28
      %p32 = pneg %p26
      %p33 = scmp.eq.s32.totalorder %s17, 1
      %p34 = por %p32, %p33
      %p35 = scmp.ne.s32.totalorder %s27, %s30
      %p36 = scmp.eq.s32.totalorder %s17, 0
      %p37 = por %p35, %p36
      %p38 = scmp.ne.s32.totalorder %s27, %s30
      %p39 = scmp.eq.s32.totalorder %s22, 1
      %p40 = por %p38, %p39
      %p41 = scmp.ne.s32.totalorder %s30, %s31
      %p42 = scmp.eq.s32.totalorder %s22, 0
      %p43 = por %p41, %p42
      %p44 = scmp.ne.s32.totalorder %s30, %s31
      %p45 = scmp.eq.s32.totalorder %s23, 1
      %p46 = por %p44, %p45
      %p48 = scmp.ne.s32.totalorder %s31, %s47
      %p49 = scmp.eq.s32.totalorder %s23, 0
      %p50 = por %p48, %p49
      %s52 = sadd.s32 %s51, 1
      %p55 = scmp.eq.s32.totalorder %s17, 1
      %p56 = scmp.ne.s32.totalorder %s51, %s53
      %p57 = scmp.eq.s32.totalorder %s17, 0
      %p58 = por %p56, %p57
      %p59 = scmp.ne.s32.totalorder %s51, %s53
      %p60 = scmp.eq.s32.totalorder %s22, 1
      %p61 = por %p59, %p60
      %p62 = scmp.ne.s32.totalorder %s53, %s54
      %p63 = scmp.eq.s32.totalorder %s22, 0
      %p64 = por %p62, %p63
      %p65 = scmp.ne.s32.totalorder %s53, %s54
      %p66 = scmp.eq.s32.totalorder %s23, 1
      %p67 = por %p65, %p66
      %p69 = scmp.ne.s32.totalorder %s54, %s68
      %p70 = scmp.eq.s32.totalorder %s23, 0
      %p71 = por %p69, %p70
      %s73 = sadd.s32 %s72, 1
      %p76 = scmp.eq.s32.totalorder %s17, 1
      %p77 = scmp.ne.s32.totalorder %s72, %s74
      %p78 = scmp.eq.s32.totalorder %s17, 0
      %p79 = por %p77, %p78
      %p80 = scmp.ne.s32.totalorder %s72, %s74
      %p81 = scmp.eq.s32.totalorder %s22, 1
      %p82 = por %p80, %p81
      %p83 = scmp.ne.s32.totalorder %s74, %s75
      %p84 = scmp.eq.s32.totalorder %s22, 0
      %p85 = por %p83, %p84
      %p86 = scmp.ne.s32.totalorder %s74, %s75
      %p87 = scmp.eq.s32.totalorder %s23, 1
      %p88 = por %p86, %p87
      %p90 = scmp.ne.s32.totalorder %s75, %s89
      %p91 = scmp.eq.s32.totalorder %s23, 0
      %p92 = por %p90, %p91
      %s94 = sadd.s32 %s93, 1
      %p97 = scmp.eq.s32.totalorder %s17, 1
      %p98 = scmp.ne.s32.totalorder %s93, %s95
      %p99 = scmp.eq.s32.totalorder %s17, 0
      %p100 = por %p98, %p99
      %p101 = scmp.ne.s32.totalorder %s93, %s95
      %p102 = scmp.eq.s32.totalorder %s22, 1
      %p103 = por %p101, %p102
      %p104 = scmp.ne.s32.totalorder %s95, %s96
      %p105 = scmp.eq.s32.totalorder %s22, 0
      %p106 = por %p104, %p105
      %p107 = scmp.ne.s32.totalorder %s95, %s96
      %p108 = scmp.eq.s32.totalorder %s23, 1
      %p109 = por %p107, %p108
      %p111 = scmp.ne.s32.totalorder %s96, %s110
      %p112 = scmp.eq.s32.totalorder %s23, 0
      %p113 = por %p111, %p112
      %s115 = sadd.s32 %s114, 1
      %p118 = scmp.eq.s32.totalorder %s17, 1
      %p119 = scmp.ne.s32.totalorder %s114, %s116
      %p120 = scmp.eq.s32.totalorder %s17, 0
      %p121 = por %p119, %p120
      %p122 = scmp.ne.s32.totalorder %s114, %s116
      %p123 = scmp.eq.s32.totalorder %s22, 1
      %p124 = por %p122, %p123
      %p125 = scmp.ne.s32.totalorder %s116, %s117
      %p126 = scmp.eq.s32.totalorder %s22, 0
      %p127 = por %p125, %p126
      %p128 = scmp.ne.s32.totalorder %s116, %s117
      %p129 = scmp.eq.s32.totalorder %s23, 1
      %p130 = por %p128, %p129
      %p132 = scmp.ne.s32.totalorder %s117, %s131
      %p133 = scmp.eq.s32.totalorder %s23, 0
      %p134 = por %p132, %p133
      %s136 = sadd.s32 %s135, 1
      %p139 = scmp.eq.s32.totalorder %s17, 1
      %p140 = scmp.ne.s32.totalorder %s135, %s137
      %p141 = scmp.eq.s32.totalorder %s17, 0
      %p142 = por %p140, %p141
      %p143 = scmp.ne.s32.totalorder %s135, %s137
      %p144 = scmp.eq.s32.totalorder %s22, 1
      %p145 = por %p143, %p144
      %p146 = scmp.ne.s32.totalorder %s137, %s138
      %p147 = scmp.eq.s32.totalorder %s22, 0
      %p148 = por %p146, %p147
      %p149 = scmp.ne.s32.totalorder %s137, %s138
      %p150 = scmp.eq.s32.totalorder %s23, 1
      %p151 = por %p149, %p150
      %p153 = scmp.ne.s32.totalorder %s138, %s152
      %p154 = scmp.eq.s32.totalorder %s23, 0
      %p155 = por %p153, %p154
      %s157 = sadd.s32 %s156, 1
      %p160 = scmp.eq.s32.totalorder %s17, 1
      %p161 = scmp.ne.s32.totalorder %s156, %s158
      %p162 = scmp.eq.s32.totalorder %s17, 0
      %p163 = por %p161, %p162
      %p164 = scmp.ne.s32.totalorder %s156, %s158
      %p165 = scmp.eq.s32.totalorder %s22, 1
      %p166 = por %p164, %p165
      %p167 = scmp.ne.s32.totalorder %s158, %s159
      %p168 = scmp.eq.s32.totalorder %s22, 0
      %p169 = por %p167, %p168
      %p170 = scmp.ne.s32.totalorder %s158, %s159
      %p171 = scmp.eq.s32.totalorder %s23, 1
      %p172 = por %p170, %p171
      %p174 = scmp.ne.s32.totalorder %s159, %s173
      %p175 = scmp.eq.s32.totalorder %s23, 0
      %p176 = por %p174, %p175
      %s177 = ssub.s32 %s17, %s24
      %p178 = scmp.eq.s32.totalorder %s177, 0
      %s180 = sadd.s32 %s179, 1
      %s181 = scalar_select %p178, %s179, %s180
      %p184 = pneg %p178
      %p185 = scmp.eq.s32.totalorder %s17, 1
      %p186 = por %p184, %p185
      %p187 = scmp.ne.s32.totalorder %s179, %s182
      %p188 = scmp.eq.s32.totalorder %s17, 0
      %p189 = por %p187, %p188
      %p190 = scmp.ne.s32.totalorder %s179, %s182
      %p191 = scmp.eq.s32.totalorder %s22, 1
      %p192 = por %p190, %p191
      %p193 = scmp.ne.s32.totalorder %s182, %s183
      %p194 = scmp.eq.s32.totalorder %s22, 0
      %p195 = por %p193, %p194
      %p196 = scmp.ne.s32.totalorder %s182, %s183
      %p197 = scmp.eq.s32.totalorder %s23, 1
      %p198 = por %p196, %p197
      %p200 = scmp.ne.s32.totalorder %s183, %s199
      %p201 = scmp.eq.s32.totalorder %s23, 0
      %p202 = por %p200, %p201
      %p203 = scmp.le.s32.totalorder 1, %s17
      %p204 = scmp.lt.s32.totalorder %s17, 3
      %p205 = pnand %p203, %p204
      %p206 = pneg %p205
      // Predicated region
      $region9: #{tpu_custom_call.1} parent=5 // pred_check
        _
      $region10: #{tpu_custom_call.1} parent=5 // pred_check_branch
        %208 = sbr.rel (%p205) target = $region12
      $region11: #{tpu_custom_call.1} parent=5 // pred_region
        %s209 = ssub.s32 %s17, 1
        // Predicated region
        $region13: #{tpu_custom_call.1} parent=11 // pred_check
          %p210 = pneg %p64
        $region14: #{tpu_custom_call.1} parent=11 // pred_check_branch
          %212 = sbr.rel (%p210) target = $region16
        $region15: #{tpu_custom_call.1} parent=11 // pred_region
          %s214 = ssub.s32 512, 512
          %215 = vsyncadd [#allocation4], %s214
          %s216 = sshll.u32 [#allocation3], 4
          %s217 = int_to_ptr.vmem [resolvable:$true] %s216
          %222 = dma.hbm_to_vmem [thread:$0]  %s1, 512, %s217, [#allocation4], 128, 128, 8
        $region16: #{tpu_custom_call.1} parent=11 // pred_fallthru
          _
        // Predicated region
        $region17: #{tpu_custom_call.1} parent=11 // pred_check
          %p223 = pneg %p85
        $region18: #{tpu_custom_call.1} parent=11 // pred_check_branch
          %225 = sbr.rel (%p223) target = $region20
        $region19: #{tpu_custom_call.1} parent=11 // pred_region
          _
        $region20: #{tpu_custom_call.1} parent=11 // pred_fallthru
          _
        // Predicated region
        $region21: #{tpu_custom_call.1} parent=11 // pred_check
          %p226 = pneg %p106
        $region22: #{tpu_custom_call.1} parent=11 // pred_check_branch
          %228 = sbr.rel (%p226) target = $region24
        $region23: #{tpu_custom_call.1} parent=11 // pred_region
          _
        $region24: #{tpu_custom_call.1} parent=11 // pred_fallthru
          _
        // Predicated region
        $region25: #{tpu_custom_call.1} parent=11 // pred_check
          %p229 = pneg %p127
        $region26: #{tpu_custom_call.1} parent=11 // pred_check_branch
          %231 = sbr.rel (%p229) target = $region28
        $region27: #{tpu_custom_call.1} parent=11 // pred_region
          _
        $region28: #{tpu_custom_call.1} parent=11 // pred_fallthru
          _
        // Predicated region
        $region29: #{tpu_custom_call.1} parent=11 // pred_check
          %p232 = pneg %p148
        $region30: #{tpu_custom_call.1} parent=11 // pred_check_branch
          %234 = sbr.rel (%p232) target = $region32
        $region31: #{tpu_custom_call.1} parent=11 // pred_region
          _
        $region32: #{tpu_custom_call.1} parent=11 // pred_fallthru
          _
        // Predicated region
        $region33: #{tpu_custom_call.1} parent=11 // pred_check
          %p235 = pneg %p169
        $region34: #{tpu_custom_call.1} parent=11 // pred_check_branch
          %237 = sbr.rel (%p235) target = $region36
        $region35: #{tpu_custom_call.1} parent=11 // pred_region
          _
        $region36: #{tpu_custom_call.1} parent=11 // pred_fallthru
          _
      $region12: #{tpu_custom_call.1} parent=5 // pred_fallthru
        _
      %p238 = scmp.lt.s32.totalorder %s17, 2
      // Predicated region
      $region37: #{tpu_custom_call.1} parent=5 // pred_check
        %p239 = pneg %p238
      $region38: #{tpu_custom_call.1} parent=5 // pred_check_branch
        %241 = sbr.rel (%p239) target = $region40
      $region39: #{tpu_custom_call.1} parent=5 // pred_region
        // Predicated region
        $region41: #{tpu_custom_call.1} parent=39 // pred_check
          %p242 = pneg %p37
        $region42: #{tpu_custom_call.1} parent=39 // pred_check_branch
          %244 = sbr.rel (%p242) target = $region44
        $region43: #{tpu_custom_call.1} parent=39 // pred_region
          %p245 = scmp.lt.s32.totalorder %s17, 1
          %s246 = scalar_select %p245, %s17, 1
          %s247 = smul.addr %s246, 32
          %s248 = smul.addr %s247, 8
          %s249 = scalar_lea.vmem %s0, %s248
        $region44: #{tpu_custom_call.1} parent=39 // pred_fallthru
          _
      $region40: #{tpu_custom_call.1} parent=5 // pred_fallthru
        _
      %p250 = scmp.le.s32.totalorder 1, %s17
      %p251 = scmp.lt.s32.totalorder %s17, 3
      %p252 = pnand %p250, %p251
      %p253 = pneg %p252
      // Predicated region
      $region45: #{tpu_custom_call.1} parent=5 // pred_check
        _
      $region46: #{tpu_custom_call.1} parent=5 // pred_check_branch
        %255 = sbr.rel (%p252) target = $region48
      $region47: #{tpu_custom_call.1} parent=5 // pred_region
        %s256 = ssub.s32 %s17, 1
        // Predicated region
        $region49: #{tpu_custom_call.1} parent=47 // pred_check
          %p257 = pneg %p64
        $region50: #{tpu_custom_call.1} parent=47 // pred_check_branch
          %259 = sbr.rel (%p257) target = $region52
        $region51: #{tpu_custom_call.1} parent=47 // pred_region
          %260 = dma.done [#allocation4], 512
        $region52: #{tpu_custom_call.1} parent=47 // pred_fallthru
          _
        %p261 = scmp.lt.s32.totalorder %s22, 1
        %s262 = scalar_select %p261, %s22, 1
        %s263 = smul.addr %s262, 32
        %s264 = smul.addr %s263, 8
        %s265 = scalar_lea.vmem %s0, %s264
        %p266 = pneg %p43
        %p267 = pneg %p40
        %p268 = pneg %p64
        %p269 = pneg %p61
        %p270 = pneg %p85
        %p271 = pneg %p82
        %p272 = pneg %p106
        %p273 = pneg %p103
        %p274 = pneg %p127
        %p275 = pneg %p124
        %p276 = pneg %p148
        %p277 = pneg %p145
        %p278 = pneg %p169
        %p279 = pneg %p166
        %p280 = pneg %p195
        %p281 = pneg %p192
        %s282 = sand.u32 %s182, 1
        %s283 = scalar_lea.sflag [#allocation5], %s282
        %s284 = sand.u32 %s182, 1
        %s285 = smul.addr %s284, 64
        %s286 = scalar_lea.vmem [#allocation6], %s285
        %p287 = scmp.lt.s32.totalorder %s22, 1
        %s288 = scalar_select %p287, %s22, 1
        %s289 = smul.addr %s288, 32
        %s290 = smul.addr %s289, 8
        %s291 = scalar_lea.vmem %s0, %s290
        %v292 = vld [vmem:[%s291] sm:$0xff]
        %v293 = vld [vmem:[%s291 + $0x8] sm:$0xff]
        %v294 = vld [vmem:[%s291 + $0x10] sm:$0xff]
        %v295 = vld [vmem:[%s291 + $0x18] sm:$0xff]
        %v296 = vld [vmem:[%s291 + $0x20] sm:$0xff]
        %v297 = vld [vmem:[%s291 + $0x28] sm:$0xff]
        %v298 = vld [vmem:[%s291 + $0x30] sm:$0xff]
        %v299 = vld [vmem:[%s291 + $0x38] sm:$0xff]
        %v300 = vld [vmem:[%s291 + $0x40] sm:$0xff]
        %v301 = vld [vmem:[%s291 + $0x48] sm:$0xff]
        %v302 = vld [vmem:[%s291 + $0x50] sm:$0xff]
        %v303 = vld [vmem:[%s291 + $0x58] sm:$0xff]
        %v304 = vld [vmem:[%s291 + $0x60] sm:$0xff]
        %v305 = vld [vmem:[%s291 + $0x68] sm:$0xff]
        %v306 = vld [vmem:[%s291 + $0x70] sm:$0xff]
        %v307 = vld [vmem:[%s291 + $0x78] sm:$0xff]
        %v308 = vld [vmem:[%s291 + $0x80] sm:$0xff]
        %v309 = vld [vmem:[%s291 + $0x88] sm:$0xff]
        %v310 = vld [vmem:[%s291 + $0x90] sm:$0xff]
        %v311 = vld [vmem:[%s291 + $0x98] sm:$0xff]
        %v312 = vld [vmem:[%s291 + $0xa0] sm:$0xff]
        %v313 = vld [vmem:[%s291 + $0xa8] sm:$0xff]
        %v314 = vld [vmem:[%s291 + $0xb0] sm:$0xff]
        %v315 = vld [vmem:[%s291 + $0xb8] sm:$0xff]
        %v316 = vld [vmem:[%s291 + $0xc0] sm:$0xff]
        %v317 = vld [vmem:[%s291 + $0xc8] sm:$0xff]
        %v318 = vld [vmem:[%s291 + $0xd0] sm:$0xff]
        %v319 = vld [vmem:[%s291 + $0xd8] sm:$0xff]
        %v320 = vld [vmem:[%s291 + $0xe0] sm:$0xff]
        %v321 = vld [vmem:[%s291 + $0xe8] sm:$0xff]
        %v322 = vld [vmem:[%s291 + $0xf0] sm:$0xff]
        %v323 = vld [vmem:[%s291 + $0xf8] sm:$0xff]
        %v324 = vld [vmem:[#allocation3] sm:$0xff]
        %v325 = vld [vmem:[#allocation3 + $0x8] sm:$0xff]
        %v326 = vld [vmem:[#allocation3 + $0x10] sm:$0xff]
        %v327 = vld [vmem:[#allocation3 + $0x18] sm:$0xff]
        %vm328 = vcmask 261120
        %v330 = vsel %vm328, %v292, 0
        %v333 = vsel %vm328, %v293, 0
        %v336 = vsel %vm328, %v294, 0
        %v339 = vsel %vm328, %v295, 0
        %v342 = vsel %vm328, %v296, 0
        %v345 = vsel %vm328, %v297, 0
        %v348 = vsel %vm328, %v298, 0
        %v351 = vsel %vm328, %v299, 0
        %v354 = vsel %vm328, %v300, 0
        %v357 = vsel %vm328, %v301, 0
        %v360 = vsel %vm328, %v302, 0
        %v363 = vsel %vm328, %v303, 0
        %v366 = vsel %vm328, %v304, 0
        %v369 = vsel %vm328, %v305, 0
        %v372 = vsel %vm328, %v306, 0
        %v375 = vsel %vm328, %v307, 0
        %v378 = vsel %vm328, %v308, 0
        %v381 = vsel %vm328, %v309, 0
        %v384 = vsel %vm328, %v310, 0
        %v387 = vsel %vm328, %v311, 0
        %v390 = vsel %vm328, %v312, 0
        %v393 = vsel %vm328, %v313, 0
        %v396 = vsel %vm328, %v314, 0
        %v399 = vsel %vm328, %v315, 0
        %v402 = vsel %vm328, %v316, 0
        %v405 = vsel %vm328, %v317, 0
        %v408 = vsel %vm328, %v318, 0
        %v411 = vsel %vm328, %v319, 0
        %v414 = vsel %vm328, %v320, 0
        %v417 = vsel %vm328, %v321, 0
        %v420 = vsel %vm328, %v322, 0
        %v423 = vsel %vm328, %v323, 0
        %425 = vmatprep.subr.mxu0 0.0
        %426 = vmatpush1.msra.mxu0 %v324
        %427 = vmatprep.subr.mxu0 0.0
        %428 = vmatpush1.msra.mxu0 %v325
        %429 = vmatprep.subr.mxu0 0.0
        %430 = vmatpush1.msra.mxu0 %v326
        %431 = vmatprep.subr.mxu0 0.0
        %432 = vmatpush1.msra.mxu0 %v327
        %433 = vmatprep.subr.mxu0 0.0
        %434 = vmatpush1.msra.mxu0 0.0
        %435 = vmatprep.subr.mxu0 0.0
        %436 = vmatpush1.msra.mxu0 0.0
        %437 = vmatprep.subr.mxu0 0.0
        %438 = vmatpush1.msra.mxu0 0.0
        %439 = vmatprep.subr.mxu0 0.0
        %440 = vmatpush1.msra.mxu0 0.0
        %441 = vmatprep.subr.mxu0 0.0
        %442 = vmatpush1.msra.mxu0 0.0
        %443 = vmatprep.subr.mxu0 0.0
        %444 = vmatpush1.msra.mxu0 0.0
        %445 = vmatprep.subr.mxu0 0.0
        %446 = vmatpush1.msra.mxu0 0.0
        %447 = vmatprep.subr.mxu0 0.0
        %448 = vmatpush1.msra.mxu0 0.0
        %449 = vmatprep.subr.mxu0 0.0
        %450 = vmatpush1.msra.mxu0 0.0
        %451 = vmatprep.subr.mxu0 0.0
        %452 = vmatpush1.msra.mxu0 0.0
        %453 = vmatprep.subr.mxu0 0.0
        %454 = vmatpush1.msra.mxu0 0.0
        %455 = vmatprep.subr.mxu0 0.0
        %456 = vmatpush1.msra.mxu0 0.0
        %457 = vmatprep.subr.mxu0 0.0
        %458 = vmatpush1.msra.mxu0 0.0
        %459 = vmatprep.subr.mxu0 0.0
        %460 = vmatpush1.msra.mxu0 0.0
        %461 = vmatprep.subr.mxu0 0.0
        %462 = vmatpush1.msra.mxu0 0.0
        %463 = vmatprep.subr.mxu0 0.0
        %464 = vmatpush1.msra.mxu0 0.0
        %465 = vmatprep.subr.mxu0 0.0
        %466 = vmatpush1.msra.mxu0 0.0
        %467 = vmatprep.subr.mxu0 0.0
        %468 = vmatpush1.msra.mxu0 0.0
        %469 = vmatprep.subr.mxu0 0.0
        %470 = vmatpush1.msra.mxu0 0.0
        %471 = vmatprep.subr.mxu0 0.0
        %472 = vmatpush1.msra.mxu0 0.0
        %473 = vmatprep.subr.mxu0 0.0
        %474 = vmatpush1.msra.mxu0 0.0
        %475 = vmatprep.subr.mxu0 0.0
        %476 = vmatpush1.msra.mxu0 0.0
        %477 = vmatprep.subr.mxu0 0.0
        %478 = vmatpush1.msra.mxu0 0.0
        %479 = vmatprep.subr.mxu0 0.0
        %480 = vmatpush1.msra.mxu0 0.0
        %481 = vmatprep.subr.mxu0 0.0
        %482 = vmatpush1.msra.mxu0 0.0
        %483 = vmatprep.subr.mxu0 0.0
        %484 = vmatpush1.msra.mxu0 0.0
        %485 = vmatprep.subr.mxu0 0.0
        %486 = vmatpush1.msra.mxu0 0.0
        %487 = vmatprep.subr.mxu0 0.0
        %488 = vmatpush1.msra.mxu0 0.0
        %489 = vmatprep.mubr.f32.mxu0 0.0
        %490 = vmatmul.mubr.f32.gmra.mrb[0].mxu0 %v330
        %v491 = vpop.f32.mrb[0].mxu0
        %v492 = vadd.f32 0.0, %v491
        %v493 = vpop.f32.mrb[0].mxu0
        %494 = vmatprep.mubr.f32.mxu0 0.0
        %495 = vmatmul.mubr.f32.gmra.mrb[0].mxu0 %v333
        %v496 = vpop.f32.mrb[0].mxu0
        %v497 = vadd.f32 0.0, %v496
        %v498 = vpop.f32.mrb[0].mxu0
        %499 = vmatprep.mubr.f32.mxu0 0.0
        %500 = vmatmul.mubr.f32.gmra.mrb[0].mxu0 %v336
        %v501 = vpop.f32.mrb[0].mxu0
        %v502 = vadd.f32 0.0, %v501
        %v503 = vpop.f32.mrb[0].mxu0
        %504 = vmatprep.mubr.f32.mxu0 0.0
        %505 = vmatmul.mubr.f32.gmra.mrb[0].mxu0 %v339
        %v506 = vpop.f32.mrb[0].mxu0
        %v507 = vadd.f32 0.0, %v506
        %v508 = vpop.f32.mrb[0].mxu0
        %509 = vmatprep.mubr.f32.mxu0 0.0
        %510 = vmatmul.mubr.f32.gmra.mrb[0].mxu0 %v342
        %v511 = vpop.f32.mrb[0].mxu0
        %v512 = vadd.f32 0.0, %v511
        %v513 = vpop.f32.mrb[0].mxu0
        %514 = vmatprep.mubr.f32.mxu0 0.0
        %515 = vmatmul.mubr.f32.gmra.mrb[0].mxu0 %v345
        %v516 = vpop.f32.mrb[0].mxu0
        %v517 = vadd.f32 0.0, %v516
        %v518 = vpop.f32.mrb[0].mxu0
        %519 = vmatprep.mubr.f32.mxu0 0.0
        %520 = vmatmul.mubr.f32.gmra.mrb[0].mxu0 %v348
        %v521 = vpop.f32.mrb[0].mxu0
        %v522 = vadd.f32 0.0, %v521
        %v523 = vpop.f32.mrb[0].mxu0
        %524 = vmatprep.mubr.f32.mxu0 0.0
        %525 = vmatmul.mubr.f32.gmra.mrb[0].mxu0 %v351
        %v526 = vpop.f32.mrb[0].mxu0
        %v527 = vadd.f32 0.0, %v526
        %v528 = vpop.f32.mrb[0].mxu0
        %529 = vmatprep.mubr.f32.mxu0 0.0
        %530 = vmatmul.mubr.f32.gmra.mrb[0].mxu0 %v354
        %v531 = vpop.f32.mrb[0].mxu0
        %v532 = vadd.f32 0.0, %v531
        %v533 = vpop.f32.mrb[0].mxu0
        %534 = vmatprep.mubr.f32.mxu0 0.0
        %535 = vmatmul.mubr.f32.gmra.mrb[0].mxu0 %v357
        %v536 = vpop.f32.mrb[0].mxu0
        %v537 = vadd.f32 0.0, %v536
        %v538 = vpop.f32.mrb[0].mxu0
        %539 = vmatprep.mubr.f32.mxu0 0.0
        %540 = vmatmul.mubr.f32.gmra.mrb[0].mxu0 %v360
        %v541 = vpop.f32.mrb[0].mxu0
        %v542 = vadd.f32 0.0, %v541
        %v543 = vpop.f32.mrb[0].mxu0
        %544 = vmatprep.mubr.f32.mxu0 0.0
        %545 = vmatmul.mubr.f32.gmra.mrb[0].mxu0 %v363
        %v546 = vpop.f32.mrb[0].mxu0
        %v547 = vadd.f32 0.0, %v546
        %v548 = vpop.f32.mrb[0].mxu0
        %549 = vmatprep.mubr.f32.mxu0 0.0
        %550 = vmatmul.mubr.f32.gmra.mrb[0].mxu0 %v366
        %v551 = vpop.f32.mrb[0].mxu0
        %v552 = vadd.f32 0.0, %v551
        %v553 = vpop.f32.mrb[0].mxu0
        %554 = vmatprep.mubr.f32.mxu0 0.0
        %555 = vmatmul.mubr.f32.gmra.mrb[0].mxu0 %v369
        %v556 = vpop.f32.mrb[0].mxu0
        %v557 = vadd.f32 0.0, %v556
        %v558 = vpop.f32.mrb[0].mxu0
        %559 = vmatprep.mubr.f32.mxu0 0.0
        %560 = vmatmul.mubr.f32.gmra.mrb[0].mxu0 %v372
        %v561 = vpop.f32.mrb[0].mxu0
        %v562 = vadd.f32 0.0, %v561
        %v563 = vpop.f32.mrb[0].mxu0
        %564 = vmatprep.mubr.f32.mxu0 0.0
        %565 = vmatmul.mubr.f32.gmra.mrb[0].mxu0 %v375
        %v566 = vpop.f32.mrb[0].mxu0
        %v567 = vadd.f32 0.0, %v566
        %v568 = vpop.f32.mrb[0].mxu0
        %569 = vmatprep.mubr.f32.mxu0 0.0
        %570 = vmatmul.mubr.f32.gmra.mrb[0].mxu0 %v378
        %v571 = vpop.f32.mrb[0].mxu0
        %v572 = vadd.f32 0.0, %v571
        %v573 = vpop.f32.mrb[0].mxu0
        %574 = vmatprep.mubr.f32.mxu0 0.0
        %575 = vmatmul.mubr.f32.gmra.mrb[0].mxu0 %v381
        %v576 = vpop.f32.mrb[0].mxu0
        %v577 = vadd.f32 0.0, %v576
        %v578 = vpop.f32.mrb[0].mxu0
        %579 = vmatprep.mubr.f32.mxu0 0.0
        %580 = vmatmul.mubr.f32.gmra.mrb[0].mxu0 %v384
        %v581 = vpop.f32.mrb[0].mxu0
        %v582 = vadd.f32 0.0, %v581
        %v583 = vpop.f32.mrb[0].mxu0
        %584 = vmatprep.mubr.f32.mxu0 0.0
        %585 = vmatmul.mubr.f32.gmra.mrb[0].mxu0 %v387
        %v586 = vpop.f32.mrb[0].mxu0
        %v587 = vadd.f32 0.0, %v586
        %v588 = vpop.f32.mrb[0].mxu0
        %589 = vmatprep.mubr.f32.mxu0 0.0
        %590 = vmatmul.mubr.f32.gmra.mrb[0].mxu0 %v390
        %v591 = vpop.f32.mrb[0].mxu0
        %v592 = vadd.f32 0.0, %v591
        %v593 = vpop.f32.mrb[0].mxu0
        %594 = vmatprep.mubr.f32.mxu0 0.0
        %595 = vmatmul.mubr.f32.gmra.mrb[0].mxu0 %v393
        %v596 = vpop.f32.mrb[0].mxu0
        %v597 = vadd.f32 0.0, %v596
        %v598 = vpop.f32.mrb[0].mxu0
        %599 = vmatprep.mubr.f32.mxu0 0.0
        %600 = vmatmul.mubr.f32.gmra.mrb[0].mxu0 %v396
        %v601 = vpop.f32.mrb[0].mxu0
        %v602 = vadd.f32 0.0, %v601
        %v603 = vpop.f32.mrb[0].mxu0
        %604 = vmatprep.mubr.f32.mxu0 0.0
        %605 = vmatmul.mubr.f32.gmra.mrb[0].mxu0 %v399
        %v606 = vpop.f32.mrb[0].mxu0
        %v607 = vadd.f32 0.0, %v606
        %v608 = vpop.f32.mrb[0].mxu0
        %609 = vmatprep.mubr.f32.mxu0 0.0
        %610 = vmatmul.mubr.f32.gmra.mrb[0].mxu0 %v402
        %v611 = vpop.f32.mrb[0].mxu0
        %v612 = vadd.f32 0.0, %v611
        %v613 = vpop.f32.mrb[0].mxu0
        %614 = vmatprep.mubr.f32.mxu0 0.0
        %615 = vmatmul.mubr.f32.gmra.mrb[0].mxu0 %v405
        %v616 = vpop.f32.mrb[0].mxu0
        %v617 = vadd.f32 0.0, %v616
        %v618 = vpop.f32.mrb[0].mxu0
        %619 = vmatprep.mubr.f32.mxu0 0.0
        %620 = vmatmul.mubr.f32.gmra.mrb[0].mxu0 %v408
        %v621 = vpop.f32.mrb[0].mxu0
        %v622 = vadd.f32 0.0, %v621
        %v623 = vpop.f32.mrb[0].mxu0
        %624 = vmatprep.mubr.f32.mxu0 0.0
        %625 = vmatmul.mubr.f32.gmra.mrb[0].mxu0 %v411
        %v626 = vpop.f32.mrb[0].mxu0
        %v627 = vadd.f32 0.0, %v626
        %v628 = vpop.f32.mrb[0].mxu0
        %629 = vmatprep.mubr.f32.mxu0 0.0
        %630 = vmatmul.mubr.f32.gmra.mrb[0].mxu0 %v414
        %v631 = vpop.f32.mrb[0].mxu0
        %v632 = vadd.f32 0.0, %v631
        %v633 = vpop.f32.mrb[0].mxu0
        %634 = vmatprep.mubr.f32.mxu0 0.0
        %635 = vmatmul.mubr.f32.gmra.mrb[0].mxu0 %v417
        %v636 = vpop.f32.mrb[0].mxu0
        %v637 = vadd.f32 0.0, %v636
        %v638 = vpop.f32.mrb[0].mxu0
        %639 = vmatprep.mubr.f32.mxu0 0.0
        %640 = vmatmul.mubr.f32.gmra.mrb[0].mxu0 %v420
        %v641 = vpop.f32.mrb[0].mxu0
        %v642 = vadd.f32 0.0, %v641
        %v643 = vpop.f32.mrb[0].mxu0
        %644 = vmatprep.mubr.f32.mxu0 0.0
        %645 = vmatmul.mubr.f32.gmra.mrb[0].mxu0 %v423
        %v646 = vpop.f32.mrb[0].mxu0
        %v647 = vadd.f32 0.0, %v646
        %v648 = vpop.f32.mrb[0].mxu0
        %649 = vdwg.mxu0
        %v650 = vld [vmem:[%s2] sm:$0x1]
        %v652 = vlaneseq
        %v653 = vshrl.u32 %v652, 7
        %v654 = vsub.s32 0, %v653
        %v655 = vrot.slane %v650, %v654
        %v657 = vmul.f32 %v492, %v655
        %v658 = vmul.f32 %v497, %v655
        %v659 = vmul.f32 %v502, %v655
        %v660 = vmul.f32 %v507, %v655
        %v661 = vmul.f32 %v512, %v655
        %v662 = vmul.f32 %v517, %v655
        %v663 = vmul.f32 %v522, %v655
        %v664 = vmul.f32 %v527, %v655
        %v665 = vmul.f32 %v532, %v655
        %v666 = vmul.f32 %v537, %v655
        %v667 = vmul.f32 %v542, %v655
        %v668 = vmul.f32 %v547, %v655
        %v669 = vmul.f32 %v552, %v655
        %v670 = vmul.f32 %v557, %v655
        %v671 = vmul.f32 %v562, %v655
        %v672 = vmul.f32 %v567, %v655
        %v673 = vmul.f32 %v572, %v655
        %v674 = vmul.f32 %v577, %v655
        %v675 = vmul.f32 %v582, %v655
        %v676 = vmul.f32 %v587, %v655
        %v677 = vmul.f32 %v592, %v655
        %v678 = vmul.f32 %v597, %v655
        %v679 = vmul.f32 %v602, %v655
        %v680 = vmul.f32 %v607, %v655
        %v681 = vmul.f32 %v612, %v655
        %v682 = vmul.f32 %v617, %v655
        %v683 = vmul.f32 %v622, %v655
        %v684 = vmul.f32 %v627, %v655
        %v685 = vmul.f32 %v632, %v655
        %v686 = vmul.f32 %v637, %v655
        %v687 = vmul.f32 %v642, %v655
        %v688 = vmul.f32 %v647, %v655
        %v689 = vld [vmem:[%s3] sm:$0x1]
        %v691 = vlaneseq
        %v692 = vshrl.u32 %v691, 7
        %v693 = vsub.s32 0, %v692
        %v694 = vrot.slane %v689, %v693
        %v696 = vadd.f32 %v657, %v694
        %v697 = vadd.f32 %v658, %v694
        %v698 = vadd.f32 %v659, %v694
        %v699 = vadd.f32 %v660, %v694
        %v700 = vadd.f32 %v661, %v694
        %v701 = vadd.f32 %v662, %v694
        %v702 = vadd.f32 %v663, %v694
        %v703 = vadd.f32 %v664, %v694
        %v704 = vadd.f32 %v665, %v694
        %v705 = vadd.f32 %v666, %v694
        %v706 = vadd.f32 %v667, %v694
        %v707 = vadd.f32 %v668, %v694
        %v708 = vadd.f32 %v669, %v694
        %v709 = vadd.f32 %v670, %v694
        %v710 = vadd.f32 %v671, %v694
        %v711 = vadd.f32 %v672, %v694
        %v712 = vadd.f32 %v673, %v694
        %v713 = vadd.f32 %v674, %v694
        %v714 = vadd.f32 %v675, %v694
        %v715 = vadd.f32 %v676, %v694
        %v716 = vadd.f32 %v677, %v694
        %v717 = vadd.f32 %v678, %v694
        %v718 = vadd.f32 %v679, %v694
        %v719 = vadd.f32 %v680, %v694
        %v720 = vadd.f32 %v681, %v694
        %v721 = vadd.f32 %v682, %v694
        %v722 = vadd.f32 %v683, %v694
        %v723 = vadd.f32 %v684, %v694
        %v724 = vadd.f32 %v685, %v694
        %v725 = vadd.f32 %v686, %v694
        %v726 = vadd.f32 %v687, %v694
        %v727 = vadd.f32 %v688, %v694
        %v728 = vmul.f32 %v696, 0.5
        %v729 = vmul.f32 %v697, 0.5
        %v730 = vmul.f32 %v698, 0.5
        %v731 = vmul.f32 %v699, 0.5
        %v732 = vmul.f32 %v700, 0.5
        %v733 = vmul.f32 %v701, 0.5
        %v734 = vmul.f32 %v702, 0.5
        %v735 = vmul.f32 %v703, 0.5
        %v736 = vmul.f32 %v704, 0.5
        %v737 = vmul.f32 %v705, 0.5
        %v738 = vmul.f32 %v706, 0.5
        %v739 = vmul.f32 %v707, 0.5
        %v740 = vmul.f32 %v708, 0.5
        %v741 = vmul.f32 %v709, 0.5
        %v742 = vmul.f32 %v710, 0.5
        %v743 = vmul.f32 %v711, 0.5
        %v744 = vmul.f32 %v712, 0.5
        %v745 = vmul.f32 %v713, 0.5
        %v746 = vmul.f32 %v714, 0.5
        %v747 = vmul.f32 %v715, 0.5
        %v748 = vmul.f32 %v716, 0.5
        %v749 = vmul.f32 %v717, 0.5
        %v750 = vmul.f32 %v718, 0.5
        %v751 = vmul.f32 %v719, 0.5
        %v752 = vmul.f32 %v720, 0.5
        %v753 = vmul.f32 %v721, 0.5
        %v754 = vmul.f32 %v722, 0.5
        %v755 = vmul.f32 %v723, 0.5
        %v756 = vmul.f32 %v724, 0.5
        %v757 = vmul.f32 %v725, 0.5
        %v758 = vmul.f32 %v726, 0.5
        %v759 = vmul.f32 %v727, 0.5
        %v760 = vmul.f32 %v696, 0.70710677
        %v761 = vmul.f32 %v697, 0.70710677
        %v762 = vmul.f32 %v698, 0.70710677
        %v763 = vmul.f32 %v699, 0.70710677
        %v764 = vmul.f32 %v700, 0.70710677
        %v765 = vmul.f32 %v701, 0.70710677
        %v766 = vmul.f32 %v702, 0.70710677
        %v767 = vmul.f32 %v703, 0.70710677
        %v768 = vmul.f32 %v704, 0.70710677
        %v769 = vmul.f32 %v705, 0.70710677
        %v770 = vmul.f32 %v706, 0.70710677
        %v771 = vmul.f32 %v707, 0.70710677
        %v772 = vmul.f32 %v708, 0.70710677
        %v773 = vmul.f32 %v709, 0.70710677
        %v774 = vmul.f32 %v710, 0.70710677
        %v775 = vmul.f32 %v711, 0.70710677
        %v776 = vmul.f32 %v712, 0.70710677
        %v777 = vmul.f32 %v713, 0.70710677
        %v778 = vmul.f32 %v714, 0.70710677
        %v779 = vmul.f32 %v715, 0.70710677
        %v780 = vmul.f32 %v716, 0.70710677
        %v781 = vmul.f32 %v717, 0.70710677
        %v782 = vmul.f32 %v718, 0.70710677
        %v783 = vmul.f32 %v719, 0.70710677
        %v784 = vmul.f32 %v720, 0.70710677
        %v785 = vmul.f32 %v721, 0.70710677
        %v786 = vmul.f32 %v722, 0.70710677
        %v787 = vmul.f32 %v723, 0.70710677
        %v788 = vmul.f32 %v724, 0.70710677
        %v789 = vmul.f32 %v725, 0.70710677
        %v790 = vmul.f32 %v726, 0.70710677
        %v791 = vmul.f32 %v727, 0.70710677
        %v792 = verf.f32.pop %v760
        %v793 = verf.f32.pop %v761
        %v794 = verf.f32.pop %v762
        %v795 = verf.f32.pop %v763
        %v796 = verf.f32.pop %v764
        %v797 = verf.f32.pop %v765
        %v798 = verf.f32.pop %v766
        %v799 = verf.f32.pop %v767
        %v800 = verf.f32.pop %v768
        %v801 = verf.f32.pop %v769
        %v802 = verf.f32.pop %v770
        %v803 = verf.f32.pop %v771
        %v804 = verf.f32.pop %v772
        %v805 = verf.f32.pop %v773
        %v806 = verf.f32.pop %v774
        %v807 = verf.f32.pop %v775
        %v808 = verf.f32.pop %v776
        %v809 = verf.f32.pop %v777
        %v810 = verf.f32.pop %v778
        %v811 = verf.f32.pop %v779
        %v812 = verf.f32.pop %v780
        %v813 = verf.f32.pop %v781
        %v814 = verf.f32.pop %v782
        %v815 = verf.f32.pop %v783
        %v816 = verf.f32.pop %v784
        %v817 = verf.f32.pop %v785
        %v818 = verf.f32.pop %v786
        %v819 = verf.f32.pop %v787
        %v820 = verf.f32.pop %v788
        %v821 = verf.f32.pop %v789
        %v822 = verf.f32.pop %v790
        %v823 = verf.f32.pop %v791
        %v824 = vadd.f32 %v792, 1.0
        %v825 = vadd.f32 %v793, 1.0
        %v826 = vadd.f32 %v794, 1.0
        %v827 = vadd.f32 %v795, 1.0
        %v828 = vadd.f32 %v796, 1.0
        %v829 = vadd.f32 %v797, 1.0
        %v830 = vadd.f32 %v798, 1.0
        %v831 = vadd.f32 %v799, 1.0
        %v832 = vadd.f32 %v800, 1.0
        %v833 = vadd.f32 %v801, 1.0
        %v834 = vadd.f32 %v802, 1.0
        %v835 = vadd.f32 %v803, 1.0
        %v836 = vadd.f32 %v804, 1.0
        %v837 = vadd.f32 %v805, 1.0
        %v838 = vadd.f32 %v806, 1.0
        %v839 = vadd.f32 %v807, 1.0
        %v840 = vadd.f32 %v808, 1.0
        %v841 = vadd.f32 %v809, 1.0
        %v842 = vadd.f32 %v810, 1.0
        %v843 = vadd.f32 %v811, 1.0
        %v844 = vadd.f32 %v812, 1.0
        %v845 = vadd.f32 %v813, 1.0
        %v846 = vadd.f32 %v814, 1.0
        %v847 = vadd.f32 %v815, 1.0
        %v848 = vadd.f32 %v816, 1.0
        %v849 = vadd.f32 %v817, 1.0
        %v850 = vadd.f32 %v818, 1.0
        %v851 = vadd.f32 %v819, 1.0
        %v852 = vadd.f32 %v820, 1.0
        %v853 = vadd.f32 %v821, 1.0
        %v854 = vadd.f32 %v822, 1.0
        %v855 = vadd.f32 %v823, 1.0
        %v856 = vmul.f32 %v728, %v824
        %v857 = vmul.f32 %v729, %v825
        %v858 = vmul.f32 %v730, %v826
        %v859 = vmul.f32 %v731, %v827
        %v860 = vmul.f32 %v732, %v828
        %v861 = vmul.f32 %v733, %v829
        %v862 = vmul.f32 %v734, %v830
        %v863 = vmul.f32 %v735, %v831
        %v864 = vmul.f32 %v736, %v832
        %v865 = vmul.f32 %v737, %v833
        %v866 = vmul.f32 %v738, %v834
        %v867 = vmul.f32 %v739, %v835
        %v868 = vmul.f32 %v740, %v836
        %v869 = vmul.f32 %v741, %v837
        %v870 = vmul.f32 %v742, %v838
        %v871 = vmul.f32 %v743, %v839
        %v872 = vmul.f32 %v744, %v840
        %v873 = vmul.f32 %v745, %v841
        %v874 = vmul.f32 %v746, %v842
        %v875 = vmul.f32 %v747, %v843
        %v876 = vmul.f32 %v748, %v844
        %v877 = vmul.f32 %v749, %v845
        %v878 = vmul.f32 %v750, %v846
        %v879 = vmul.f32 %v751, %v847
        %v880 = vmul.f32 %v752, %v848
        %v881 = vmul.f32 %v753, %v849
        %v882 = vmul.f32 %v754, %v850
        %v883 = vmul.f32 %v755, %v851
        %v884 = vmul.f32 %v756, %v852
        %v885 = vmul.f32 %v757, %v853
        %v886 = vmul.f32 %v758, %v854
        %v887 = vmul.f32 %v759, %v855
        %v920 = vcombine.high %v856, %v856
        %v922 = vunpack.c.l.s4 1983009808
        %v923 = vunpack.c.0.s8 %v922
        %v924 = vlaneseq
        %v925 = vshrl.u32 %v924, 7
        %v926 = vsub.s32 %v923, %v925
        %v927 = vrot.slane %v856, %v926
        %v929 = vunpack.c.l.s4 1983009808
        %v930 = vunpack.c.0.s8 %v929
        %v931 = vlaneseq
        %v932 = vshrl.u32 %v931, 7
        %v933 = vsub.s32 %v930, %v932
        %v934 = vrot.slane %v920, %v933
        %v935 = vcombine.high %v927, %v927
        %v936 = vcombine.high %v934, %v934
        %v937 = vcombine.high %v857, %v857
        %v939 = vunpack.c.l.s4 1983009808
        %v940 = vunpack.c.0.s8 %v939
        %v941 = vlaneseq
        %v942 = vshrl.u32 %v941, 7
        %v943 = vsub.s32 %v940, %v942
        %v944 = vrot.slane %v857, %v943
        %v946 = vunpack.c.l.s4 1983009808
        %v947 = vunpack.c.0.s8 %v946
        %v948 = vlaneseq
        %v949 = vshrl.u32 %v948, 7
        %v950 = vsub.s32 %v947, %v949
        %v951 = vrot.slane %v937, %v950
        %v952 = vcombine.high %v944, %v944
        %v953 = vcombine.high %v951, %v951
        %v954 = vcombine.high %v858, %v858
        %v956 = vunpack.c.l.s4 1983009808
        %v957 = vunpack.c.0.s8 %v956
        %v958 = vlaneseq
        %v959 = vshrl.u32 %v958, 7
        %v960 = vsub.s32 %v957, %v959
        %v961 = vrot.slane %v858, %v960
        %v963 = vunpack.c.l.s4 1983009808
        %v964 = vunpack.c.0.s8 %v963
        %v965 = vlaneseq
        %v966 = vshrl.u32 %v965, 7
        %v967 = vsub.s32 %v964, %v966
        %v968 = vrot.slane %v954, %v967
        %v969 = vcombine.high %v961, %v961
        %v970 = vcombine.high %v968, %v968
        %v971 = vcombine.high %v859, %v859
        %v973 = vunpack.c.l.s4 1983009808
        %v974 = vunpack.c.0.s8 %v973
        %v975 = vlaneseq
        %v976 = vshrl.u32 %v975, 7
        %v977 = vsub.s32 %v974, %v976
        %v978 = vrot.slane %v859, %v977
        %v980 = vunpack.c.l.s4 1983009808
        %v981 = vunpack.c.0.s8 %v980
        %v982 = vlaneseq
        %v983 = vshrl.u32 %v982, 7
        %v984 = vsub.s32 %v981, %v983
        %v985 = vrot.slane %v971, %v984
        %v986 = vcombine.high %v978, %v978
        %v987 = vcombine.high %v985, %v985
        %v988 = vcombine.high %v860, %v860
        %v990 = vunpack.c.l.s4 1983009808
        %v991 = vunpack.c.0.s8 %v990
        %v992 = vlaneseq
        %v993 = vshrl.u32 %v992, 7
        %v994 = vsub.s32 %v991, %v993
        %v995 = vrot.slane %v860, %v994
        %v997 = vunpack.c.l.s4 1983009808
        %v998 = vunpack.c.0.s8 %v997
        %v999 = vlaneseq
        %v1000 = vshrl.u32 %v999, 7
        %v1001 = vsub.s32 %v998, %v1000
        %v1002 = vrot.slane %v988, %v1001
        %v1003 = vcombine.high %v995, %v995
        %v1004 = vcombine.high %v1002, %v1002
        %v1005 = vcombine.high %v861, %v861
        %v1007 = vunpack.c.l.s4 1983009808
        %v1008 = vunpack.c.0.s8 %v1007
        %v1009 = vlaneseq
        %v1010 = vshrl.u32 %v1009, 7
        %v1011 = vsub.s32 %v1008, %v1010
        %v1012 = vrot.slane %v861, %v1011
        %v1014 = vunpack.c.l.s4 1983009808
        %v1015 = vunpack.c.0.s8 %v1014
        %v1016 = vlaneseq
        %v1017 = vshrl.u32 %v1016, 7
        %v1018 = vsub.s32 %v1015, %v1017
        %v1019 = vrot.slane %v1005, %v1018
        %v1020 = vcombine.high %v1012, %v1012
        %v1021 = vcombine.high %v1019, %v1019
        %v1022 = vcombine.high %v862, %v862
        %v1024 = vunpack.c.l.s4 1983009808
        %v1025 = vunpack.c.0.s8 %v1024
        %v1026 = vlaneseq
        %v1027 = vshrl.u32 %v1026, 7
        %v1028 = vsub.s32 %v1025, %v1027
        %v1029 = vrot.slane %v862, %v1028
        %v1031 = vunpack.c.l.s4 1983009808
        %v1032 = vunpack.c.0.s8 %v1031
        %v1033 = vlaneseq
        %v1034 = vshrl.u32 %v1033, 7
        %v1035 = vsub.s32 %v1032, %v1034
        %v1036 = vrot.slane %v1022, %v1035
        %v1037 = vcombine.high %v1029, %v1029
        %v1038 = vcombine.high %v1036, %v1036
        %v1039 = vcombine.high %v863, %v863
        %v1041 = vunpack.c.l.s4 1983009808
        %v1042 = vunpack.c.0.s8 %v1041
        %v1043 = vlaneseq
        %v1044 = vshrl.u32 %v1043, 7
        %v1045 = vsub.s32 %v1042, %v1044
        %v1046 = vrot.slane %v863, %v1045
        %v1048 = vunpack.c.l.s4 1983009808
        %v1049 = vunpack.c.0.s8 %v1048
        %v1050 = vlaneseq
        %v1051 = vshrl.u32 %v1050, 7
        %v1052 = vsub.s32 %v1049, %v1051
        %v1053 = vrot.slane %v1039, %v1052
        %v1054 = vcombine.high %v1046, %v1046
        %v1055 = vcombine.high %v1053, %v1053
        %v1056 = vcombine.high %v864, %v864
        %v1058 = vunpack.c.l.s4 1983009808
        %v1059 = vunpack.c.0.s8 %v1058
        %v1060 = vlaneseq
        %v1061 = vshrl.u32 %v1060, 7
        %v1062 = vsub.s32 %v1059, %v1061
        %v1063 = vrot.slane %v864, %v1062
        %v1065 = vunpack.c.l.s4 1983009808
        %v1066 = vunpack.c.0.s8 %v1065
        %v1067 = vlaneseq
        %v1068 = vshrl.u32 %v1067, 7
        %v1069 = vsub.s32 %v1066, %v1068
        %v1070 = vrot.slane %v1056, %v1069
        %v1071 = vcombine.high %v1063, %v1063
        %v1072 = vcombine.high %v1070, %v1070
        %v1073 = vcombine.high %v865, %v865
        %v1075 = vunpack.c.l.s4 1983009808
        %v1076 = vunpack.c.0.s8 %v1075
        %v1077 = vlaneseq
        %v1078 = vshrl.u32 %v1077, 7
        %v1079 = vsub.s32 %v1076, %v1078
        %v1080 = vrot.slane %v865, %v1079
        %v1082 = vunpack.c.l.s4 1983009808
        %v1083 = vunpack.c.0.s8 %v1082
        %v1084 = vlaneseq
        %v1085 = vshrl.u32 %v1084, 7
        %v1086 = vsub.s32 %v1083, %v1085
        %v1087 = vrot.slane %v1073, %v1086
        %v1088 = vcombine.high %v1080, %v1080
        %v1089 = vcombine.high %v1087, %v1087
        %v1090 = vcombine.high %v866, %v866
        %v1092 = vunpack.c.l.s4 1983009808
        %v1093 = vunpack.c.0.s8 %v1092
        %v1094 = vlaneseq
        %v1095 = vshrl.u32 %v1094, 7
        %v1096 = vsub.s32 %v1093, %v1095
        %v1097 = vrot.slane %v866, %v1096
        %v1099 = vunpack.c.l.s4 1983009808
        %v1100 = vunpack.c.0.s8 %v1099
        %v1101 = vlaneseq
        %v1102 = vshrl.u32 %v1101, 7
        %v1103 = vsub.s32 %v1100, %v1102
        %v1104 = vrot.slane %v1090, %v1103
        %v1105 = vcombine.high %v1097, %v1097
        %v1106 = vcombine.high %v1104, %v1104
        %v1107 = vcombine.high %v867, %v867
        %v1109 = vunpack.c.l.s4 1983009808
        %v1110 = vunpack.c.0.s8 %v1109
        %v1111 = vlaneseq
        %v1112 = vshrl.u32 %v1111, 7
        %v1113 = vsub.s32 %v1110, %v1112
        %v1114 = vrot.slane %v867, %v1113
        %v1116 = vunpack.c.l.s4 1983009808
        %v1117 = vunpack.c.0.s8 %v1116
        %v1118 = vlaneseq
        %v1119 = vshrl.u32 %v1118, 7
        %v1120 = vsub.s32 %v1117, %v1119
        %v1121 = vrot.slane %v1107, %v1120
        %v1122 = vcombine.high %v1114, %v1114
        %v1123 = vcombine.high %v1121, %v1121
        %v1124 = vcombine.high %v868, %v868
        %v1126 = vunpack.c.l.s4 1983009808
        %v1127 = vunpack.c.0.s8 %v1126
        %v1128 = vlaneseq
        %v1129 = vshrl.u32 %v1128, 7
        %v1130 = vsub.s32 %v1127, %v1129
        %v1131 = vrot.slane %v868, %v1130
        %v1133 = vunpack.c.l.s4 1983009808
        %v1134 = vunpack.c.0.s8 %v1133
        %v1135 = vlaneseq
        %v1136 = vshrl.u32 %v1135, 7
        %v1137 = vsub.s32 %v1134, %v1136
        %v1138 = vrot.slane %v1124, %v1137
        %v1139 = vcombine.high %v1131, %v1131
        %v1140 = vcombine.high %v1138, %v1138
        %v1141 = vcombine.high %v869, %v869
        %v1143 = vunpack.c.l.s4 1983009808
        %v1144 = vunpack.c.0.s8 %v1143
        %v1145 = vlaneseq
        %v1146 = vshrl.u32 %v1145, 7
        %v1147 = vsub.s32 %v1144, %v1146
        %v1148 = vrot.slane %v869, %v1147
        %v1150 = vunpack.c.l.s4 1983009808
        %v1151 = vunpack.c.0.s8 %v1150
        %v1152 = vlaneseq
        %v1153 = vshrl.u32 %v1152, 7
        %v1154 = vsub.s32 %v1151, %v1153
        %v1155 = vrot.slane %v1141, %v1154
        %v1156 = vcombine.high %v1148, %v1148
        %v1157 = vcombine.high %v1155, %v1155
        %v1158 = vcombine.high %v870, %v870
        %v1160 = vunpack.c.l.s4 1983009808
        %v1161 = vunpack.c.0.s8 %v1160
        %v1162 = vlaneseq
        %v1163 = vshrl.u32 %v1162, 7
        %v1164 = vsub.s32 %v1161, %v1163
        %v1165 = vrot.slane %v870, %v1164
        %v1167 = vunpack.c.l.s4 1983009808
        %v1168 = vunpack.c.0.s8 %v1167
        %v1169 = vlaneseq
        %v1170 = vshrl.u32 %v1169, 7
        %v1171 = vsub.s32 %v1168, %v1170
        %v1172 = vrot.slane %v1158, %v1171
        %v1173 = vcombine.high %v1165, %v1165
        %v1174 = vcombine.high %v1172, %v1172
        %v1175 = vcombine.high %v871, %v871
        %v1177 = vunpack.c.l.s4 1983009808
        %v1178 = vunpack.c.0.s8 %v1177
        %v1179 = vlaneseq
        %v1180 = vshrl.u32 %v1179, 7
        %v1181 = vsub.s32 %v1178, %v1180
        %v1182 = vrot.slane %v871, %v1181
        %v1184 = vunpack.c.l.s4 1983009808
        %v1185 = vunpack.c.0.s8 %v1184
        %v1186 = vlaneseq
        %v1187 = vshrl.u32 %v1186, 7
        %v1188 = vsub.s32 %v1185, %v1187
        %v1189 = vrot.slane %v1175, %v1188
        %v1190 = vcombine.high %v1182, %v1182
        %v1191 = vcombine.high %v1189, %v1189
        %v1192 = vcombine.high %v872, %v872
        %v1194 = vunpack.c.l.s4 1983009808
        %v1195 = vunpack.c.0.s8 %v1194
        %v1196 = vlaneseq
        %v1197 = vshrl.u32 %v1196, 7
        %v1198 = vsub.s32 %v1195, %v1197
        %v1199 = vrot.slane %v872, %v1198
        %v1201 = vunpack.c.l.s4 1983009808
        %v1202 = vunpack.c.0.s8 %v1201
        %v1203 = vlaneseq
        %v1204 = vshrl.u32 %v1203, 7
        %v1205 = vsub.s32 %v1202, %v1204
        %v1206 = vrot.slane %v1192, %v1205
        %v1207 = vcombine.high %v1199, %v1199
        %v1208 = vcombine.high %v1206, %v1206
        %v1209 = vcombine.high %v873, %v873
        %v1211 = vunpack.c.l.s4 1983009808
        %v1212 = vunpack.c.0.s8 %v1211
        %v1213 = vlaneseq
        %v1214 = vshrl.u32 %v1213, 7
        %v1215 = vsub.s32 %v1212, %v1214
        %v1216 = vrot.slane %v873, %v1215
        %v1218 = vunpack.c.l.s4 1983009808
        %v1219 = vunpack.c.0.s8 %v1218
        %v1220 = vlaneseq
        %v1221 = vshrl.u32 %v1220, 7
        %v1222 = vsub.s32 %v1219, %v1221
        %v1223 = vrot.slane %v1209, %v1222
        %v1224 = vcombine.high %v1216, %v1216
        %v1225 = vcombine.high %v1223, %v1223
        %v1226 = vcombine.high %v874, %v874
        %v1228 = vunpack.c.l.s4 1983009808
        %v1229 = vunpack.c.0.s8 %v1228
        %v1230 = vlaneseq
        %v1231 = vshrl.u32 %v1230, 7
        %v1232 = vsub.s32 %v1229, %v1231
        %v1233 = vrot.slane %v874, %v1232
        %v1235 = vunpack.c.l.s4 1983009808
        %v1236 = vunpack.c.0.s8 %v1235
        %v1237 = vlaneseq
        %v1238 = vshrl.u32 %v1237, 7
        %v1239 = vsub.s32 %v1236, %v1238
        %v1240 = vrot.slane %v1226, %v1239
        %v1241 = vcombine.high %v1233, %v1233
        %v1242 = vcombine.high %v1240, %v1240
        %v1243 = vcombine.high %v875, %v875
        %v1245 = vunpack.c.l.s4 1983009808
        %v1246 = vunpack.c.0.s8 %v1245
        %v1247 = vlaneseq
        %v1248 = vshrl.u32 %v1247, 7
        %v1249 = vsub.s32 %v1246, %v1248
        %v1250 = vrot.slane %v875, %v1249
        %v1252 = vunpack.c.l.s4 1983009808
        %v1253 = vunpack.c.0.s8 %v1252
        %v1254 = vlaneseq
        %v1255 = vshrl.u32 %v1254, 7
        %v1256 = vsub.s32 %v1253, %v1255
        %v1257 = vrot.slane %v1243, %v1256
        %v1258 = vcombine.high %v1250, %v1250
        %v1259 = vcombine.high %v1257, %v1257
        %v1260 = vcombine.high %v876, %v876
        %v1262 = vunpack.c.l.s4 1983009808
        %v1263 = vunpack.c.0.s8 %v1262
        %v1264 = vlaneseq
        %v1265 = vshrl.u32 %v1264, 7
        %v1266 = vsub.s32 %v1263, %v1265
        %v1267 = vrot.slane %v876, %v1266
        %v1269 = vunpack.c.l.s4 1983009808
        %v1270 = vunpack.c.0.s8 %v1269
        %v1271 = vlaneseq
        %v1272 = vshrl.u32 %v1271, 7
        %v1273 = vsub.s32 %v1270, %v1272
        %v1274 = vrot.slane %v1260, %v1273
        %v1275 = vcombine.high %v1267, %v1267
        %v1276 = vcombine.high %v1274, %v1274
        %v1277 = vcombine.high %v877, %v877
        %v1279 = vunpack.c.l.s4 1983009808
        %v1280 = vunpack.c.0.s8 %v1279
        %v1281 = vlaneseq
        %v1282 = vshrl.u32 %v1281, 7
        %v1283 = vsub.s32 %v1280, %v1282
        %v1284 = vrot.slane %v877, %v1283
        %v1286 = vunpack.c.l.s4 1983009808
        %v1287 = vunpack.c.0.s8 %v1286
        %v1288 = vlaneseq
        %v1289 = vshrl.u32 %v1288, 7
        %v1290 = vsub.s32 %v1287, %v1289
        %v1291 = vrot.slane %v1277, %v1290
        %v1292 = vcombine.high %v1284, %v1284
        %v1293 = vcombine.high %v1291, %v1291
        %v1294 = vcombine.high %v878, %v878
        %v1296 = vunpack.c.l.s4 1983009808
        %v1297 = vunpack.c.0.s8 %v1296
        %v1298 = vlaneseq
        %v1299 = vshrl.u32 %v1298, 7
        %v1300 = vsub.s32 %v1297, %v1299
        %v1301 = vrot.slane %v878, %v1300
        %v1303 = vunpack.c.l.s4 1983009808
        %v1304 = vunpack.c.0.s8 %v1303
        %v1305 = vlaneseq
        %v1306 = vshrl.u32 %v1305, 7
        %v1307 = vsub.s32 %v1304, %v1306
        %v1308 = vrot.slane %v1294, %v1307
        %v1309 = vcombine.high %v1301, %v1301
        %v1310 = vcombine.high %v1308, %v1308
        %v1311 = vcombine.high %v879, %v879
        %v1313 = vunpack.c.l.s4 1983009808
        %v1314 = vunpack.c.0.s8 %v1313
        %v1315 = vlaneseq
        %v1316 = vshrl.u32 %v1315, 7
        %v1317 = vsub.s32 %v1314, %v1316
        %v1318 = vrot.slane %v879, %v1317
        %v1320 = vunpack.c.l.s4 1983009808
        %v1321 = vunpack.c.0.s8 %v1320
        %v1322 = vlaneseq
        %v1323 = vshrl.u32 %v1322, 7
        %v1324 = vsub.s32 %v1321, %v1323
        %v1325 = vrot.slane %v1311, %v1324
        %v1326 = vcombine.high %v1318, %v1318
        %v1327 = vcombine.high %v1325, %v1325
        %v1328 = vcombine.high %v880, %v880
        %v1330 = vunpack.c.l.s4 1983009808
        %v1331 = vunpack.c.0.s8 %v1330
        %v1332 = vlaneseq
        %v1333 = vshrl.u32 %v1332, 7
        %v1334 = vsub.s32 %v1331, %v1333
        %v1335 = vrot.slane %v880, %v1334
        %v1337 = vunpack.c.l.s4 1983009808
        %v1338 = vunpack.c.0.s8 %v1337
        %v1339 = vlaneseq
        %v1340 = vshrl.u32 %v1339, 7
        %v1341 = vsub.s32 %v1338, %v1340
        %v1342 = vrot.slane %v1328, %v1341
        %v1343 = vcombine.high %v1335, %v1335
        %v1344 = vcombine.high %v1342, %v1342
        %v1345 = vcombine.high %v881, %v881
        %v1347 = vunpack.c.l.s4 1983009808
        %v1348 = vunpack.c.0.s8 %v1347
        %v1349 = vlaneseq
        %v1350 = vshrl.u32 %v1349, 7
        %v1351 = vsub.s32 %v1348, %v1350
        %v1352 = vrot.slane %v881, %v1351
        %v1354 = vunpack.c.l.s4 1983009808
        %v1355 = vunpack.c.0.s8 %v1354
        %v1356 = vlaneseq
        %v1357 = vshrl.u32 %v1356, 7
        %v1358 = vsub.s32 %v1355, %v1357
        %v1359 = vrot.slane %v1345, %v1358
        %v1360 = vcombine.high %v1352, %v1352
        %v1361 = vcombine.high %v1359, %v1359
        %v1362 = vcombine.high %v882, %v882
        %v1364 = vunpack.c.l.s4 1983009808
        %v1365 = vunpack.c.0.s8 %v1364
        %v1366 = vlaneseq
        %v1367 = vshrl.u32 %v1366, 7
        %v1368 = vsub.s32 %v1365, %v1367
        %v1369 = vrot.slane %v882, %v1368
        %v1371 = vunpack.c.l.s4 1983009808
        %v1372 = vunpack.c.0.s8 %v1371
        %v1373 = vlaneseq
        %v1374 = vshrl.u32 %v1373, 7
        %v1375 = vsub.s32 %v1372, %v1374
        %v1376 = vrot.slane %v1362, %v1375
        %v1377 = vcombine.high %v1369, %v1369
        %v1378 = vcombine.high %v1376, %v1376
        %v1379 = vcombine.high %v883, %v883
        %v1381 = vunpack.c.l.s4 1983009808
        %v1382 = vunpack.c.0.s8 %v1381
        %v1383 = vlaneseq
        %v1384 = vshrl.u32 %v1383, 7
        %v1385 = vsub.s32 %v1382, %v1384
        %v1386 = vrot.slane %v883, %v1385
        %v1388 = vunpack.c.l.s4 1983009808
        %v1389 = vunpack.c.0.s8 %v1388
        %v1390 = vlaneseq
        %v1391 = vshrl.u32 %v1390, 7
        %v1392 = vsub.s32 %v1389, %v1391
        %v1393 = vrot.slane %v1379, %v1392
        %v1394 = vcombine.high %v1386, %v1386
        %v1395 = vcombine.high %v1393, %v1393
        %v1396 = vcombine.high %v884, %v884
        %v1398 = vunpack.c.l.s4 1983009808
        %v1399 = vunpack.c.0.s8 %v1398
        %v1400 = vlaneseq
        %v1401 = vshrl.u32 %v1400, 7
        %v1402 = vsub.s32 %v1399, %v1401
        %v1403 = vrot.slane %v884, %v1402
        %v1405 = vunpack.c.l.s4 1983009808
        %v1406 = vunpack.c.0.s8 %v1405
        %v1407 = vlaneseq
        %v1408 = vshrl.u32 %v1407, 7
        %v1409 = vsub.s32 %v1406, %v1408
        %v1410 = vrot.slane %v1396, %v1409
        %v1411 = vcombine.high %v1403, %v1403
        %v1412 = vcombine.high %v1410, %v1410
        %v1413 = vcombine.high %v885, %v885
        %v1415 = vunpack.c.l.s4 1983009808
        %v1416 = vunpack.c.0.s8 %v1415
        %v1417 = vlaneseq
        %v1418 = vshrl.u32 %v1417, 7
        %v1419 = vsub.s32 %v1416, %v1418
        %v1420 = vrot.slane %v885, %v1419
        %v1422 = vunpack.c.l.s4 1983009808
        %v1423 = vunpack.c.0.s8 %v1422
        %v1424 = vlaneseq
        %v1425 = vshrl.u32 %v1424, 7
        %v1426 = vsub.s32 %v1423, %v1425
        %v1427 = vrot.slane %v1413, %v1426
        %v1428 = vcombine.high %v1420, %v1420
        %v1429 = vcombine.high %v1427, %v1427
        %v1430 = vcombine.high %v886, %v886
        %v1432 = vunpack.c.l.s4 1983009808
        %v1433 = vunpack.c.0.s8 %v1432
        %v1434 = vlaneseq
        %v1435 = vshrl.u32 %v1434, 7
        %v1436 = vsub.s32 %v1433, %v1435
        %v1437 = vrot.slane %v886, %v1436
        %v1439 = vunpack.c.l.s4 1983009808
        %v1440 = vunpack.c.0.s8 %v1439
        %v1441 = vlaneseq
        %v1442 = vshrl.u32 %v1441, 7
        %v1443 = vsub.s32 %v1440, %v1442
        %v1444 = vrot.slane %v1430, %v1443
        %v1445 = vcombine.high %v1437, %v1437
        %v1446 = vcombine.high %v1444, %v1444
        %v1447 = vcombine.high %v887, %v887
        %v1449 = vunpack.c.l.s4 1983009808
        %v1450 = vunpack.c.0.s8 %v1449
        %v1451 = vlaneseq
        %v1452 = vshrl.u32 %v1451, 7
        %v1453 = vsub.s32 %v1450, %v1452
        %v1454 = vrot.slane %v887, %v1453
        %v1456 = vunpack.c.l.s4 1983009808
        %v1457 = vunpack.c.0.s8 %v1456
        %v1458 = vlaneseq
        %v1459 = vshrl.u32 %v1458, 7
        %v1460 = vsub.s32 %v1457, %v1459
        %v1461 = vrot.slane %v1447, %v1460
        %v1462 = vcombine.high %v1454, %v1454
        %v1463 = vcombine.high %v1461, %v1461
        %vm1592 = vcmask 1041408
        %v1593 = vsel %vm1592, %v927, -inf
        %v1594 = vrot.slane %v1593, 4
        %v1595 = vmax.f32 %v1593, %v1594
        %v1596 = vrot.slane %v1595, 2
        %v1597 = vmax.f32 %v1595, %v1596
        %v1598 = vrot.slane %v1597, 1
        %v1599 = vmax.f32 %v1597, %v1598
        %v1600 = vsel %vm1592, %v935, -inf
        %v1601 = vrot.slane %v1600, 4
        %v1602 = vmax.f32 %v1600, %v1601
        %v1603 = vrot.slane %v1602, 2
        %v1604 = vmax.f32 %v1602, %v1603
        %v1605 = vrot.slane %v1604, 1
        %v1606 = vmax.f32 %v1604, %v1605
        %v1607 = vsel %vm1592, %v934, -inf
        %v1608 = vrot.slane %v1607, 4
        %v1609 = vmax.f32 %v1607, %v1608
        %v1610 = vrot.slane %v1609, 2
        %v1611 = vmax.f32 %v1609, %v1610
        %v1612 = vrot.slane %v1611, 1
        %v1613 = vmax.f32 %v1611, %v1612
        %v1614 = vsel %vm1592, %v936, -inf
        %v1615 = vrot.slane %v1614, 4
        %v1616 = vmax.f32 %v1614, %v1615
        %v1617 = vrot.slane %v1616, 2
        %v1618 = vmax.f32 %v1616, %v1617
        %v1619 = vrot.slane %v1618, 1
        %v1620 = vmax.f32 %v1618, %v1619
        %v1621 = vsel %vm1592, %v944, -inf
        %v1622 = vrot.slane %v1621, 4
        %v1623 = vmax.f32 %v1621, %v1622
        %v1624 = vrot.slane %v1623, 2
        %v1625 = vmax.f32 %v1623, %v1624
        %v1626 = vrot.slane %v1625, 1
        %v1627 = vmax.f32 %v1625, %v1626
        %v1628 = vsel %vm1592, %v952, -inf
        %v1629 = vrot.slane %v1628, 4
        %v1630 = vmax.f32 %v1628, %v1629
        %v1631 = vrot.slane %v1630, 2
        %v1632 = vmax.f32 %v1630, %v1631
        %v1633 = vrot.slane %v1632, 1
        %v1634 = vmax.f32 %v1632, %v1633
        %v1635 = vsel %vm1592, %v951, -inf
        %v1636 = vrot.slane %v1635, 4
        %v1637 = vmax.f32 %v1635, %v1636
        %v1638 = vrot.slane %v1637, 2
        %v1639 = vmax.f32 %v1637, %v1638
        %v1640 = vrot.slane %v1639, 1
        %v1641 = vmax.f32 %v1639, %v1640
        %v1642 = vsel %vm1592, %v953, -inf
        %v1643 = vrot.slane %v1642, 4
        %v1644 = vmax.f32 %v1642, %v1643
        %v1645 = vrot.slane %v1644, 2
        %v1646 = vmax.f32 %v1644, %v1645
        %v1647 = vrot.slane %v1646, 1
        %v1648 = vmax.f32 %v1646, %v1647
        %v1649 = vsel %vm1592, %v961, -inf
        %v1650 = vrot.slane %v1649, 4
        %v1651 = vmax.f32 %v1649, %v1650
        %v1652 = vrot.slane %v1651, 2
        %v1653 = vmax.f32 %v1651, %v1652
        %v1654 = vrot.slane %v1653, 1
        %v1655 = vmax.f32 %v1653, %v1654
        %v1656 = vsel %vm1592, %v969, -inf
        %v1657 = vrot.slane %v1656, 4
        %v1658 = vmax.f32 %v1656, %v1657
        %v1659 = vrot.slane %v1658, 2
        %v1660 = vmax.f32 %v1658, %v1659
        %v1661 = vrot.slane %v1660, 1
        %v1662 = vmax.f32 %v1660, %v1661
        %v1663 = vsel %vm1592, %v968, -inf
        %v1664 = vrot.slane %v1663, 4
        %v1665 = vmax.f32 %v1663, %v1664
        %v1666 = vrot.slane %v1665, 2
        %v1667 = vmax.f32 %v1665, %v1666
        %v1668 = vrot.slane %v1667, 1
        %v1669 = vmax.f32 %v1667, %v1668
        %v1670 = vsel %vm1592, %v970, -inf
        %v1671 = vrot.slane %v1670, 4
        %v1672 = vmax.f32 %v1670, %v1671
        %v1673 = vrot.slane %v1672, 2
        %v1674 = vmax.f32 %v1672, %v1673
        %v1675 = vrot.slane %v1674, 1
        %v1676 = vmax.f32 %v1674, %v1675
        %v1677 = vsel %vm1592, %v978, -inf
        %v1678 = vrot.slane %v1677, 4
        %v1679 = vmax.f32 %v1677, %v1678
        %v1680 = vrot.slane %v1679, 2
        %v1681 = vmax.f32 %v1679, %v1680
        %v1682 = vrot.slane %v1681, 1
        %v1683 = vmax.f32 %v1681, %v1682
        %v1684 = vsel %vm1592, %v986, -inf
        %v1685 = vrot.slane %v1684, 4
        %v1686 = vmax.f32 %v1684, %v1685
        %v1687 = vrot.slane %v1686, 2
        %v1688 = vmax.f32 %v1686, %v1687
        %v1689 = vrot.slane %v1688, 1
        %v1690 = vmax.f32 %v1688, %v1689
        %v1691 = vsel %vm1592, %v985, -inf
        %v1692 = vrot.slane %v1691, 4
        %v1693 = vmax.f32 %v1691, %v1692
        %v1694 = vrot.slane %v1693, 2
        %v1695 = vmax.f32 %v1693, %v1694
        %v1696 = vrot.slane %v1695, 1
        %v1697 = vmax.f32 %v1695, %v1696
        %v1698 = vsel %vm1592, %v987, -inf
        %v1699 = vrot.slane %v1698, 4
        %v1700 = vmax.f32 %v1698, %v1699
        %v1701 = vrot.slane %v1700, 2
        %v1702 = vmax.f32 %v1700, %v1701
        %v1703 = vrot.slane %v1702, 1
        %v1704 = vmax.f32 %v1702, %v1703
        %v1705 = vsel %vm1592, %v995, -inf
        %v1706 = vrot.slane %v1705, 4
        %v1707 = vmax.f32 %v1705, %v1706
        %v1708 = vrot.slane %v1707, 2
        %v1709 = vmax.f32 %v1707, %v1708
        %v1710 = vrot.slane %v1709, 1
        %v1711 = vmax.f32 %v1709, %v1710
        %v1712 = vsel %vm1592, %v1003, -inf
        %v1713 = vrot.slane %v1712, 4
        %v1714 = vmax.f32 %v1712, %v1713
        %v1715 = vrot.slane %v1714, 2
        %v1716 = vmax.f32 %v1714, %v1715
        %v1717 = vrot.slane %v1716, 1
        %v1718 = vmax.f32 %v1716, %v1717
        %v1719 = vsel %vm1592, %v1002, -inf
        %v1720 = vrot.slane %v1719, 4
        %v1721 = vmax.f32 %v1719, %v1720
        %v1722 = vrot.slane %v1721, 2
        %v1723 = vmax.f32 %v1721, %v1722
        %v1724 = vrot.slane %v1723, 1
        %v1725 = vmax.f32 %v1723, %v1724
        %v1726 = vsel %vm1592, %v1004, -inf
        %v1727 = vrot.slane %v1726, 4
        %v1728 = vmax.f32 %v1726, %v1727
        %v1729 = vrot.slane %v1728, 2
        %v1730 = vmax.f32 %v1728, %v1729
        %v1731 = vrot.slane %v1730, 1
        %v1732 = vmax.f32 %v1730, %v1731
        %v1733 = vsel %vm1592, %v1012, -inf
        %v1734 = vrot.slane %v1733, 4
        %v1735 = vmax.f32 %v1733, %v1734
        %v1736 = vrot.slane %v1735, 2
        %v1737 = vmax.f32 %v1735, %v1736
        %v1738 = vrot.slane %v1737, 1
        %v1739 = vmax.f32 %v1737, %v1738
        %v1740 = vsel %vm1592, %v1020, -inf
        %v1741 = vrot.slane %v1740, 4
        %v1742 = vmax.f32 %v1740, %v1741
        %v1743 = vrot.slane %v1742, 2
        %v1744 = vmax.f32 %v1742, %v1743
        %v1745 = vrot.slane %v1744, 1
        %v1746 = vmax.f32 %v1744, %v1745
        %v1747 = vsel %vm1592, %v1019, -inf
        %v1748 = vrot.slane %v1747, 4
        %v1749 = vmax.f32 %v1747, %v1748
        %v1750 = vrot.slane %v1749, 2
        %v1751 = vmax.f32 %v1749, %v1750
        %v1752 = vrot.slane %v1751, 1
        %v1753 = vmax.f32 %v1751, %v1752
        %v1754 = vsel %vm1592, %v1021, -inf
        %v1755 = vrot.slane %v1754, 4
        %v1756 = vmax.f32 %v1754, %v1755
        %v1757 = vrot.slane %v1756, 2
        %v1758 = vmax.f32 %v1756, %v1757
        %v1759 = vrot.slane %v1758, 1
        %v1760 = vmax.f32 %v1758, %v1759
        %v1761 = vsel %vm1592, %v1029, -inf
        %v1762 = vrot.slane %v1761, 4
        %v1763 = vmax.f32 %v1761, %v1762
        %v1764 = vrot.slane %v1763, 2
        %v1765 = vmax.f32 %v1763, %v1764
        %v1766 = vrot.slane %v1765, 1
        %v1767 = vmax.f32 %v1765, %v1766
        %v1768 = vsel %vm1592, %v1037, -inf
        %v1769 = vrot.slane %v1768, 4
        %v1770 = vmax.f32 %v1768, %v1769
        %v1771 = vrot.slane %v1770, 2
        %v1772 = vmax.f32 %v1770, %v1771
        %v1773 = vrot.slane %v1772, 1
        %v1774 = vmax.f32 %v1772, %v1773
        %v1775 = vsel %vm1592, %v1036, -inf
        %v1776 = vrot.slane %v1775, 4
        %v1777 = vmax.f32 %v1775, %v1776
        %v1778 = vrot.slane %v1777, 2
        %v1779 = vmax.f32 %v1777, %v1778
        %v1780 = vrot.slane %v1779, 1
        %v1781 = vmax.f32 %v1779, %v1780
        %v1782 = vsel %vm1592, %v1038, -inf
        %v1783 = vrot.slane %v1782, 4
        %v1784 = vmax.f32 %v1782, %v1783
        %v1785 = vrot.slane %v1784, 2
        %v1786 = vmax.f32 %v1784, %v1785
        %v1787 = vrot.slane %v1786, 1
        %v1788 = vmax.f32 %v1786, %v1787
        %v1789 = vsel %vm1592, %v1046, -inf
        %v1790 = vrot.slane %v1789, 4
        %v1791 = vmax.f32 %v1789, %v1790
        %v1792 = vrot.slane %v1791, 2
        %v1793 = vmax.f32 %v1791, %v1792
        %v1794 = vrot.slane %v1793, 1
        %v1795 = vmax.f32 %v1793, %v1794
        %v1796 = vsel %vm1592, %v1054, -inf
        %v1797 = vrot.slane %v1796, 4
        %v1798 = vmax.f32 %v1796, %v1797
        %v1799 = vrot.slane %v1798, 2
        %v1800 = vmax.f32 %v1798, %v1799
        %v1801 = vrot.slane %v1800, 1
        %v1802 = vmax.f32 %v1800, %v1801
        %v1803 = vsel %vm1592, %v1053, -inf
        %v1804 = vrot.slane %v1803, 4
        %v1805 = vmax.f32 %v1803, %v1804
        %v1806 = vrot.slane %v1805, 2
        %v1807 = vmax.f32 %v1805, %v1806
        %v1808 = vrot.slane %v1807, 1
        %v1809 = vmax.f32 %v1807, %v1808
        %v1810 = vsel %vm1592, %v1055, -inf
        %v1811 = vrot.slane %v1810, 4
        %v1812 = vmax.f32 %v1810, %v1811
        %v1813 = vrot.slane %v1812, 2
        %v1814 = vmax.f32 %v1812, %v1813
        %v1815 = vrot.slane %v1814, 1
        %v1816 = vmax.f32 %v1814, %v1815
        %v1817 = vsel %vm1592, %v1063, -inf
        %v1818 = vrot.slane %v1817, 4
        %v1819 = vmax.f32 %v1817, %v1818
        %v1820 = vrot.slane %v1819, 2
        %v1821 = vmax.f32 %v1819, %v1820
        %v1822 = vrot.slane %v1821, 1
        %v1823 = vmax.f32 %v1821, %v1822
        %v1824 = vsel %vm1592, %v1071, -inf
        %v1825 = vrot.slane %v1824, 4
        %v1826 = vmax.f32 %v1824, %v1825
        %v1827 = vrot.slane %v1826, 2
        %v1828 = vmax.f32 %v1826, %v1827
        %v1829 = vrot.slane %v1828, 1
        %v1830 = vmax.f32 %v1828, %v1829
        %v1831 = vsel %vm1592, %v1070, -inf
        %v1832 = vrot.slane %v1831, 4
        %v1833 = vmax.f32 %v1831, %v1832
        %v1834 = vrot.slane %v1833, 2
        %v1835 = vmax.f32 %v1833, %v1834
        %v1836 = vrot.slane %v1835, 1
        %v1837 = vmax.f32 %v1835, %v1836
        %v1838 = vsel %vm1592, %v1072, -inf
        %v1839 = vrot.slane %v1838, 4
        %v1840 = vmax.f32 %v1838, %v1839
        %v1841 = vrot.slane %v1840, 2
        %v1842 = vmax.f32 %v1840, %v1841
        %v1843 = vrot.slane %v1842, 1
        %v1844 = vmax.f32 %v1842, %v1843
        %v1845 = vsel %vm1592, %v1080, -inf
        %v1846 = vrot.slane %v1845, 4
        %v1847 = vmax.f32 %v1845, %v1846
        %v1848 = vrot.slane %v1847, 2
        %v1849 = vmax.f32 %v1847, %v1848
        %v1850 = vrot.slane %v1849, 1
        %v1851 = vmax.f32 %v1849, %v1850
        %v1852 = vsel %vm1592, %v1088, -inf
        %v1853 = vrot.slane %v1852, 4
        %v1854 = vmax.f32 %v1852, %v1853
        %v1855 = vrot.slane %v1854, 2
        %v1856 = vmax.f32 %v1854, %v1855
        %v1857 = vrot.slane %v1856, 1
        %v1858 = vmax.f32 %v1856, %v1857
        %v1859 = vsel %vm1592, %v1087, -inf
        %v1860 = vrot.slane %v1859, 4
        %v1861 = vmax.f32 %v1859, %v1860
        %v1862 = vrot.slane %v1861, 2
        %v1863 = vmax.f32 %v1861, %v1862
        %v1864 = vrot.slane %v1863, 1
        %v1865 = vmax.f32 %v1863, %v1864
        %v1866 = vsel %vm1592, %v1089, -inf
        %v1867 = vrot.slane %v1866, 4
        %v1868 = vmax.f32 %v1866, %v1867
        %v1869 = vrot.slane %v1868, 2
        %v1870 = vmax.f32 %v1868, %v1869
        %v1871 = vrot.slane %v1870, 1
        %v1872 = vmax.f32 %v1870, %v1871
        %v1873 = vsel %vm1592, %v1097, -inf
        %v1874 = vrot.slane %v1873, 4
        %v1875 = vmax.f32 %v1873, %v1874
        %v1876 = vrot.slane %v1875, 2
        %v1877 = vmax.f32 %v1875, %v1876
        %v1878 = vrot.slane %v1877, 1
        %v1879 = vmax.f32 %v1877, %v1878
        %v1880 = vsel %vm1592, %v1105, -inf
        %v1881 = vrot.slane %v1880, 4
        %v1882 = vmax.f32 %v1880, %v1881
        %v1883 = vrot.slane %v1882, 2
        %v1884 = vmax.f32 %v1882, %v1883
        %v1885 = vrot.slane %v1884, 1
        %v1886 = vmax.f32 %v1884, %v1885
        %v1887 = vsel %vm1592, %v1104, -inf
        %v1888 = vrot.slane %v1887, 4
        %v1889 = vmax.f32 %v1887, %v1888
        %v1890 = vrot.slane %v1889, 2
        %v1891 = vmax.f32 %v1889, %v1890
        %v1892 = vrot.slane %v1891, 1
        %v1893 = vmax.f32 %v1891, %v1892
        %v1894 = vsel %vm1592, %v1106, -inf
        %v1895 = vrot.slane %v1894, 4
        %v1896 = vmax.f32 %v1894, %v1895
        %v1897 = vrot.slane %v1896, 2
        %v1898 = vmax.f32 %v1896, %v1897
        %v1899 = vrot.slane %v1898, 1
        %v1900 = vmax.f32 %v1898, %v1899
        %v1901 = vsel %vm1592, %v1114, -inf
        %v1902 = vrot.slane %v1901, 4
        %v1903 = vmax.f32 %v1901, %v1902
        %v1904 = vrot.slane %v1903, 2
        %v1905 = vmax.f32 %v1903, %v1904
        %v1906 = vrot.slane %v1905, 1
        %v1907 = vmax.f32 %v1905, %v1906
        %v1908 = vsel %vm1592, %v1122, -inf
        %v1909 = vrot.slane %v1908, 4
        %v1910 = vmax.f32 %v1908, %v1909
        %v1911 = vrot.slane %v1910, 2
        %v1912 = vmax.f32 %v1910, %v1911
        %v1913 = vrot.slane %v1912, 1
        %v1914 = vmax.f32 %v1912, %v1913
        %v1915 = vsel %vm1592, %v1121, -inf
        %v1916 = vrot.slane %v1915, 4
        %v1917 = vmax.f32 %v1915, %v1916
        %v1918 = vrot.slane %v1917, 2
        %v1919 = vmax.f32 %v1917, %v1918
        %v1920 = vrot.slane %v1919, 1
        %v1921 = vmax.f32 %v1919, %v1920
        %v1922 = vsel %vm1592, %v1123, -inf
        %v1923 = vrot.slane %v1922, 4
        %v1924 = vmax.f32 %v1922, %v1923
        %v1925 = vrot.slane %v1924, 2
        %v1926 = vmax.f32 %v1924, %v1925
        %v1927 = vrot.slane %v1926, 1
        %v1928 = vmax.f32 %v1926, %v1927
        %v1929 = vsel %vm1592, %v1131, -inf
        %v1930 = vrot.slane %v1929, 4
        %v1931 = vmax.f32 %v1929, %v1930
        %v1932 = vrot.slane %v1931, 2
        %v1933 = vmax.f32 %v1931, %v1932
        %v1934 = vrot.slane %v1933, 1
        %v1935 = vmax.f32 %v1933, %v1934
        %v1936 = vsel %vm1592, %v1139, -inf
        %v1937 = vrot.slane %v1936, 4
        %v1938 = vmax.f32 %v1936, %v1937
        %v1939 = vrot.slane %v1938, 2
        %v1940 = vmax.f32 %v1938, %v1939
        %v1941 = vrot.slane %v1940, 1
        %v1942 = vmax.f32 %v1940, %v1941
        %v1943 = vsel %vm1592, %v1138, -inf
        %v1944 = vrot.slane %v1943, 4
        %v1945 = vmax.f32 %v1943, %v1944
        %v1946 = vrot.slane %v1945, 2
        %v1947 = vmax.f32 %v1945, %v1946
        %v1948 = vrot.slane %v1947, 1
        %v1949 = vmax.f32 %v1947, %v1948
        %v1950 = vsel %vm1592, %v1140, -inf
        %v1951 = vrot.slane %v1950, 4
        %v1952 = vmax.f32 %v1950, %v1951
        %v1953 = vrot.slane %v1952, 2
        %v1954 = vmax.f32 %v1952, %v1953
        %v1955 = vrot.slane %v1954, 1
        %v1956 = vmax.f32 %v1954, %v1955
        %v1957 = vsel %vm1592, %v1148, -inf
        %v1958 = vrot.slane %v1957, 4
        %v1959 = vmax.f32 %v1957, %v1958
        %v1960 = vrot.slane %v1959, 2
        %v1961 = vmax.f32 %v1959, %v1960
        %v1962 = vrot.slane %v1961, 1
        %v1963 = vmax.f32 %v1961, %v1962
        %v1964 = vsel %vm1592, %v1156, -inf
        %v1965 = vrot.slane %v1964, 4
        %v1966 = vmax.f32 %v1964, %v1965
        %v1967 = vrot.slane %v1966, 2
        %v1968 = vmax.f32 %v1966, %v1967
        %v1969 = vrot.slane %v1968, 1
        %v1970 = vmax.f32 %v1968, %v1969
        %v1971 = vsel %vm1592, %v1155, -inf
        %v1972 = vrot.slane %v1971, 4
        %v1973 = vmax.f32 %v1971, %v1972
        %v1974 = vrot.slane %v1973, 2
        %v1975 = vmax.f32 %v1973, %v1974
        %v1976 = vrot.slane %v1975, 1
        %v1977 = vmax.f32 %v1975, %v1976
        %v1978 = vsel %vm1592, %v1157, -inf
        %v1979 = vrot.slane %v1978, 4
        %v1980 = vmax.f32 %v1978, %v1979
        %v1981 = vrot.slane %v1980, 2
        %v1982 = vmax.f32 %v1980, %v1981
        %v1983 = vrot.slane %v1982, 1
        %v1984 = vmax.f32 %v1982, %v1983
        %v1985 = vsel %vm1592, %v1165, -inf
        %v1986 = vrot.slane %v1985, 4
        %v1987 = vmax.f32 %v1985, %v1986
        %v1988 = vrot.slane %v1987, 2
        %v1989 = vmax.f32 %v1987, %v1988
        %v1990 = vrot.slane %v1989, 1
        %v1991 = vmax.f32 %v1989, %v1990
        %v1992 = vsel %vm1592, %v1173, -inf
        %v1993 = vrot.slane %v1992, 4
        %v1994 = vmax.f32 %v1992, %v1993
        %v1995 = vrot.slane %v1994, 2
        %v1996 = vmax.f32 %v1994, %v1995
        %v1997 = vrot.slane %v1996, 1
        %v1998 = vmax.f32 %v1996, %v1997
        %v1999 = vsel %vm1592, %v1172, -inf
        %v2000 = vrot.slane %v1999, 4
        %v2001 = vmax.f32 %v1999, %v2000
        %v2002 = vrot.slane %v2001, 2
        %v2003 = vmax.f32 %v2001, %v2002
        %v2004 = vrot.slane %v2003, 1
        %v2005 = vmax.f32 %v2003, %v2004
        %v2006 = vsel %vm1592, %v1174, -inf
        %v2007 = vrot.slane %v2006, 4
        %v2008 = vmax.f32 %v2006, %v2007
        %v2009 = vrot.slane %v2008, 2
        %v2010 = vmax.f32 %v2008, %v2009
        %v2011 = vrot.slane %v2010, 1
        %v2012 = vmax.f32 %v2010, %v2011
        %v2013 = vsel %vm1592, %v1182, -inf
        %v2014 = vrot.slane %v2013, 4
        %v2015 = vmax.f32 %v2013, %v2014
        %v2016 = vrot.slane %v2015, 2
        %v2017 = vmax.f32 %v2015, %v2016
        %v2018 = vrot.slane %v2017, 1
        %v2019 = vmax.f32 %v2017, %v2018
        %v2020 = vsel %vm1592, %v1190, -inf
        %v2021 = vrot.slane %v2020, 4
        %v2022 = vmax.f32 %v2020, %v2021
        %v2023 = vrot.slane %v2022, 2
        %v2024 = vmax.f32 %v2022, %v2023
        %v2025 = vrot.slane %v2024, 1
        %v2026 = vmax.f32 %v2024, %v2025
        %v2027 = vsel %vm1592, %v1189, -inf
        %v2028 = vrot.slane %v2027, 4
        %v2029 = vmax.f32 %v2027, %v2028
        %v2030 = vrot.slane %v2029, 2
        %v2031 = vmax.f32 %v2029, %v2030
        %v2032 = vrot.slane %v2031, 1
        %v2033 = vmax.f32 %v2031, %v2032
        %v2034 = vsel %vm1592, %v1191, -inf
        %v2035 = vrot.slane %v2034, 4
        %v2036 = vmax.f32 %v2034, %v2035
        %v2037 = vrot.slane %v2036, 2
        %v2038 = vmax.f32 %v2036, %v2037
        %v2039 = vrot.slane %v2038, 1
        %v2040 = vmax.f32 %v2038, %v2039
        %v2041 = vsel %vm1592, %v1199, -inf
        %v2042 = vrot.slane %v2041, 4
        %v2043 = vmax.f32 %v2041, %v2042
        %v2044 = vrot.slane %v2043, 2
        %v2045 = vmax.f32 %v2043, %v2044
        %v2046 = vrot.slane %v2045, 1
        %v2047 = vmax.f32 %v2045, %v2046
        %v2048 = vsel %vm1592, %v1207, -inf
        %v2049 = vrot.slane %v2048, 4
        %v2050 = vmax.f32 %v2048, %v2049
        %v2051 = vrot.slane %v2050, 2
        %v2052 = vmax.f32 %v2050, %v2051
        %v2053 = vrot.slane %v2052, 1
        %v2054 = vmax.f32 %v2052, %v2053
        %v2055 = vsel %vm1592, %v1206, -inf
        %v2056 = vrot.slane %v2055, 4
        %v2057 = vmax.f32 %v2055, %v2056
        %v2058 = vrot.slane %v2057, 2
        %v2059 = vmax.f32 %v2057, %v2058
        %v2060 = vrot.slane %v2059, 1
        %v2061 = vmax.f32 %v2059, %v2060
        %v2062 = vsel %vm1592, %v1208, -inf
        %v2063 = vrot.slane %v2062, 4
        %v2064 = vmax.f32 %v2062, %v2063
        %v2065 = vrot.slane %v2064, 2
        %v2066 = vmax.f32 %v2064, %v2065
        %v2067 = vrot.slane %v2066, 1
        %v2068 = vmax.f32 %v2066, %v2067
        %v2069 = vsel %vm1592, %v1216, -inf
        %v2070 = vrot.slane %v2069, 4
        %v2071 = vmax.f32 %v2069, %v2070
        %v2072 = vrot.slane %v2071, 2
        %v2073 = vmax.f32 %v2071, %v2072
        %v2074 = vrot.slane %v2073, 1
        %v2075 = vmax.f32 %v2073, %v2074
        %v2076 = vsel %vm1592, %v1224, -inf
        %v2077 = vrot.slane %v2076, 4
        %v2078 = vmax.f32 %v2076, %v2077
        %v2079 = vrot.slane %v2078, 2
        %v2080 = vmax.f32 %v2078, %v2079
        %v2081 = vrot.slane %v2080, 1
        %v2082 = vmax.f32 %v2080, %v2081
        %v2083 = vsel %vm1592, %v1223, -inf
        %v2084 = vrot.slane %v2083, 4
        %v2085 = vmax.f32 %v2083, %v2084
        %v2086 = vrot.slane %v2085, 2
        %v2087 = vmax.f32 %v2085, %v2086
        %v2088 = vrot.slane %v2087, 1
        %v2089 = vmax.f32 %v2087, %v2088
        %v2090 = vsel %vm1592, %v1225, -inf
        %v2091 = vrot.slane %v2090, 4
        %v2092 = vmax.f32 %v2090, %v2091
        %v2093 = vrot.slane %v2092, 2
        %v2094 = vmax.f32 %v2092, %v2093
        %v2095 = vrot.slane %v2094, 1
        %v2096 = vmax.f32 %v2094, %v2095
        %v2097 = vsel %vm1592, %v1233, -inf
        %v2098 = vrot.slane %v2097, 4
        %v2099 = vmax.f32 %v2097, %v2098
        %v2100 = vrot.slane %v2099, 2
        %v2101 = vmax.f32 %v2099, %v2100
        %v2102 = vrot.slane %v2101, 1
        %v2103 = vmax.f32 %v2101, %v2102
        %v2104 = vsel %vm1592, %v1241, -inf
        %v2105 = vrot.slane %v2104, 4
        %v2106 = vmax.f32 %v2104, %v2105
        %v2107 = vrot.slane %v2106, 2
        %v2108 = vmax.f32 %v2106, %v2107
        %v2109 = vrot.slane %v2108, 1
        %v2110 = vmax.f32 %v2108, %v2109
        %v2111 = vsel %vm1592, %v1240, -inf
        %v2112 = vrot.slane %v2111, 4
        %v2113 = vmax.f32 %v2111, %v2112
        %v2114 = vrot.slane %v2113, 2
        %v2115 = vmax.f32 %v2113, %v2114
        %v2116 = vrot.slane %v2115, 1
        %v2117 = vmax.f32 %v2115, %v2116
        %v2118 = vsel %vm1592, %v1242, -inf
        %v2119 = vrot.slane %v2118, 4
        %v2120 = vmax.f32 %v2118, %v2119
        %v2121 = vrot.slane %v2120, 2
        %v2122 = vmax.f32 %v2120, %v2121
        %v2123 = vrot.slane %v2122, 1
        %v2124 = vmax.f32 %v2122, %v2123
        %v2125 = vsel %vm1592, %v1250, -inf
        %v2126 = vrot.slane %v2125, 4
        %v2127 = vmax.f32 %v2125, %v2126
        %v2128 = vrot.slane %v2127, 2
        %v2129 = vmax.f32 %v2127, %v2128
        %v2130 = vrot.slane %v2129, 1
        %v2131 = vmax.f32 %v2129, %v2130
        %v2132 = vsel %vm1592, %v1258, -inf
        %v2133 = vrot.slane %v2132, 4
        %v2134 = vmax.f32 %v2132, %v2133
        %v2135 = vrot.slane %v2134, 2
        %v2136 = vmax.f32 %v2134, %v2135
        %v2137 = vrot.slane %v2136, 1
        %v2138 = vmax.f32 %v2136, %v2137
        %v2139 = vsel %vm1592, %v1257, -inf
        %v2140 = vrot.slane %v2139, 4
        %v2141 = vmax.f32 %v2139, %v2140
        %v2142 = vrot.slane %v2141, 2
        %v2143 = vmax.f32 %v2141, %v2142
        %v2144 = vrot.slane %v2143, 1
        %v2145 = vmax.f32 %v2143, %v2144
        %v2146 = vsel %vm1592, %v1259, -inf
        %v2147 = vrot.slane %v2146, 4
        %v2148 = vmax.f32 %v2146, %v2147
        %v2149 = vrot.slane %v2148, 2
        %v2150 = vmax.f32 %v2148, %v2149
        %v2151 = vrot.slane %v2150, 1
        %v2152 = vmax.f32 %v2150, %v2151
        %v2153 = vsel %vm1592, %v1267, -inf
        %v2154 = vrot.slane %v2153, 4
        %v2155 = vmax.f32 %v2153, %v2154
        %v2156 = vrot.slane %v2155, 2
        %v2157 = vmax.f32 %v2155, %v2156
        %v2158 = vrot.slane %v2157, 1
        %v2159 = vmax.f32 %v2157, %v2158
        %v2160 = vsel %vm1592, %v1275, -inf
        %v2161 = vrot.slane %v2160, 4
        %v2162 = vmax.f32 %v2160, %v2161
        %v2163 = vrot.slane %v2162, 2
        %v2164 = vmax.f32 %v2162, %v2163
        %v2165 = vrot.slane %v2164, 1
        %v2166 = vmax.f32 %v2164, %v2165
        %v2167 = vsel %vm1592, %v1274, -inf
        %v2168 = vrot.slane %v2167, 4
        %v2169 = vmax.f32 %v2167, %v2168
        %v2170 = vrot.slane %v2169, 2
        %v2171 = vmax.f32 %v2169, %v2170
        %v2172 = vrot.slane %v2171, 1
        %v2173 = vmax.f32 %v2171, %v2172
        %v2174 = vsel %vm1592, %v1276, -inf
        %v2175 = vrot.slane %v2174, 4
        %v2176 = vmax.f32 %v2174, %v2175
        %v2177 = vrot.slane %v2176, 2
        %v2178 = vmax.f32 %v2176, %v2177
        %v2179 = vrot.slane %v2178, 1
        %v2180 = vmax.f32 %v2178, %v2179
        %v2181 = vsel %vm1592, %v1284, -inf
        %v2182 = vrot.slane %v2181, 4
        %v2183 = vmax.f32 %v2181, %v2182
        %v2184 = vrot.slane %v2183, 2
        %v2185 = vmax.f32 %v2183, %v2184
        %v2186 = vrot.slane %v2185, 1
        %v2187 = vmax.f32 %v2185, %v2186
        %v2188 = vsel %vm1592, %v1292, -inf
        %v2189 = vrot.slane %v2188, 4
        %v2190 = vmax.f32 %v2188, %v2189
        %v2191 = vrot.slane %v2190, 2
        %v2192 = vmax.f32 %v2190, %v2191
        %v2193 = vrot.slane %v2192, 1
        %v2194 = vmax.f32 %v2192, %v2193
        %v2195 = vsel %vm1592, %v1291, -inf
        %v2196 = vrot.slane %v2195, 4
        %v2197 = vmax.f32 %v2195, %v2196
        %v2198 = vrot.slane %v2197, 2
        %v2199 = vmax.f32 %v2197, %v2198
        %v2200 = vrot.slane %v2199, 1
        %v2201 = vmax.f32 %v2199, %v2200
        %v2202 = vsel %vm1592, %v1293, -inf
        %v2203 = vrot.slane %v2202, 4
        %v2204 = vmax.f32 %v2202, %v2203
        %v2205 = vrot.slane %v2204, 2
        %v2206 = vmax.f32 %v2204, %v2205
        %v2207 = vrot.slane %v2206, 1
        %v2208 = vmax.f32 %v2206, %v2207
        %v2209 = vsel %vm1592, %v1301, -inf
        %v2210 = vrot.slane %v2209, 4
        %v2211 = vmax.f32 %v2209, %v2210
        %v2212 = vrot.slane %v2211, 2
        %v2213 = vmax.f32 %v2211, %v2212
        %v2214 = vrot.slane %v2213, 1
        %v2215 = vmax.f32 %v2213, %v2214
        %v2216 = vsel %vm1592, %v1309, -inf
        %v2217 = vrot.slane %v2216, 4
        %v2218 = vmax.f32 %v2216, %v2217
        %v2219 = vrot.slane %v2218, 2
        %v2220 = vmax.f32 %v2218, %v2219
        %v2221 = vrot.slane %v2220, 1
        %v2222 = vmax.f32 %v2220, %v2221
        %v2223 = vsel %vm1592, %v1308, -inf
        %v2224 = vrot.slane %v2223, 4
        %v2225 = vmax.f32 %v2223, %v2224
        %v2226 = vrot.slane %v2225, 2
        %v2227 = vmax.f32 %v2225, %v2226
        %v2228 = vrot.slane %v2227, 1
        %v2229 = vmax.f32 %v2227, %v2228
        %v2230 = vsel %vm1592, %v1310, -inf
        %v2231 = vrot.slane %v2230, 4
        %v2232 = vmax.f32 %v2230, %v2231
        %v2233 = vrot.slane %v2232, 2
        %v2234 = vmax.f32 %v2232, %v2233
        %v2235 = vrot.slane %v2234, 1
        %v2236 = vmax.f32 %v2234, %v2235
        %v2237 = vsel %vm1592, %v1318, -inf
        %v2238 = vrot.slane %v2237, 4
        %v2239 = vmax.f32 %v2237, %v2238
        %v2240 = vrot.slane %v2239, 2
        %v2241 = vmax.f32 %v2239, %v2240
        %v2242 = vrot.slane %v2241, 1
        %v2243 = vmax.f32 %v2241, %v2242
        %v2244 = vsel %vm1592, %v1326, -inf
        %v2245 = vrot.slane %v2244, 4
        %v2246 = vmax.f32 %v2244, %v2245
        %v2247 = vrot.slane %v2246, 2
        %v2248 = vmax.f32 %v2246, %v2247
        %v2249 = vrot.slane %v2248, 1
        %v2250 = vmax.f32 %v2248, %v2249
        %v2251 = vsel %vm1592, %v1325, -inf
        %v2252 = vrot.slane %v2251, 4
        %v2253 = vmax.f32 %v2251, %v2252
        %v2254 = vrot.slane %v2253, 2
        %v2255 = vmax.f32 %v2253, %v2254
        %v2256 = vrot.slane %v2255, 1
        %v2257 = vmax.f32 %v2255, %v2256
        %v2258 = vsel %vm1592, %v1327, -inf
        %v2259 = vrot.slane %v2258, 4
        %v2260 = vmax.f32 %v2258, %v2259
        %v2261 = vrot.slane %v2260, 2
        %v2262 = vmax.f32 %v2260, %v2261
        %v2263 = vrot.slane %v2262, 1
        %v2264 = vmax.f32 %v2262, %v2263
        %v2265 = vsel %vm1592, %v1335, -inf
        %v2266 = vrot.slane %v2265, 4
        %v2267 = vmax.f32 %v2265, %v2266
        %v2268 = vrot.slane %v2267, 2
        %v2269 = vmax.f32 %v2267, %v2268
        %v2270 = vrot.slane %v2269, 1
        %v2271 = vmax.f32 %v2269, %v2270
        %v2272 = vsel %vm1592, %v1343, -inf
        %v2273 = vrot.slane %v2272, 4
        %v2274 = vmax.f32 %v2272, %v2273
        %v2275 = vrot.slane %v2274, 2
        %v2276 = vmax.f32 %v2274, %v2275
        %v2277 = vrot.slane %v2276, 1
        %v2278 = vmax.f32 %v2276, %v2277
        %v2279 = vsel %vm1592, %v1342, -inf
        %v2280 = vrot.slane %v2279, 4
        %v2281 = vmax.f32 %v2279, %v2280
        %v2282 = vrot.slane %v2281, 2
        %v2283 = vmax.f32 %v2281, %v2282
        %v2284 = vrot.slane %v2283, 1
        %v2285 = vmax.f32 %v2283, %v2284
        %v2286 = vsel %vm1592, %v1344, -inf
        %v2287 = vrot.slane %v2286, 4
        %v2288 = vmax.f32 %v2286, %v2287
        %v2289 = vrot.slane %v2288, 2
        %v2290 = vmax.f32 %v2288, %v2289
        %v2291 = vrot.slane %v2290, 1
        %v2292 = vmax.f32 %v2290, %v2291
        %v2293 = vsel %vm1592, %v1352, -inf
        %v2294 = vrot.slane %v2293, 4
        %v2295 = vmax.f32 %v2293, %v2294
        %v2296 = vrot.slane %v2295, 2
        %v2297 = vmax.f32 %v2295, %v2296
        %v2298 = vrot.slane %v2297, 1
        %v2299 = vmax.f32 %v2297, %v2298
        %v2300 = vsel %vm1592, %v1360, -inf
        %v2301 = vrot.slane %v2300, 4
        %v2302 = vmax.f32 %v2300, %v2301
        %v2303 = vrot.slane %v2302, 2
        %v2304 = vmax.f32 %v2302, %v2303
        %v2305 = vrot.slane %v2304, 1
        %v2306 = vmax.f32 %v2304, %v2305
        %v2307 = vsel %vm1592, %v1359, -inf
        %v2308 = vrot.slane %v2307, 4
        %v2309 = vmax.f32 %v2307, %v2308
        %v2310 = vrot.slane %v2309, 2
        %v2311 = vmax.f32 %v2309, %v2310
        %v2312 = vrot.slane %v2311, 1
        %v2313 = vmax.f32 %v2311, %v2312
        %v2314 = vsel %vm1592, %v1361, -inf
        %v2315 = vrot.slane %v2314, 4
        %v2316 = vmax.f32 %v2314, %v2315
        %v2317 = vrot.slane %v2316, 2
        %v2318 = vmax.f32 %v2316, %v2317
        %v2319 = vrot.slane %v2318, 1
        %v2320 = vmax.f32 %v2318, %v2319
        %v2321 = vsel %vm1592, %v1369, -inf
        %v2322 = vrot.slane %v2321, 4
        %v2323 = vmax.f32 %v2321, %v2322
        %v2324 = vrot.slane %v2323, 2
        %v2325 = vmax.f32 %v2323, %v2324
        %v2326 = vrot.slane %v2325, 1
        %v2327 = vmax.f32 %v2325, %v2326
        %v2328 = vsel %vm1592, %v1377, -inf
        %v2329 = vrot.slane %v2328, 4
        %v2330 = vmax.f32 %v2328, %v2329
        %v2331 = vrot.slane %v2330, 2
        %v2332 = vmax.f32 %v2330, %v2331
        %v2333 = vrot.slane %v2332, 1
        %v2334 = vmax.f32 %v2332, %v2333
        %v2335 = vsel %vm1592, %v1376, -inf
        %v2336 = vrot.slane %v2335, 4
        %v2337 = vmax.f32 %v2335, %v2336
        %v2338 = vrot.slane %v2337, 2
        %v2339 = vmax.f32 %v2337, %v2338
        %v2340 = vrot.slane %v2339, 1
        %v2341 = vmax.f32 %v2339, %v2340
        %v2342 = vsel %vm1592, %v1378, -inf
        %v2343 = vrot.slane %v2342, 4
        %v2344 = vmax.f32 %v2342, %v2343
        %v2345 = vrot.slane %v2344, 2
        %v2346 = vmax.f32 %v2344, %v2345
        %v2347 = vrot.slane %v2346, 1
        %v2348 = vmax.f32 %v2346, %v2347
        %v2349 = vsel %vm1592, %v1386, -inf
        %v2350 = vrot.slane %v2349, 4
        %v2351 = vmax.f32 %v2349, %v2350
        %v2352 = vrot.slane %v2351, 2
        %v2353 = vmax.f32 %v2351, %v2352
        %v2354 = vrot.slane %v2353, 1
        %v2355 = vmax.f32 %v2353, %v2354
        %v2356 = vsel %vm1592, %v1394, -inf
        %v2357 = vrot.slane %v2356, 4
        %v2358 = vmax.f32 %v2356, %v2357
        %v2359 = vrot.slane %v2358, 2
        %v2360 = vmax.f32 %v2358, %v2359
        %v2361 = vrot.slane %v2360, 1
        %v2362 = vmax.f32 %v2360, %v2361
        %v2363 = vsel %vm1592, %v1393, -inf
        %v2364 = vrot.slane %v2363, 4
        %v2365 = vmax.f32 %v2363, %v2364
        %v2366 = vrot.slane %v2365, 2
        %v2367 = vmax.f32 %v2365, %v2366
        %v2368 = vrot.slane %v2367, 1
        %v2369 = vmax.f32 %v2367, %v2368
        %v2370 = vsel %vm1592, %v1395, -inf
        %v2371 = vrot.slane %v2370, 4
        %v2372 = vmax.f32 %v2370, %v2371
        %v2373 = vrot.slane %v2372, 2
        %v2374 = vmax.f32 %v2372, %v2373
        %v2375 = vrot.slane %v2374, 1
        %v2376 = vmax.f32 %v2374, %v2375
        %v2377 = vsel %vm1592, %v1403, -inf
        %v2378 = vrot.slane %v2377, 4
        %v2379 = vmax.f32 %v2377, %v2378
        %v2380 = vrot.slane %v2379, 2
        %v2381 = vmax.f32 %v2379, %v2380
        %v2382 = vrot.slane %v2381, 1
        %v2383 = vmax.f32 %v2381, %v2382
        %v2384 = vsel %vm1592, %v1411, -inf
        %v2385 = vrot.slane %v2384, 4
        %v2386 = vmax.f32 %v2384, %v2385
        %v2387 = vrot.slane %v2386, 2
        %v2388 = vmax.f32 %v2386, %v2387
        %v2389 = vrot.slane %v2388, 1
        %v2390 = vmax.f32 %v2388, %v2389
        %v2391 = vsel %vm1592, %v1410, -inf
        %v2392 = vrot.slane %v2391, 4
        %v2393 = vmax.f32 %v2391, %v2392
        %v2394 = vrot.slane %v2393, 2
        %v2395 = vmax.f32 %v2393, %v2394
        %v2396 = vrot.slane %v2395, 1
        %v2397 = vmax.f32 %v2395, %v2396
        %v2398 = vsel %vm1592, %v1412, -inf
        %v2399 = vrot.slane %v2398, 4
        %v2400 = vmax.f32 %v2398, %v2399
        %v2401 = vrot.slane %v2400, 2
        %v2402 = vmax.f32 %v2400, %v2401
        %v2403 = vrot.slane %v2402, 1
        %v2404 = vmax.f32 %v2402, %v2403
        %v2405 = vsel %vm1592, %v1420, -inf
        %v2406 = vrot.slane %v2405, 4
        %v2407 = vmax.f32 %v2405, %v2406
        %v2408 = vrot.slane %v2407, 2
        %v2409 = vmax.f32 %v2407, %v2408
        %v2410 = vrot.slane %v2409, 1
        %v2411 = vmax.f32 %v2409, %v2410
        %v2412 = vsel %vm1592, %v1428, -inf
        %v2413 = vrot.slane %v2412, 4
        %v2414 = vmax.f32 %v2412, %v2413
        %v2415 = vrot.slane %v2414, 2
        %v2416 = vmax.f32 %v2414, %v2415
        %v2417 = vrot.slane %v2416, 1
        %v2418 = vmax.f32 %v2416, %v2417
        %v2419 = vsel %vm1592, %v1427, -inf
        %v2420 = vrot.slane %v2419, 4
        %v2421 = vmax.f32 %v2419, %v2420
        %v2422 = vrot.slane %v2421, 2
        %v2423 = vmax.f32 %v2421, %v2422
        %v2424 = vrot.slane %v2423, 1
        %v2425 = vmax.f32 %v2423, %v2424
        %v2426 = vsel %vm1592, %v1429, -inf
        %v2427 = vrot.slane %v2426, 4
        %v2428 = vmax.f32 %v2426, %v2427
        %v2429 = vrot.slane %v2428, 2
        %v2430 = vmax.f32 %v2428, %v2429
        %v2431 = vrot.slane %v2430, 1
        %v2432 = vmax.f32 %v2430, %v2431
        %v2433 = vsel %vm1592, %v1437, -inf
        %v2434 = vrot.slane %v2433, 4
        %v2435 = vmax.f32 %v2433, %v2434
        %v2436 = vrot.slane %v2435, 2
        %v2437 = vmax.f32 %v2435, %v2436
        %v2438 = vrot.slane %v2437, 1
        %v2439 = vmax.f32 %v2437, %v2438
        %v2440 = vsel %vm1592, %v1445, -inf
        %v2441 = vrot.slane %v2440, 4
        %v2442 = vmax.f32 %v2440, %v2441
        %v2443 = vrot.slane %v2442, 2
        %v2444 = vmax.f32 %v2442, %v2443
        %v2445 = vrot.slane %v2444, 1
        %v2446 = vmax.f32 %v2444, %v2445
        %v2447 = vsel %vm1592, %v1444, -inf
        %v2448 = vrot.slane %v2447, 4
        %v2449 = vmax.f32 %v2447, %v2448
        %v2450 = vrot.slane %v2449, 2
        %v2451 = vmax.f32 %v2449, %v2450
        %v2452 = vrot.slane %v2451, 1
        %v2453 = vmax.f32 %v2451, %v2452
        %v2454 = vsel %vm1592, %v1446, -inf
        %v2455 = vrot.slane %v2454, 4
        %v2456 = vmax.f32 %v2454, %v2455
        %v2457 = vrot.slane %v2456, 2
        %v2458 = vmax.f32 %v2456, %v2457
        %v2459 = vrot.slane %v2458, 1
        %v2460 = vmax.f32 %v2458, %v2459
        %v2461 = vsel %vm1592, %v1454, -inf
        %v2462 = vrot.slane %v2461, 4
        %v2463 = vmax.f32 %v2461, %v2462
        %v2464 = vrot.slane %v2463, 2
        %v2465 = vmax.f32 %v2463, %v2464
        %v2466 = vrot.slane %v2465, 1
        %v2467 = vmax.f32 %v2465, %v2466
        %v2468 = vsel %vm1592, %v1462, -inf
        %v2469 = vrot.slane %v2468, 4
        %v2470 = vmax.f32 %v2468, %v2469
        %v2471 = vrot.slane %v2470, 2
        %v2472 = vmax.f32 %v2470, %v2471
        %v2473 = vrot.slane %v2472, 1
        %v2474 = vmax.f32 %v2472, %v2473
        %v2475 = vsel %vm1592, %v1461, -inf
        %v2476 = vrot.slane %v2475, 4
        %v2477 = vmax.f32 %v2475, %v2476
        %v2478 = vrot.slane %v2477, 2
        %v2479 = vmax.f32 %v2477, %v2478
        %v2480 = vrot.slane %v2479, 1
        %v2481 = vmax.f32 %v2479, %v2480
        %v2482 = vsel %vm1592, %v1463, -inf
        %v2483 = vrot.slane %v2482, 4
        %v2484 = vmax.f32 %v2482, %v2483
        %v2485 = vrot.slane %v2484, 2
        %v2486 = vmax.f32 %v2484, %v2485
        %v2487 = vrot.slane %v2486, 1
        %v2488 = vmax.f32 %v2486, %v2487
        %2489 = vst [vmem:[#allocation2] sm:$0xff] 0.0
        %2490 = vst [vmem:[#allocation2 + $0x88] sm:$0xff] 0.0
        %vm2619 = vcmask 1041409
        %v2620 = vsel %vm2619, %v1606, %v1599
        %vm2621 = vcmask 1042434
        %v2622 = vsel %vm2621, %v1613, %v2620
        %vm2623 = vcmask 1043459
        %v2624 = vsel %vm2623, %v1620, %v2622
        %vm2625 = vcmask 1044484
        %v2626 = vsel %vm2625, %v1627, %v2624
        %vm2627 = vcmask 1045509
        %v2628 = vsel %vm2627, %v1634, %v2626
        %vm2629 = vcmask 1046534
        %v2630 = vsel %vm2629, %v1641, %v2628
        %vm2631 = vcmask 1047559
        %v2632 = vsel %vm2631, %v1648, %v2630
        %v2633 = vsel %vm2619, %v1662, %v1655
        %v2634 = vsel %vm2621, %v1669, %v2633
        %v2635 = vsel %vm2623, %v1676, %v2634
        %v2636 = vsel %vm2625, %v1683, %v2635
        %v2637 = vsel %vm2627, %v1690, %v2636
        %v2638 = vsel %vm2629, %v1697, %v2637
        %v2639 = vsel %vm2631, %v1704, %v2638
        %v2640 = vsel %vm2619, %v1718, %v1711
        %v2641 = vsel %vm2621, %v1725, %v2640
        %v2642 = vsel %vm2623, %v1732, %v2641
        %v2643 = vsel %vm2625, %v1739, %v2642
        %v2644 = vsel %vm2627, %v1746, %v2643
        %v2645 = vsel %vm2629, %v1753, %v2644
        %v2646 = vsel %vm2631, %v1760, %v2645
        %v2647 = vsel %vm2619, %v1774, %v1767
        %v2648 = vsel %vm2621, %v1781, %v2647
        %v2649 = vsel %vm2623, %v1788, %v2648
        %v2650 = vsel %vm2625, %v1795, %v2649
        %v2651 = vsel %vm2627, %v1802, %v2650
        %v2652 = vsel %vm2629, %v1809, %v2651
        %v2653 = vsel %vm2631, %v1816, %v2652
        %v2654 = vsel %vm2619, %v1830, %v1823
        %v2655 = vsel %vm2621, %v1837, %v2654
        %v2656 = vsel %vm2623, %v1844, %v2655
        %v2657 = vsel %vm2625, %v1851, %v2656
        %v2658 = vsel %vm2627, %v1858, %v2657
        %v2659 = vsel %vm2629, %v1865, %v2658
        %v2660 = vsel %vm2631, %v1872, %v2659
        %v2661 = vsel %vm2619, %v1886, %v1879
        %v2662 = vsel %vm2621, %v1893, %v2661
        %v2663 = vsel %vm2623, %v1900, %v2662
        %v2664 = vsel %vm2625, %v1907, %v2663
        %v2665 = vsel %vm2627, %v1914, %v2664
        %v2666 = vsel %vm2629, %v1921, %v2665
        %v2667 = vsel %vm2631, %v1928, %v2666
        %v2668 = vsel %vm2619, %v1942, %v1935
        %v2669 = vsel %vm2621, %v1949, %v2668
        %v2670 = vsel %vm2623, %v1956, %v2669
        %v2671 = vsel %vm2625, %v1963, %v2670
        %v2672 = vsel %vm2627, %v1970, %v2671
        %v2673 = vsel %vm2629, %v1977, %v2672
        %v2674 = vsel %vm2631, %v1984, %v2673
        %v2675 = vsel %vm2619, %v1998, %v1991
        %v2676 = vsel %vm2621, %v2005, %v2675
        %v2677 = vsel %vm2623, %v2012, %v2676
        %v2678 = vsel %vm2625, %v2019, %v2677
        %v2679 = vsel %vm2627, %v2026, %v2678
        %v2680 = vsel %vm2629, %v2033, %v2679
        %v2681 = vsel %vm2631, %v2040, %v2680
        %v2682 = vsel %vm2619, %v2054, %v2047
        %v2683 = vsel %vm2621, %v2061, %v2682
        %v2684 = vsel %vm2623, %v2068, %v2683
        %v2685 = vsel %vm2625, %v2075, %v2684
        %v2686 = vsel %vm2627, %v2082, %v2685
        %v2687 = vsel %vm2629, %v2089, %v2686
        %v2688 = vsel %vm2631, %v2096, %v2687
        %v2689 = vsel %vm2619, %v2110, %v2103
        %v2690 = vsel %vm2621, %v2117, %v2689
        %v2691 = vsel %vm2623, %v2124, %v2690
        %v2692 = vsel %vm2625, %v2131, %v2691
        %v2693 = vsel %vm2627, %v2138, %v2692
        %v2694 = vsel %vm2629, %v2145, %v2693
        %v2695 = vsel %vm2631, %v2152, %v2694
        %v2696 = vsel %vm2619, %v2166, %v2159
        %v2697 = vsel %vm2621, %v2173, %v2696
        %v2698 = vsel %vm2623, %v2180, %v2697
        %v2699 = vsel %vm2625, %v2187, %v2698
        %v2700 = vsel %vm2627, %v2194, %v2699
        %v2701 = vsel %vm2629, %v2201, %v2700
        %v2702 = vsel %vm2631, %v2208, %v2701
        %v2703 = vsel %vm2619, %v2222, %v2215
        %v2704 = vsel %vm2621, %v2229, %v2703
        %v2705 = vsel %vm2623, %v2236, %v2704
        %v2706 = vsel %vm2625, %v2243, %v2705
        %v2707 = vsel %vm2627, %v2250, %v2706
        %v2708 = vsel %vm2629, %v2257, %v2707
        %v2709 = vsel %vm2631, %v2264, %v2708
        %v2710 = vsel %vm2619, %v2278, %v2271
        %v2711 = vsel %vm2621, %v2285, %v2710
        %v2712 = vsel %vm2623, %v2292, %v2711
        %v2713 = vsel %vm2625, %v2299, %v2712
        %v2714 = vsel %vm2627, %v2306, %v2713
        %v2715 = vsel %vm2629, %v2313, %v2714
        %v2716 = vsel %vm2631, %v2320, %v2715
        %v2717 = vsel %vm2619, %v2334, %v2327
        %v2718 = vsel %vm2621, %v2341, %v2717
        %v2719 = vsel %vm2623, %v2348, %v2718
        %v2720 = vsel %vm2625, %v2355, %v2719
        %v2721 = vsel %vm2627, %v2362, %v2720
        %v2722 = vsel %vm2629, %v2369, %v2721
        %v2723 = vsel %vm2631, %v2376, %v2722
        %v2724 = vsel %vm2619, %v2390, %v2383
        %v2725 = vsel %vm2621, %v2397, %v2724
        %v2726 = vsel %vm2623, %v2404, %v2725
        %v2727 = vsel %vm2625, %v2411, %v2726
        %v2728 = vsel %vm2627, %v2418, %v2727
        %v2729 = vsel %vm2629, %v2425, %v2728
        %v2730 = vsel %vm2631, %v2432, %v2729
        %v2731 = vsel %vm2619, %v2446, %v2439
        %v2732 = vsel %vm2621, %v2453, %v2731
        %v2733 = vsel %vm2623, %v2460, %v2732
        %v2734 = vsel %vm2625, %v2467, %v2733
        %v2735 = vsel %vm2627, %v2474, %v2734
        %v2736 = vsel %vm2629, %v2481, %v2735
        %v2737 = vsel %vm2631, %v2488, %v2736
        %2754 = vst [vmem:[#allocation2 + $0x8] sm:$0xff] %v2632
        %2755 = vst [vmem:[#allocation2 + $0x10] sm:$0xff] %v2639
        %2756 = vst [vmem:[#allocation2 + $0x18] sm:$0xff] %v2646
        %2757 = vst [vmem:[#allocation2 + $0x20] sm:$0xff] %v2653
        %2758 = vst [vmem:[#allocation2 + $0x28] sm:$0xff] %v2660
        %2759 = vst [vmem:[#allocation2 + $0x30] sm:$0xff] %v2667
        %2760 = vst [vmem:[#allocation2 + $0x38] sm:$0xff] %v2674
        %2761 = vst [vmem:[#allocation2 + $0x40] sm:$0xff] %v2681
        %2762 = vst [vmem:[#allocation2 + $0x48] sm:$0xff] %v2688
        %2763 = vst [vmem:[#allocation2 + $0x50] sm:$0xff] %v2695
        %2764 = vst [vmem:[#allocation2 + $0x58] sm:$0xff] %v2702
        %2765 = vst [vmem:[#allocation2 + $0x60] sm:$0xff] %v2709
        %2766 = vst [vmem:[#allocation2 + $0x68] sm:$0xff] %v2716
        %2767 = vst [vmem:[#allocation2 + $0x70] sm:$0xff] %v2723
        %2768 = vst [vmem:[#allocation2 + $0x78] sm:$0xff] %v2730
        %2769 = vst [vmem:[#allocation2 + $0x80] sm:$0xff] %v2737
        %v2770 = vld [vmem:[#allocation2 + $0x6] sm:$0xff]
        %v2771 = vld [vmem:[#allocation2 + $0xe] sm:$0xff]
        %v2772 = vld [vmem:[#allocation2 + $0x16] sm:$0xff]
        %v2773 = vld [vmem:[#allocation2 + $0x1e] sm:$0xff]
        %v2774 = vld [vmem:[#allocation2 + $0x26] sm:$0xff]
        %v2775 = vld [vmem:[#allocation2 + $0x2e] sm:$0xff]
        %v2776 = vld [vmem:[#allocation2 + $0x36] sm:$0xff]
        %v2777 = vld [vmem:[#allocation2 + $0x3e] sm:$0xff]
        %v2778 = vld [vmem:[#allocation2 + $0x46] sm:$0xff]
        %v2779 = vld [vmem:[#allocation2 + $0x4e] sm:$0xff]
        %v2780 = vld [vmem:[#allocation2 + $0x56] sm:$0xff]
        %v2781 = vld [vmem:[#allocation2 + $0x5e] sm:$0xff]
        %v2782 = vld [vmem:[#allocation2 + $0x66] sm:$0xff]
        %v2783 = vld [vmem:[#allocation2 + $0x6e] sm:$0xff]
        %v2784 = vld [vmem:[#allocation2 + $0x76] sm:$0xff]
        %v2785 = vld [vmem:[#allocation2 + $0x7e] sm:$0xff]
        %v2786 = vld [vmem:[%s4] sm:$0xff]
        %v2787 = vld [vmem:[%s4 + $0x8] sm:$0xff]
        %v2788 = vld [vmem:[%s4 + $0x10] sm:$0xff]
        %v2789 = vld [vmem:[%s4 + $0x18] sm:$0xff]
        %v2790 = vld [vmem:[%s4 + $0x20] sm:$0xff]
        %v2791 = vld [vmem:[%s4 + $0x28] sm:$0xff]
        %v2792 = vld [vmem:[%s4 + $0x30] sm:$0xff]
        %v2793 = vld [vmem:[%s4 + $0x38] sm:$0xff]
        %v2794 = vld [vmem:[%s4 + $0x40] sm:$0xff]
        %v2795 = vld [vmem:[%s4 + $0x48] sm:$0xff]
        %v2796 = vld [vmem:[%s4 + $0x50] sm:$0xff]
        %v2797 = vld [vmem:[%s4 + $0x58] sm:$0xff]
        %v2798 = vld [vmem:[%s4 + $0x60] sm:$0xff]
        %v2799 = vld [vmem:[%s4 + $0x68] sm:$0xff]
        %v2800 = vld [vmem:[%s4 + $0x70] sm:$0xff]
        %v2801 = vld [vmem:[%s4 + $0x78] sm:$0xff]
        %v2802 = vld [vmem:[#allocation2 + $0x7] sm:$0xff]
        %v2803 = vld [vmem:[#allocation2 + $0xf] sm:$0xff]
        %v2804 = vld [vmem:[#allocation2 + $0x17] sm:$0xff]
        %v2805 = vld [vmem:[#allocation2 + $0x1f] sm:$0xff]
        %v2806 = vld [vmem:[#allocation2 + $0x27] sm:$0xff]
        %v2807 = vld [vmem:[#allocation2 + $0x2f] sm:$0xff]
        %v2808 = vld [vmem:[#allocation2 + $0x37] sm:$0xff]
        %v2809 = vld [vmem:[#allocation2 + $0x3f] sm:$0xff]
        %v2810 = vld [vmem:[#allocation2 + $0x47] sm:$0xff]
        %v2811 = vld [vmem:[#allocation2 + $0x4f] sm:$0xff]
        %v2812 = vld [vmem:[#allocation2 + $0x57] sm:$0xff]
        %v2813 = vld [vmem:[#allocation2 + $0x5f] sm:$0xff]
        %v2814 = vld [vmem:[#allocation2 + $0x67] sm:$0xff]
        %v2815 = vld [vmem:[#allocation2 + $0x6f] sm:$0xff]
        %v2816 = vld [vmem:[#allocation2 + $0x77] sm:$0xff]
        %v2817 = vld [vmem:[#allocation2 + $0x7f] sm:$0xff]
        %s2818 = scalar_lea.vmem %s4, 128
        %v2819 = vld [vmem:[%s2818] sm:$0xff]
        %v2820 = vld [vmem:[%s2818 + $0x8] sm:$0xff]
        %v2821 = vld [vmem:[%s2818 + $0x10] sm:$0xff]
        %v2822 = vld [vmem:[%s2818 + $0x18] sm:$0xff]
        %v2823 = vld [vmem:[%s2818 + $0x20] sm:$0xff]
        %v2824 = vld [vmem:[%s2818 + $0x28] sm:$0xff]
        %v2825 = vld [vmem:[%s2818 + $0x30] sm:$0xff]
        %v2826 = vld [vmem:[%s2818 + $0x38] sm:$0xff]
        %v2827 = vld [vmem:[%s2818 + $0x40] sm:$0xff]
        %v2828 = vld [vmem:[%s2818 + $0x48] sm:$0xff]
        %v2829 = vld [vmem:[%s2818 + $0x50] sm:$0xff]
        %v2830 = vld [vmem:[%s2818 + $0x58] sm:$0xff]
        %v2831 = vld [vmem:[%s2818 + $0x60] sm:$0xff]
        %v2832 = vld [vmem:[%s2818 + $0x68] sm:$0xff]
        %v2833 = vld [vmem:[%s2818 + $0x70] sm:$0xff]
        %v2834 = vld [vmem:[%s2818 + $0x78] sm:$0xff]
        %2835 = vmatprep.subr.mxu0 0.0
        %2836 = vmatpush1.msra.mxu0 %v2819
        %2837 = vmatprep.subr.mxu0 0.0
        %2838 = vmatpush1.msra.mxu0 %v2820
        %2839 = vmatprep.subr.mxu0 0.0
        %2840 = vmatpush1.msra.mxu0 %v2821
        %2841 = vmatprep.subr.mxu0 0.0
        %2842 = vmatpush1.msra.mxu0 %v2822
        %2843 = vmatprep.subr.mxu0 0.0
        %2844 = vmatpush1.msra.mxu0 %v2823
        %2845 = vmatprep.subr.mxu0 0.0
        %2846 = vmatpush1.msra.mxu0 %v2824
        %2847 = vmatprep.subr.mxu0 0.0
        %2848 = vmatpush1.msra.mxu0 %v2825
        %2849 = vmatprep.subr.mxu0 0.0
        %2850 = vmatpush1.msra.mxu0 %v2826
        %2851 = vmatprep.subr.mxu0 0.0
        %2852 = vmatpush1.msra.mxu0 %v2827
        %2853 = vmatprep.subr.mxu0 0.0
        %2854 = vmatpush1.msra.mxu0 %v2828
        %2855 = vmatprep.subr.mxu0 0.0
        %2856 = vmatpush1.msra.mxu0 %v2829
        %2857 = vmatprep.subr.mxu0 0.0
        %2858 = vmatpush1.msra.mxu0 %v2830
        %2859 = vmatprep.subr.mxu0 0.0
        %2860 = vmatpush1.msra.mxu0 %v2831
        %2861 = vmatprep.subr.mxu0 0.0
        %2862 = vmatpush1.msra.mxu0 %v2832
        %2863 = vmatprep.subr.mxu0 0.0
        %2864 = vmatpush1.msra.mxu0 %v2833
        %2865 = vmatprep.subr.mxu0 0.0
        %2866 = vmatpush1.msra.mxu0 %v2834
        %2867 = vmatprep.subr.mxu0 0.0
        %2868 = vmatpush1.msra.mxu0 0.0
        %2869 = vmatprep.subr.mxu0 0.0
        %2870 = vmatpush1.msra.mxu0 0.0
        %2871 = vmatprep.subr.mxu0 0.0
        %2872 = vmatpush1.msra.mxu0 0.0
        %2873 = vmatprep.subr.mxu0 0.0
        %2874 = vmatpush1.msra.mxu0 0.0
        %2875 = vmatprep.subr.mxu0 0.0
        %2876 = vmatpush1.msra.mxu0 0.0
        %2877 = vmatprep.subr.mxu0 0.0
        %2878 = vmatpush1.msra.mxu0 0.0
        %2879 = vmatprep.subr.mxu0 0.0
        %2880 = vmatpush1.msra.mxu0 0.0
        %2881 = vmatprep.subr.mxu0 0.0
        %2882 = vmatpush1.msra.mxu0 0.0
        %2883 = vmatprep.subr.mxu0 0.0
        %2884 = vmatpush1.msra.mxu0 0.0
        %2885 = vmatprep.subr.mxu0 0.0
        %2886 = vmatpush1.msra.mxu0 0.0
        %2887 = vmatprep.subr.mxu0 0.0
        %2888 = vmatpush1.msra.mxu0 0.0
        %2889 = vmatprep.subr.mxu0 0.0
        %2890 = vmatpush1.msra.mxu0 0.0
        %2891 = vmatprep.subr.mxu0 0.0
        %2892 = vmatpush1.msra.mxu0 0.0
        %2893 = vmatprep.subr.mxu0 0.0
        %2894 = vmatpush1.msra.mxu0 0.0
        %2895 = vmatprep.subr.mxu0 0.0
        %2896 = vmatpush1.msra.mxu0 0.0
        %2897 = vmatprep.subr.mxu0 0.0
        %2898 = vmatpush1.msra.mxu0 0.0
        %2899 = vmatprep.mubr.f32.mxu0 0.0
        %2900 = vmatmul.mubr.f32.gmra.mrb[0].mxu0 %v2802
        %v2901 = vpop.f32.mrb[0].mxu0
        %v2902 = vadd.f32 0.0, %v2901
        %v2903 = vpop.f32.mrb[0].mxu0
        %2904 = vmatprep.mubr.f32.mxu0 0.0
        %2905 = vmatmul.mubr.f32.gmra.mrb[0].mxu0 %v2803
        %v2906 = vpop.f32.mrb[0].mxu0
        %v2907 = vadd.f32 0.0, %v2906
        %v2908 = vpop.f32.mrb[0].mxu0
        %2909 = vmatprep.mubr.f32.mxu0 0.0
        %2910 = vmatmul.mubr.f32.gmra.mrb[0].mxu0 %v2804
        %v2911 = vpop.f32.mrb[0].mxu0
        %v2912 = vadd.f32 0.0, %v2911
        %v2913 = vpop.f32.mrb[0].mxu0
        %2914 = vmatprep.mubr.f32.mxu0 0.0
        %2915 = vmatmul.mubr.f32.gmra.mrb[0].mxu0 %v2805
        %v2916 = vpop.f32.mrb[0].mxu0
        %v2917 = vadd.f32 0.0, %v2916
        %v2918 = vpop.f32.mrb[0].mxu0
        %2919 = vmatprep.mubr.f32.mxu0 0.0
        %2920 = vmatmul.mubr.f32.gmra.mrb[0].mxu0 %v2806
        %v2921 = vpop.f32.mrb[0].mxu0
        %v2922 = vadd.f32 0.0, %v2921
        %v2923 = vpop.f32.mrb[0].mxu0
        %2924 = vmatprep.mubr.f32.mxu0 0.0
        %2925 = vmatmul.mubr.f32.gmra.mrb[0].mxu0 %v2807
        %v2926 = vpop.f32.mrb[0].mxu0
        %v2927 = vadd.f32 0.0, %v2926
        %v2928 = vpop.f32.mrb[0].mxu0
        %2929 = vmatprep.mubr.f32.mxu0 0.0
        %2930 = vmatmul.mubr.f32.gmra.mrb[0].mxu0 %v2808
        %v2931 = vpop.f32.mrb[0].mxu0
        %v2932 = vadd.f32 0.0, %v2931
        %v2933 = vpop.f32.mrb[0].mxu0
        %2934 = vmatprep.mubr.f32.mxu0 0.0
        %2935 = vmatmul.mubr.f32.gmra.mrb[0].mxu0 %v2809
        %v2936 = vpop.f32.mrb[0].mxu0
        %v2937 = vadd.f32 0.0, %v2936
        %v2938 = vpop.f32.mrb[0].mxu0
        %2939 = vmatprep.mubr.f32.mxu0 0.0
        %2940 = vmatmul.mubr.f32.gmra.mrb[0].mxu0 %v2810
        %v2941 = vpop.f32.mrb[0].mxu0
        %v2942 = vadd.f32 0.0, %v2941
        %v2943 = vpop.f32.mrb[0].mxu0
        %2944 = vmatprep.mubr.f32.mxu0 0.0
        %2945 = vmatmul.mubr.f32.gmra.mrb[0].mxu0 %v2811
        %v2946 = vpop.f32.mrb[0].mxu0
        %v2947 = vadd.f32 0.0, %v2946
        %v2948 = vpop.f32.mrb[0].mxu0
        %2949 = vmatprep.mubr.f32.mxu0 0.0
        %2950 = vmatmul.mubr.f32.gmra.mrb[0].mxu0 %v2812
        %v2951 = vpop.f32.mrb[0].mxu0
        %v2952 = vadd.f32 0.0, %v2951
        %v2953 = vpop.f32.mrb[0].mxu0
        %2954 = vmatprep.mubr.f32.mxu0 0.0
        %2955 = vmatmul.mubr.f32.gmra.mrb[0].mxu0 %v2813
        %v2956 = vpop.f32.mrb[0].mxu0
        %v2957 = vadd.f32 0.0, %v2956
        %v2958 = vpop.f32.mrb[0].mxu0
        %2959 = vmatprep.mubr.f32.mxu0 0.0
        %2960 = vmatmul.mubr.f32.gmra.mrb[0].mxu0 %v2814
        %v2961 = vpop.f32.mrb[0].mxu0
        %v2962 = vadd.f32 0.0, %v2961
        %v2963 = vpop.f32.mrb[0].mxu0
        %2964 = vmatprep.mubr.f32.mxu0 0.0
        %2965 = vmatmul.mubr.f32.gmra.mrb[0].mxu0 %v2815
        %v2966 = vpop.f32.mrb[0].mxu0
        %v2967 = vadd.f32 0.0, %v2966
        %v2968 = vpop.f32.mrb[0].mxu0
        %2969 = vmatprep.mubr.f32.mxu0 0.0
        %2970 = vmatmul.mubr.f32.gmra.mrb[0].mxu0 %v2816
        %v2971 = vpop.f32.mrb[0].mxu0
        %v2972 = vadd.f32 0.0, %v2971
        %v2973 = vpop.f32.mrb[0].mxu0
        %2974 = vmatprep.mubr.f32.mxu0 0.0
        %2975 = vmatmul.mubr.f32.gmra.mrb[0].mxu0 %v2817
        %v2976 = vpop.f32.mrb[0].mxu0
        %v2977 = vadd.f32 0.0, %v2976
        %v2978 = vpop.f32.mrb[0].mxu0
        %2979 = vdwg.mxu0
        %2980 = vmatprep.subr.mxu0 0.0
        %2981 = vmatpush1.msra.mxu0 %v2786
        %2982 = vmatprep.subr.mxu0 0.0
        %2983 = vmatpush1.msra.mxu0 %v2787
        %2984 = vmatprep.subr.mxu0 0.0
        %2985 = vmatpush1.msra.mxu0 %v2788
        %2986 = vmatprep.subr.mxu0 0.0
        %2987 = vmatpush1.msra.mxu0 %v2789
        %2988 = vmatprep.subr.mxu0 0.0
        %2989 = vmatpush1.msra.mxu0 %v2790
        %2990 = vmatprep.subr.mxu0 0.0
        %2991 = vmatpush1.msra.mxu0 %v2791
        %2992 = vmatprep.subr.mxu0 0.0
        %2993 = vmatpush1.msra.mxu0 %v2792
        %2994 = vmatprep.subr.mxu0 0.0
        %2995 = vmatpush1.msra.mxu0 %v2793
        %2996 = vmatprep.subr.mxu0 0.0
        %2997 = vmatpush1.msra.mxu0 %v2794
        %2998 = vmatprep.subr.mxu0 0.0
        %2999 = vmatpush1.msra.mxu0 %v2795
        %3000 = vmatprep.subr.mxu0 0.0
        %3001 = vmatpush1.msra.mxu0 %v2796
        %3002 = vmatprep.subr.mxu0 0.0
        %3003 = vmatpush1.msra.mxu0 %v2797
        %3004 = vmatprep.subr.mxu0 0.0
        %3005 = vmatpush1.msra.mxu0 %v2798
        %3006 = vmatprep.subr.mxu0 0.0
        %3007 = vmatpush1.msra.mxu0 %v2799
        %3008 = vmatprep.subr.mxu0 0.0
        %3009 = vmatpush1.msra.mxu0 %v2800
        %3010 = vmatprep.subr.mxu0 0.0
        %3011 = vmatpush1.msra.mxu0 %v2801
        %3012 = vmatprep.subr.mxu0 0.0
        %3013 = vmatpush1.msra.mxu0 0.0
        %3014 = vmatprep.subr.mxu0 0.0
        %3015 = vmatpush1.msra.mxu0 0.0
        %3016 = vmatprep.subr.mxu0 0.0
        %3017 = vmatpush1.msra.mxu0 0.0
        %3018 = vmatprep.subr.mxu0 0.0
        %3019 = vmatpush1.msra.mxu0 0.0
        %3020 = vmatprep.subr.mxu0 0.0
        %3021 = vmatpush1.msra.mxu0 0.0
        %3022 = vmatprep.subr.mxu0 0.0
        %3023 = vmatpush1.msra.mxu0 0.0
        %3024 = vmatprep.subr.mxu0 0.0
        %3025 = vmatpush1.msra.mxu0 0.0
        %3026 = vmatprep.subr.mxu0 0.0
        %3027 = vmatpush1.msra.mxu0 0.0
        %3028 = vmatprep.subr.mxu0 0.0
        %3029 = vmatpush1.msra.mxu0 0.0
        %3030 = vmatprep.subr.mxu0 0.0
        %3031 = vmatpush1.msra.mxu0 0.0
        %3032 = vmatprep.subr.mxu0 0.0
        %3033 = vmatpush1.msra.mxu0 0.0
        %3034 = vmatprep.subr.mxu0 0.0
        %3035 = vmatpush1.msra.mxu0 0.0
        %3036 = vmatprep.subr.mxu0 0.0
        %3037 = vmatpush1.msra.mxu0 0.0
        %3038 = vmatprep.subr.mxu0 0.0
        %3039 = vmatpush1.msra.mxu0 0.0
        %3040 = vmatprep.subr.mxu0 0.0
        %3041 = vmatpush1.msra.mxu0 0.0
        %3042 = vmatprep.subr.mxu0 0.0
        %3043 = vmatpush1.msra.mxu0 0.0
        %3044 = vmatprep.mubr.f32.mxu0 0.0
        %3045 = vmatmul.mubr.f32.gmra.mrb[0].mxu0 %v2770
        %v3046 = vpop.f32.mrb[0].mxu0
        %v3047 = vadd.f32 %v2902, %v3046
        %v3048 = vpop.f32.mrb[0].mxu0
        %3049 = vmatprep.mubr.f32.mxu0 0.0
        %3050 = vmatmul.mubr.f32.gmra.mrb[0].mxu0 %v2771
        %v3051 = vpop.f32.mrb[0].mxu0
        %v3052 = vadd.f32 %v2907, %v3051
        %v3053 = vpop.f32.mrb[0].mxu0
        %3054 = vmatprep.mubr.f32.mxu0 0.0
        %3055 = vmatmul.mubr.f32.gmra.mrb[0].mxu0 %v2772
        %v3056 = vpop.f32.mrb[0].mxu0
        %v3057 = vadd.f32 %v2912, %v3056
        %v3058 = vpop.f32.mrb[0].mxu0
        %3059 = vmatprep.mubr.f32.mxu0 0.0
        %3060 = vmatmul.mubr.f32.gmra.mrb[0].mxu0 %v2773
        %v3061 = vpop.f32.mrb[0].mxu0
        %v3062 = vadd.f32 %v2917, %v3061
        %v3063 = vpop.f32.mrb[0].mxu0
        %3064 = vmatprep.mubr.f32.mxu0 0.0
        %3065 = vmatmul.mubr.f32.gmra.mrb[0].mxu0 %v2774
        %v3066 = vpop.f32.mrb[0].mxu0
        %v3067 = vadd.f32 %v2922, %v3066
        %v3068 = vpop.f32.mrb[0].mxu0
        %3069 = vmatprep.mubr.f32.mxu0 0.0
        %3070 = vmatmul.mubr.f32.gmra.mrb[0].mxu0 %v2775
        %v3071 = vpop.f32.mrb[0].mxu0
        %v3072 = vadd.f32 %v2927, %v3071
        %v3073 = vpop.f32.mrb[0].mxu0
        %3074 = vmatprep.mubr.f32.mxu0 0.0
        %3075 = vmatmul.mubr.f32.gmra.mrb[0].mxu0 %v2776
        %v3076 = vpop.f32.mrb[0].mxu0
        %v3077 = vadd.f32 %v2932, %v3076
        %v3078 = vpop.f32.mrb[0].mxu0
        %3079 = vmatprep.mubr.f32.mxu0 0.0
        %3080 = vmatmul.mubr.f32.gmra.mrb[0].mxu0 %v2777
        %v3081 = vpop.f32.mrb[0].mxu0
        %v3082 = vadd.f32 %v2937, %v3081
        %v3083 = vpop.f32.mrb[0].mxu0
        %3084 = vmatprep.mubr.f32.mxu0 0.0
        %3085 = vmatmul.mubr.f32.gmra.mrb[0].mxu0 %v2778
        %v3086 = vpop.f32.mrb[0].mxu0
        %v3087 = vadd.f32 %v2942, %v3086
        %v3088 = vpop.f32.mrb[0].mxu0
        %3089 = vmatprep.mubr.f32.mxu0 0.0
        %3090 = vmatmul.mubr.f32.gmra.mrb[0].mxu0 %v2779
        %v3091 = vpop.f32.mrb[0].mxu0
        %v3092 = vadd.f32 %v2947, %v3091
        %v3093 = vpop.f32.mrb[0].mxu0
        %3094 = vmatprep.mubr.f32.mxu0 0.0
        %3095 = vmatmul.mubr.f32.gmra.mrb[0].mxu0 %v2780
        %v3096 = vpop.f32.mrb[0].mxu0
        %v3097 = vadd.f32 %v2952, %v3096
        %v3098 = vpop.f32.mrb[0].mxu0
        %3099 = vmatprep.mubr.f32.mxu0 0.0
        %3100 = vmatmul.mubr.f32.gmra.mrb[0].mxu0 %v2781
        %v3101 = vpop.f32.mrb[0].mxu0
        %v3102 = vadd.f32 %v2957, %v3101
        %v3103 = vpop.f32.mrb[0].mxu0
        %3104 = vmatprep.mubr.f32.mxu0 0.0
        %3105 = vmatmul.mubr.f32.gmra.mrb[0].mxu0 %v2782
        %v3106 = vpop.f32.mrb[0].mxu0
        %v3107 = vadd.f32 %v2962, %v3106
        %v3108 = vpop.f32.mrb[0].mxu0
        %3109 = vmatprep.mubr.f32.mxu0 0.0
        %3110 = vmatmul.mubr.f32.gmra.mrb[0].mxu0 %v2783
        %v3111 = vpop.f32.mrb[0].mxu0
        %v3112 = vadd.f32 %v2967, %v3111
        %v3113 = vpop.f32.mrb[0].mxu0
        %3114 = vmatprep.mubr.f32.mxu0 0.0
        %3115 = vmatmul.mubr.f32.gmra.mrb[0].mxu0 %v2784
        %v3116 = vpop.f32.mrb[0].mxu0
        %v3117 = vadd.f32 %v2972, %v3116
        %v3118 = vpop.f32.mrb[0].mxu0
        %3119 = vmatprep.mubr.f32.mxu0 0.0
        %3120 = vmatmul.mubr.f32.gmra.mrb[0].mxu0 %v2785
        %v3121 = vpop.f32.mrb[0].mxu0
        %v3122 = vadd.f32 %v2977, %v3121
        %v3123 = vpop.f32.mrb[0].mxu0
        %3124 = vdwg.mxu0
        %v3125 = vld [vmem:[#allocation2 + $0x8] sm:$0xff]
        %v3126 = vld [vmem:[#allocation2 + $0x10] sm:$0xff]
        %v3127 = vld [vmem:[#allocation2 + $0x18] sm:$0xff]
        %v3128 = vld [vmem:[#allocation2 + $0x20] sm:$0xff]
        %v3129 = vld [vmem:[#allocation2 + $0x28] sm:$0xff]
        %v3130 = vld [vmem:[#allocation2 + $0x30] sm:$0xff]
        %v3131 = vld [vmem:[#allocation2 + $0x38] sm:$0xff]
        %v3132 = vld [vmem:[#allocation2 + $0x40] sm:$0xff]
        %v3133 = vld [vmem:[#allocation2 + $0x48] sm:$0xff]
        %v3134 = vld [vmem:[#allocation2 + $0x50] sm:$0xff]
        %v3135 = vld [vmem:[#allocation2 + $0x58] sm:$0xff]
        %v3136 = vld [vmem:[#allocation2 + $0x60] sm:$0xff]
        %v3137 = vld [vmem:[#allocation2 + $0x68] sm:$0xff]
        %v3138 = vld [vmem:[#allocation2 + $0x70] sm:$0xff]
        %v3139 = vld [vmem:[#allocation2 + $0x78] sm:$0xff]
        %v3140 = vld [vmem:[#allocation2 + $0x80] sm:$0xff]
        %s3141 = scalar_lea.vmem %s4, 256
        %v3142 = vld [vmem:[%s3141] sm:$0xff]
        %v3143 = vld [vmem:[%s3141 + $0x8] sm:$0xff]
        %v3144 = vld [vmem:[%s3141 + $0x10] sm:$0xff]
        %v3145 = vld [vmem:[%s3141 + $0x18] sm:$0xff]
        %v3146 = vld [vmem:[%s3141 + $0x20] sm:$0xff]
        %v3147 = vld [vmem:[%s3141 + $0x28] sm:$0xff]
        %v3148 = vld [vmem:[%s3141 + $0x30] sm:$0xff]
        %v3149 = vld [vmem:[%s3141 + $0x38] sm:$0xff]
        %v3150 = vld [vmem:[%s3141 + $0x40] sm:$0xff]
        %v3151 = vld [vmem:[%s3141 + $0x48] sm:$0xff]
        %v3152 = vld [vmem:[%s3141 + $0x50] sm:$0xff]
        %v3153 = vld [vmem:[%s3141 + $0x58] sm:$0xff]
        %v3154 = vld [vmem:[%s3141 + $0x60] sm:$0xff]
        %v3155 = vld [vmem:[%s3141 + $0x68] sm:$0xff]
        %v3156 = vld [vmem:[%s3141 + $0x70] sm:$0xff]
        %v3157 = vld [vmem:[%s3141 + $0x78] sm:$0xff]
        %3158 = vmatprep.subr.mxu0 0.0
        %3159 = vmatpush1.msra.mxu0 %v3142
        %3160 = vmatprep.subr.mxu0 0.0
        %3161 = vmatpush1.msra.mxu0 %v3143
        %3162 = vmatprep.subr.mxu0 0.0
        %3163 = vmatpush1.msra.mxu0 %v3144
        %3164 = vmatprep.subr.mxu0 0.0
        %3165 = vmatpush1.msra.mxu0 %v3145
        %3166 = vmatprep.subr.mxu0 0.0
        %3167 = vmatpush1.msra.mxu0 %v3146
        %3168 = vmatprep.subr.mxu0 0.0
        %3169 = vmatpush1.msra.mxu0 %v3147
        %3170 = vmatprep.subr.mxu0 0.0
        %3171 = vmatpush1.msra.mxu0 %v3148
        %3172 = vmatprep.subr.mxu0 0.0
        %3173 = vmatpush1.msra.mxu0 %v3149
        %3174 = vmatprep.subr.mxu0 0.0
        %3175 = vmatpush1.msra.mxu0 %v3150
        %3176 = vmatprep.subr.mxu0 0.0
        %3177 = vmatpush1.msra.mxu0 %v3151
        %3178 = vmatprep.subr.mxu0 0.0
        %3179 = vmatpush1.msra.mxu0 %v3152
        %3180 = vmatprep.subr.mxu0 0.0
        %3181 = vmatpush1.msra.mxu0 %v3153
        %3182 = vmatprep.subr.mxu0 0.0
        %3183 = vmatpush1.msra.mxu0 %v3154
        %3184 = vmatprep.subr.mxu0 0.0
        %3185 = vmatpush1.msra.mxu0 %v3155
        %3186 = vmatprep.subr.mxu0 0.0
        %3187 = vmatpush1.msra.mxu0 %v3156
        %3188 = vmatprep.subr.mxu0 0.0
        %3189 = vmatpush1.msra.mxu0 %v3157
        %3190 = vmatprep.subr.mxu0 0.0
        %3191 = vmatpush1.msra.mxu0 0.0
        %3192 = vmatprep.subr.mxu0 0.0
        %3193 = vmatpush1.msra.mxu0 0.0
        %3194 = vmatprep.subr.mxu0 0.0
        %3195 = vmatpush1.msra.mxu0 0.0
        %3196 = vmatprep.subr.mxu0 0.0
        %3197 = vmatpush1.msra.mxu0 0.0
        %3198 = vmatprep.subr.mxu0 0.0
        %3199 = vmatpush1.msra.mxu0 0.0
        %3200 = vmatprep.subr.mxu0 0.0
        %3201 = vmatpush1.msra.mxu0 0.0
        %3202 = vmatprep.subr.mxu0 0.0
        %3203 = vmatpush1.msra.mxu0 0.0
        %3204 = vmatprep.subr.mxu0 0.0
        %3205 = vmatpush1.msra.mxu0 0.0
        %3206 = vmatprep.subr.mxu0 0.0
        %3207 = vmatpush1.msra.mxu0 0.0
        %3208 = vmatprep.subr.mxu0 0.0
        %3209 = vmatpush1.msra.mxu0 0.0
        %3210 = vmatprep.subr.mxu0 0.0
        %3211 = vmatpush1.msra.mxu0 0.0
        %3212 = vmatprep.subr.mxu0 0.0
        %3213 = vmatpush1.msra.mxu0 0.0
        %3214 = vmatprep.subr.mxu0 0.0
        %3215 = vmatpush1.msra.mxu0 0.0
        %3216 = vmatprep.subr.mxu0 0.0
        %3217 = vmatpush1.msra.mxu0 0.0
        %3218 = vmatprep.subr.mxu0 0.0
        %3219 = vmatpush1.msra.mxu0 0.0
        %3220 = vmatprep.subr.mxu0 0.0
        %3221 = vmatpush1.msra.mxu0 0.0
        %3222 = vmatprep.mubr.f32.mxu0 0.0
        %3223 = vmatmul.mubr.f32.gmra.mrb[0].mxu0 %v3125
        %v3224 = vpop.f32.mrb[0].mxu0
        %v3225 = vadd.f32 0.0, %v3224
        %v3226 = vpop.f32.mrb[0].mxu0
        %3227 = vmatprep.mubr.f32.mxu0 0.0
        %3228 = vmatmul.mubr.f32.gmra.mrb[0].mxu0 %v3126
        %v3229 = vpop.f32.mrb[0].mxu0
        %v3230 = vadd.f32 0.0, %v3229
        %v3231 = vpop.f32.mrb[0].mxu0
        %3232 = vmatprep.mubr.f32.mxu0 0.0
        %3233 = vmatmul.mubr.f32.gmra.mrb[0].mxu0 %v3127
        %v3234 = vpop.f32.mrb[0].mxu0
        %v3235 = vadd.f32 0.0, %v3234
        %v3236 = vpop.f32.mrb[0].mxu0
        %3237 = vmatprep.mubr.f32.mxu0 0.0
        %3238 = vmatmul.mubr.f32.gmra.mrb[0].mxu0 %v3128
        %v3239 = vpop.f32.mrb[0].mxu0
        %v3240 = vadd.f32 0.0, %v3239
        %v3241 = vpop.f32.mrb[0].mxu0
        %3242 = vmatprep.mubr.f32.mxu0 0.0
        %3243 = vmatmul.mubr.f32.gmra.mrb[0].mxu0 %v3129
        %v3244 = vpop.f32.mrb[0].mxu0
        %v3245 = vadd.f32 0.0, %v3244
        %v3246 = vpop.f32.mrb[0].mxu0
        %3247 = vmatprep.mubr.f32.mxu0 0.0
        %3248 = vmatmul.mubr.f32.gmra.mrb[0].mxu0 %v3130
        %v3249 = vpop.f32.mrb[0].mxu0
        %v3250 = vadd.f32 0.0, %v3249
        %v3251 = vpop.f32.mrb[0].mxu0
        %3252 = vmatprep.mubr.f32.mxu0 0.0
        %3253 = vmatmul.mubr.f32.gmra.mrb[0].mxu0 %v3131
        %v3254 = vpop.f32.mrb[0].mxu0
        %v3255 = vadd.f32 0.0, %v3254
        %v3256 = vpop.f32.mrb[0].mxu0
        %3257 = vmatprep.mubr.f32.mxu0 0.0
        %3258 = vmatmul.mubr.f32.gmra.mrb[0].mxu0 %v3132
        %v3259 = vpop.f32.mrb[0].mxu0
        %v3260 = vadd.f32 0.0, %v3259
        %v3261 = vpop.f32.mrb[0].mxu0
        %3262 = vmatprep.mubr.f32.mxu0 0.0
        %3263 = vmatmul.mubr.f32.gmra.mrb[0].mxu0 %v3133
        %v3264 = vpop.f32.mrb[0].mxu0
        %v3265 = vadd.f32 0.0, %v3264
        %v3266 = vpop.f32.mrb[0].mxu0
        %3267 = vmatprep.mubr.f32.mxu0 0.0
        %3268 = vmatmul.mubr.f32.gmra.mrb[0].mxu0 %v3134
        %v3269 = vpop.f32.mrb[0].mxu0
        %v3270 = vadd.f32 0.0, %v3269
        %v3271 = vpop.f32.mrb[0].mxu0
        %3272 = vmatprep.mubr.f32.mxu0 0.0
        %3273 = vmatmul.mubr.f32.gmra.mrb[0].mxu0 %v3135
        %v3274 = vpop.f32.mrb[0].mxu0
        %v3275 = vadd.f32 0.0, %v3274
        %v3276 = vpop.f32.mrb[0].mxu0
        %3277 = vmatprep.mubr.f32.mxu0 0.0
        %3278 = vmatmul.mubr.f32.gmra.mrb[0].mxu0 %v3136
        %v3279 = vpop.f32.mrb[0].mxu0
        %v3280 = vadd.f32 0.0, %v3279
        %v3281 = vpop.f32.mrb[0].mxu0
        %3282 = vmatprep.mubr.f32.mxu0 0.0
        %3283 = vmatmul.mubr.f32.gmra.mrb[0].mxu0 %v3137
        %v3284 = vpop.f32.mrb[0].mxu0
        %v3285 = vadd.f32 0.0, %v3284
        %v3286 = vpop.f32.mrb[0].mxu0
        %3287 = vmatprep.mubr.f32.mxu0 0.0
        %3288 = vmatmul.mubr.f32.gmra.mrb[0].mxu0 %v3138
        %v3289 = vpop.f32.mrb[0].mxu0
        %v3290 = vadd.f32 0.0, %v3289
        %v3291 = vpop.f32.mrb[0].mxu0
        %3292 = vmatprep.mubr.f32.mxu0 0.0
        %3293 = vmatmul.mubr.f32.gmra.mrb[0].mxu0 %v3139
        %v3294 = vpop.f32.mrb[0].mxu0
        %v3295 = vadd.f32 0.0, %v3294
        %v3296 = vpop.f32.mrb[0].mxu0
        %3297 = vmatprep.mubr.f32.mxu0 0.0
        %3298 = vmatmul.mubr.f32.gmra.mrb[0].mxu0 %v3140
        %v3299 = vpop.f32.mrb[0].mxu0
        %v3300 = vadd.f32 0.0, %v3299
        %v3301 = vpop.f32.mrb[0].mxu0
        %3302 = vdwg.mxu0
        %v3303 = vadd.f32 %v3047, %v3225
        %v3304 = vadd.f32 %v3052, %v3230
        %v3305 = vadd.f32 %v3057, %v3235
        %v3306 = vadd.f32 %v3062, %v3240
        %v3307 = vadd.f32 %v3067, %v3245
        %v3308 = vadd.f32 %v3072, %v3250
        %v3309 = vadd.f32 %v3077, %v3255
        %v3310 = vadd.f32 %v3082, %v3260
        %v3311 = vadd.f32 %v3087, %v3265
        %v3312 = vadd.f32 %v3092, %v3270
        %v3313 = vadd.f32 %v3097, %v3275
        %v3314 = vadd.f32 %v3102, %v3280
        %v3315 = vadd.f32 %v3107, %v3285
        %v3316 = vadd.f32 %v3112, %v3290
        %v3317 = vadd.f32 %v3117, %v3295
        %v3318 = vadd.f32 %v3122, %v3300
        %v3319 = vld [vmem:[#allocation2 + $0x9] sm:$0xff]
        %v3320 = vld [vmem:[#allocation2 + $0x11] sm:$0xff]
        %v3321 = vld [vmem:[#allocation2 + $0x19] sm:$0xff]
        %v3322 = vld [vmem:[#allocation2 + $0x21] sm:$0xff]
        %v3323 = vld [vmem:[#allocation2 + $0x29] sm:$0xff]
        %v3324 = vld [vmem:[#allocation2 + $0x31] sm:$0xff]
        %v3325 = vld [vmem:[#allocation2 + $0x39] sm:$0xff]
        %v3326 = vld [vmem:[#allocation2 + $0x41] sm:$0xff]
        %v3327 = vld [vmem:[#allocation2 + $0x49] sm:$0xff]
        %v3328 = vld [vmem:[#allocation2 + $0x51] sm:$0xff]
        %v3329 = vld [vmem:[#allocation2 + $0x59] sm:$0xff]
        %v3330 = vld [vmem:[#allocation2 + $0x61] sm:$0xff]
        %v3331 = vld [vmem:[#allocation2 + $0x69] sm:$0xff]
        %v3332 = vld [vmem:[#allocation2 + $0x71] sm:$0xff]
        %v3333 = vld [vmem:[#allocation2 + $0x79] sm:$0xff]
        %v3334 = vld [vmem:[#allocation2 + $0x81] sm:$0xff]
        %s3335 = scalar_lea.vmem %s4, 384
        %v3336 = vld [vmem:[%s3335] sm:$0xff]
        %v3337 = vld [vmem:[%s3335 + $0x8] sm:$0xff]
        %v3338 = vld [vmem:[%s3335 + $0x10] sm:$0xff]
        %v3339 = vld [vmem:[%s3335 + $0x18] sm:$0xff]
        %v3340 = vld [vmem:[%s3335 + $0x20] sm:$0xff]
        %v3341 = vld [vmem:[%s3335 + $0x28] sm:$0xff]
        %v3342 = vld [vmem:[%s3335 + $0x30] sm:$0xff]
        %v3343 = vld [vmem:[%s3335 + $0x38] sm:$0xff]
        %v3344 = vld [vmem:[%s3335 + $0x40] sm:$0xff]
        %v3345 = vld [vmem:[%s3335 + $0x48] sm:$0xff]
        %v3346 = vld [vmem:[%s3335 + $0x50] sm:$0xff]
        %v3347 = vld [vmem:[%s3335 + $0x58] sm:$0xff]
        %v3348 = vld [vmem:[%s3335 + $0x60] sm:$0xff]
        %v3349 = vld [vmem:[%s3335 + $0x68] sm:$0xff]
        %v3350 = vld [vmem:[%s3335 + $0x70] sm:$0xff]
        %v3351 = vld [vmem:[%s3335 + $0x78] sm:$0xff]
        %3352 = vmatprep.subr.mxu0 0.0
        %3353 = vmatpush1.msra.mxu0 %v3336
        %3354 = vmatprep.subr.mxu0 0.0
        %3355 = vmatpush1.msra.mxu0 %v3337
        %3356 = vmatprep.subr.mxu0 0.0
        %3357 = vmatpush1.msra.mxu0 %v3338
        %3358 = vmatprep.subr.mxu0 0.0
        %3359 = vmatpush1.msra.mxu0 %v3339
        %3360 = vmatprep.subr.mxu0 0.0
        %3361 = vmatpush1.msra.mxu0 %v3340
        %3362 = vmatprep.subr.mxu0 0.0
        %3363 = vmatpush1.msra.mxu0 %v3341
        %3364 = vmatprep.subr.mxu0 0.0
        %3365 = vmatpush1.msra.mxu0 %v3342
        %3366 = vmatprep.subr.mxu0 0.0
        %3367 = vmatpush1.msra.mxu0 %v3343
        %3368 = vmatprep.subr.mxu0 0.0
        %3369 = vmatpush1.msra.mxu0 %v3344
        %3370 = vmatprep.subr.mxu0 0.0
        %3371 = vmatpush1.msra.mxu0 %v3345
        %3372 = vmatprep.subr.mxu0 0.0
        %3373 = vmatpush1.msra.mxu0 %v3346
        %3374 = vmatprep.subr.mxu0 0.0
        %3375 = vmatpush1.msra.mxu0 %v3347
        %3376 = vmatprep.subr.mxu0 0.0
        %3377 = vmatpush1.msra.mxu0 %v3348
        %3378 = vmatprep.subr.mxu0 0.0
        %3379 = vmatpush1.msra.mxu0 %v3349
        %3380 = vmatprep.subr.mxu0 0.0
        %3381 = vmatpush1.msra.mxu0 %v3350
        %3382 = vmatprep.subr.mxu0 0.0
        %3383 = vmatpush1.msra.mxu0 %v3351
        %3384 = vmatprep.subr.mxu0 0.0
        %3385 = vmatpush1.msra.mxu0 0.0
        %3386 = vmatprep.subr.mxu0 0.0
        %3387 = vmatpush1.msra.mxu0 0.0
        %3388 = vmatprep.subr.mxu0 0.0
        %3389 = vmatpush1.msra.mxu0 0.0
        %3390 = vmatprep.subr.mxu0 0.0
        %3391 = vmatpush1.msra.mxu0 0.0
        %3392 = vmatprep.subr.mxu0 0.0
        %3393 = vmatpush1.msra.mxu0 0.0
        %3394 = vmatprep.subr.mxu0 0.0
        %3395 = vmatpush1.msra.mxu0 0.0
        %3396 = vmatprep.subr.mxu0 0.0
        %3397 = vmatpush1.msra.mxu0 0.0
        %3398 = vmatprep.subr.mxu0 0.0
        %3399 = vmatpush1.msra.mxu0 0.0
        %3400 = vmatprep.subr.mxu0 0.0
        %3401 = vmatpush1.msra.mxu0 0.0
        %3402 = vmatprep.subr.mxu0 0.0
        %3403 = vmatpush1.msra.mxu0 0.0
        %3404 = vmatprep.subr.mxu0 0.0
        %3405 = vmatpush1.msra.mxu0 0.0
        %3406 = vmatprep.subr.mxu0 0.0
        %3407 = vmatpush1.msra.mxu0 0.0
        %3408 = vmatprep.subr.mxu0 0.0
        %3409 = vmatpush1.msra.mxu0 0.0
        %3410 = vmatprep.subr.mxu0 0.0
        %3411 = vmatpush1.msra.mxu0 0.0
        %3412 = vmatprep.subr.mxu0 0.0
        %3413 = vmatpush1.msra.mxu0 0.0
        %3414 = vmatprep.subr.mxu0 0.0
        %3415 = vmatpush1.msra.mxu0 0.0
        %3416 = vmatprep.mubr.f32.mxu0 0.0
        %3417 = vmatmul.mubr.f32.gmra.mrb[0].mxu0 %v3319
        %v3418 = vpop.f32.mrb[0].mxu0
        %v3419 = vadd.f32 0.0, %v3418
        %v3420 = vpop.f32.mrb[0].mxu0
        %3421 = vmatprep.mubr.f32.mxu0 0.0
        %3422 = vmatmul.mubr.f32.gmra.mrb[0].mxu0 %v3320
        %v3423 = vpop.f32.mrb[0].mxu0
        %v3424 = vadd.f32 0.0, %v3423
        %v3425 = vpop.f32.mrb[0].mxu0
        %3426 = vmatprep.mubr.f32.mxu0 0.0
        %3427 = vmatmul.mubr.f32.gmra.mrb[0].mxu0 %v3321
        %v3428 = vpop.f32.mrb[0].mxu0
        %v3429 = vadd.f32 0.0, %v3428
        %v3430 = vpop.f32.mrb[0].mxu0
        %3431 = vmatprep.mubr.f32.mxu0 0.0
        %3432 = vmatmul.mubr.f32.gmra.mrb[0].mxu0 %v3322
        %v3433 = vpop.f32.mrb[0].mxu0
        %v3434 = vadd.f32 0.0, %v3433
        %v3435 = vpop.f32.mrb[0].mxu0
        %3436 = vmatprep.mubr.f32.mxu0 0.0
        %3437 = vmatmul.mubr.f32.gmra.mrb[0].mxu0 %v3323
        %v3438 = vpop.f32.mrb[0].mxu0
        %v3439 = vadd.f32 0.0, %v3438
        %v3440 = vpop.f32.mrb[0].mxu0
        %3441 = vmatprep.mubr.f32.mxu0 0.0
        %3442 = vmatmul.mubr.f32.gmra.mrb[0].mxu0 %v3324
        %v3443 = vpop.f32.mrb[0].mxu0
        %v3444 = vadd.f32 0.0, %v3443
        %v3445 = vpop.f32.mrb[0].mxu0
        %3446 = vmatprep.mubr.f32.mxu0 0.0
        %3447 = vmatmul.mubr.f32.gmra.mrb[0].mxu0 %v3325
        %v3448 = vpop.f32.mrb[0].mxu0
        %v3449 = vadd.f32 0.0, %v3448
        %v3450 = vpop.f32.mrb[0].mxu0
        %3451 = vmatprep.mubr.f32.mxu0 0.0
        %3452 = vmatmul.mubr.f32.gmra.mrb[0].mxu0 %v3326
        %v3453 = vpop.f32.mrb[0].mxu0
        %v3454 = vadd.f32 0.0, %v3453
        %v3455 = vpop.f32.mrb[0].mxu0
        %3456 = vmatprep.mubr.f32.mxu0 0.0
        %3457 = vmatmul.mubr.f32.gmra.mrb[0].mxu0 %v3327
        %v3458 = vpop.f32.mrb[0].mxu0
        %v3459 = vadd.f32 0.0, %v3458
        %v3460 = vpop.f32.mrb[0].mxu0
        %3461 = vmatprep.mubr.f32.mxu0 0.0
        %3462 = vmatmul.mubr.f32.gmra.mrb[0].mxu0 %v3328
        %v3463 = vpop.f32.mrb[0].mxu0
        %v3464 = vadd.f32 0.0, %v3463
        %v3465 = vpop.f32.mrb[0].mxu0
        %3466 = vmatprep.mubr.f32.mxu0 0.0
        %3467 = vmatmul.mubr.f32.gmra.mrb[0].mxu0 %v3329
        %v3468 = vpop.f32.mrb[0].mxu0
        %v3469 = vadd.f32 0.0, %v3468
        %v3470 = vpop.f32.mrb[0].mxu0
        %3471 = vmatprep.mubr.f32.mxu0 0.0
        %3472 = vmatmul.mubr.f32.gmra.mrb[0].mxu0 %v3330
        %v3473 = vpop.f32.mrb[0].mxu0
        %v3474 = vadd.f32 0.0, %v3473
        %v3475 = vpop.f32.mrb[0].mxu0
        %3476 = vmatprep.mubr.f32.mxu0 0.0
        %3477 = vmatmul.mubr.f32.gmra.mrb[0].mxu0 %v3331
        %v3478 = vpop.f32.mrb[0].mxu0
        %v3479 = vadd.f32 0.0, %v3478
        %v3480 = vpop.f32.mrb[0].mxu0
        %3481 = vmatprep.mubr.f32.mxu0 0.0
        %3482 = vmatmul.mubr.f32.gmra.mrb[0].mxu0 %v3332
        %v3483 = vpop.f32.mrb[0].mxu0
        %v3484 = vadd.f32 0.0, %v3483
        %v3485 = vpop.f32.mrb[0].mxu0
        %3486 = vmatprep.mubr.f32.mxu0 0.0
        %3487 = vmatmul.mubr.f32.gmra.mrb[0].mxu0 %v3333
        %v3488 = vpop.f32.mrb[0].mxu0
        %v3489 = vadd.f32 0.0, %v3488
        %v3490 = vpop.f32.mrb[0].mxu0
        %3491 = vmatprep.mubr.f32.mxu0 0.0
        %3492 = vmatmul.mubr.f32.gmra.mrb[0].mxu0 %v3334
        %v3493 = vpop.f32.mrb[0].mxu0
        %v3494 = vadd.f32 0.0, %v3493
        %v3495 = vpop.f32.mrb[0].mxu0
        %3496 = vdwg.mxu0
        %v3497 = vadd.f32 %v3303, %v3419
        %v3498 = vadd.f32 %v3304, %v3424
        %v3499 = vadd.f32 %v3305, %v3429
        %v3500 = vadd.f32 %v3306, %v3434
        %v3501 = vadd.f32 %v3307, %v3439
        %v3502 = vadd.f32 %v3308, %v3444
        %v3503 = vadd.f32 %v3309, %v3449
        %v3504 = vadd.f32 %v3310, %v3454
        %v3505 = vadd.f32 %v3311, %v3459
        %v3506 = vadd.f32 %v3312, %v3464
        %v3507 = vadd.f32 %v3313, %v3469
        %v3508 = vadd.f32 %v3314, %v3474
        %v3509 = vadd.f32 %v3315, %v3479
        %v3510 = vadd.f32 %v3316, %v3484
        %v3511 = vadd.f32 %v3317, %v3489
        %v3512 = vadd.f32 %v3318, %v3494
        %v3513 = vld [vmem:[#allocation2 + $0xa] sm:$0xff]
        %v3514 = vld [vmem:[#allocation2 + $0x12] sm:$0xff]
        %v3515 = vld [vmem:[#allocation2 + $0x1a] sm:$0xff]
        %v3516 = vld [vmem:[#allocation2 + $0x22] sm:$0xff]
        %v3517 = vld [vmem:[#allocation2 + $0x2a] sm:$0xff]
        %v3518 = vld [vmem:[#allocation2 + $0x32] sm:$0xff]
        %v3519 = vld [vmem:[#allocation2 + $0x3a] sm:$0xff]
        %v3520 = vld [vmem:[#allocation2 + $0x42] sm:$0xff]
        %v3521 = vld [vmem:[#allocation2 + $0x4a] sm:$0xff]
        %v3522 = vld [vmem:[#allocation2 + $0x52] sm:$0xff]
        %v3523 = vld [vmem:[#allocation2 + $0x5a] sm:$0xff]
        %v3524 = vld [vmem:[#allocation2 + $0x62] sm:$0xff]
        %v3525 = vld [vmem:[#allocation2 + $0x6a] sm:$0xff]
        %v3526 = vld [vmem:[#allocation2 + $0x72] sm:$0xff]
        %v3527 = vld [vmem:[#allocation2 + $0x7a] sm:$0xff]
        %v3528 = vld [vmem:[#allocation2 + $0x82] sm:$0xff]
        %s3529 = scalar_lea.vmem %s4, 512
        %v3530 = vld [vmem:[%s3529] sm:$0xff]
        %v3531 = vld [vmem:[%s3529 + $0x8] sm:$0xff]
        %v3532 = vld [vmem:[%s3529 + $0x10] sm:$0xff]
        %v3533 = vld [vmem:[%s3529 + $0x18] sm:$0xff]
        %v3534 = vld [vmem:[%s3529 + $0x20] sm:$0xff]
        %v3535 = vld [vmem:[%s3529 + $0x28] sm:$0xff]
        %v3536 = vld [vmem:[%s3529 + $0x30] sm:$0xff]
        %v3537 = vld [vmem:[%s3529 + $0x38] sm:$0xff]
        %v3538 = vld [vmem:[%s3529 + $0x40] sm:$0xff]
        %v3539 = vld [vmem:[%s3529 + $0x48] sm:$0xff]
        %v3540 = vld [vmem:[%s3529 + $0x50] sm:$0xff]
        %v3541 = vld [vmem:[%s3529 + $0x58] sm:$0xff]
        %v3542 = vld [vmem:[%s3529 + $0x60] sm:$0xff]
        %v3543 = vld [vmem:[%s3529 + $0x68] sm:$0xff]
        %v3544 = vld [vmem:[%s3529 + $0x70] sm:$0xff]
        %v3545 = vld [vmem:[%s3529 + $0x78] sm:$0xff]
        %3546 = vmatprep.subr.mxu0 0.0
        %3547 = vmatpush1.msra.mxu0 %v3530
        %3548 = vmatprep.subr.mxu0 0.0
        %3549 = vmatpush1.msra.mxu0 %v3531
        %3550 = vmatprep.subr.mxu0 0.0
        %3551 = vmatpush1.msra.mxu0 %v3532
        %3552 = vmatprep.subr.mxu0 0.0
        %3553 = vmatpush1.msra.mxu0 %v3533
        %3554 = vmatprep.subr.mxu0 0.0
        %3555 = vmatpush1.msra.mxu0 %v3534
        %3556 = vmatprep.subr.mxu0 0.0
        %3557 = vmatpush1.msra.mxu0 %v3535
        %3558 = vmatprep.subr.mxu0 0.0
        %3559 = vmatpush1.msra.mxu0 %v3536
        %3560 = vmatprep.subr.mxu0 0.0
        %3561 = vmatpush1.msra.mxu0 %v3537
        %3562 = vmatprep.subr.mxu0 0.0
        %3563 = vmatpush1.msra.mxu0 %v3538
        %3564 = vmatprep.subr.mxu0 0.0
        %3565 = vmatpush1.msra.mxu0 %v3539
        %3566 = vmatprep.subr.mxu0 0.0
        %3567 = vmatpush1.msra.mxu0 %v3540
        %3568 = vmatprep.subr.mxu0 0.0
        %3569 = vmatpush1.msra.mxu0 %v3541
        %3570 = vmatprep.subr.mxu0 0.0
        %3571 = vmatpush1.msra.mxu0 %v3542
        %3572 = vmatprep.subr.mxu0 0.0
        %3573 = vmatpush1.msra.mxu0 %v3543
        %3574 = vmatprep.subr.mxu0 0.0
        %3575 = vmatpush1.msra.mxu0 %v3544
        %3576 = vmatprep.subr.mxu0 0.0
        %3577 = vmatpush1.msra.mxu0 %v3545
        %3578 = vmatprep.subr.mxu0 0.0
        %3579 = vmatpush1.msra.mxu0 0.0
        %3580 = vmatprep.subr.mxu0 0.0
        %3581 = vmatpush1.msra.mxu0 0.0
        %3582 = vmatprep.subr.mxu0 0.0
        %3583 = vmatpush1.msra.mxu0 0.0
        %3584 = vmatprep.subr.mxu0 0.0
        %3585 = vmatpush1.msra.mxu0 0.0
        %3586 = vmatprep.subr.mxu0 0.0
        %3587 = vmatpush1.msra.mxu0 0.0
        %3588 = vmatprep.subr.mxu0 0.0
        %3589 = vmatpush1.msra.mxu0 0.0
        %3590 = vmatprep.subr.mxu0 0.0
        %3591 = vmatpush1.msra.mxu0 0.0
        %3592 = vmatprep.subr.mxu0 0.0
        %3593 = vmatpush1.msra.mxu0 0.0
        %3594 = vmatprep.subr.mxu0 0.0
        %3595 = vmatpush1.msra.mxu0 0.0
        %3596 = vmatprep.subr.mxu0 0.0
        %3597 = vmatpush1.msra.mxu0 0.0
        %3598 = vmatprep.subr.mxu0 0.0
        %3599 = vmatpush1.msra.mxu0 0.0
        %3600 = vmatprep.subr.mxu0 0.0
        %3601 = vmatpush1.msra.mxu0 0.0
        %3602 = vmatprep.subr.mxu0 0.0
        %3603 = vmatpush1.msra.mxu0 0.0
        %3604 = vmatprep.subr.mxu0 0.0
        %3605 = vmatpush1.msra.mxu0 0.0
        %3606 = vmatprep.subr.mxu0 0.0
        %3607 = vmatpush1.msra.mxu0 0.0
        %3608 = vmatprep.subr.mxu0 0.0
        %3609 = vmatpush1.msra.mxu0 0.0
        %3610 = vmatprep.mubr.f32.mxu0 0.0
        %3611 = vmatmul.mubr.f32.gmra.mrb[0].mxu0 %v3513
        %v3612 = vpop.f32.mrb[0].mxu0
        %v3613 = vadd.f32 0.0, %v3612
        %v3614 = vpop.f32.mrb[0].mxu0
        %3615 = vmatprep.mubr.f32.mxu0 0.0
        %3616 = vmatmul.mubr.f32.gmra.mrb[0].mxu0 %v3514
        %v3617 = vpop.f32.mrb[0].mxu0
        %v3618 = vadd.f32 0.0, %v3617
        %v3619 = vpop.f32.mrb[0].mxu0
        %3620 = vmatprep.mubr.f32.mxu0 0.0
        %3621 = vmatmul.mubr.f32.gmra.mrb[0].mxu0 %v3515
        %v3622 = vpop.f32.mrb[0].mxu0
        %v3623 = vadd.f32 0.0, %v3622
        %v3624 = vpop.f32.mrb[0].mxu0
        %3625 = vmatprep.mubr.f32.mxu0 0.0
        %3626 = vmatmul.mubr.f32.gmra.mrb[0].mxu0 %v3516
        %v3627 = vpop.f32.mrb[0].mxu0
        %v3628 = vadd.f32 0.0, %v3627
        %v3629 = vpop.f32.mrb[0].mxu0
        %3630 = vmatprep.mubr.f32.mxu0 0.0
        %3631 = vmatmul.mubr.f32.gmra.mrb[0].mxu0 %v3517
        %v3632 = vpop.f32.mrb[0].mxu0
        %v3633 = vadd.f32 0.0, %v3632
        %v3634 = vpop.f32.mrb[0].mxu0
        %3635 = vmatprep.mubr.f32.mxu0 0.0
        %3636 = vmatmul.mubr.f32.gmra.mrb[0].mxu0 %v3518
        %v3637 = vpop.f32.mrb[0].mxu0
        %v3638 = vadd.f32 0.0, %v3637
        %v3639 = vpop.f32.mrb[0].mxu0
        %3640 = vmatprep.mubr.f32.mxu0 0.0
        %3641 = vmatmul.mubr.f32.gmra.mrb[0].mxu0 %v3519
        %v3642 = vpop.f32.mrb[0].mxu0
        %v3643 = vadd.f32 0.0, %v3642
        %v3644 = vpop.f32.mrb[0].mxu0
        %3645 = vmatprep.mubr.f32.mxu0 0.0
        %3646 = vmatmul.mubr.f32.gmra.mrb[0].mxu0 %v3520
        %v3647 = vpop.f32.mrb[0].mxu0
        %v3648 = vadd.f32 0.0, %v3647
        %v3649 = vpop.f32.mrb[0].mxu0
        %3650 = vmatprep.mubr.f32.mxu0 0.0
        %3651 = vmatmul.mubr.f32.gmra.mrb[0].mxu0 %v3521
        %v3652 = vpop.f32.mrb[0].mxu0
        %v3653 = vadd.f32 0.0, %v3652
        %v3654 = vpop.f32.mrb[0].mxu0
        %3655 = vmatprep.mubr.f32.mxu0 0.0
        %3656 = vmatmul.mubr.f32.gmra.mrb[0].mxu0 %v3522
        %v3657 = vpop.f32.mrb[0].mxu0
        %v3658 = vadd.f32 0.0, %v3657
        %v3659 = vpop.f32.mrb[0].mxu0
        %3660 = vmatprep.mubr.f32.mxu0 0.0
        %3661 = vmatmul.mubr.f32.gmra.mrb[0].mxu0 %v3523
        %v3662 = vpop.f32.mrb[0].mxu0
        %v3663 = vadd.f32 0.0, %v3662
        %v3664 = vpop.f32.mrb[0].mxu0
        %3665 = vmatprep.mubr.f32.mxu0 0.0
        %3666 = vmatmul.mubr.f32.gmra.mrb[0].mxu0 %v3524
        %v3667 = vpop.f32.mrb[0].mxu0
        %v3668 = vadd.f32 0.0, %v3667
        %v3669 = vpop.f32.mrb[0].mxu0
        %3670 = vmatprep.mubr.f32.mxu0 0.0
        %3671 = vmatmul.mubr.f32.gmra.mrb[0].mxu0 %v3525
        %v3672 = vpop.f32.mrb[0].mxu0
        %v3673 = vadd.f32 0.0, %v3672
        %v3674 = vpop.f32.mrb[0].mxu0
        %3675 = vmatprep.mubr.f32.mxu0 0.0
        %3676 = vmatmul.mubr.f32.gmra.mrb[0].mxu0 %v3526
        %v3677 = vpop.f32.mrb[0].mxu0
        %v3678 = vadd.f32 0.0, %v3677
        %v3679 = vpop.f32.mrb[0].mxu0
        %3680 = vmatprep.mubr.f32.mxu0 0.0
        %3681 = vmatmul.mubr.f32.gmra.mrb[0].mxu0 %v3527
        %v3682 = vpop.f32.mrb[0].mxu0
        %v3683 = vadd.f32 0.0, %v3682
        %v3684 = vpop.f32.mrb[0].mxu0
        %3685 = vmatprep.mubr.f32.mxu0 0.0
        %3686 = vmatmul.mubr.f32.gmra.mrb[0].mxu0 %v3528
        %v3687 = vpop.f32.mrb[0].mxu0
        %v3688 = vadd.f32 0.0, %v3687
        %v3689 = vpop.f32.mrb[0].mxu0
        %3690 = vdwg.mxu0
        %v3691 = vadd.f32 %v3497, %v3613
        %v3692 = vadd.f32 %v3498, %v3618
        %v3693 = vadd.f32 %v3499, %v3623
        %v3694 = vadd.f32 %v3500, %v3628
        %v3695 = vadd.f32 %v3501, %v3633
        %v3696 = vadd.f32 %v3502, %v3638
        %v3697 = vadd.f32 %v3503, %v3643
        %v3698 = vadd.f32 %v3504, %v3648
        %v3699 = vadd.f32 %v3505, %v3653
        %v3700 = vadd.f32 %v3506, %v3658
        %v3701 = vadd.f32 %v3507, %v3663
        %v3702 = vadd.f32 %v3508, %v3668
        %v3703 = vadd.f32 %v3509, %v3673
        %v3704 = vadd.f32 %v3510, %v3678
        %v3705 = vadd.f32 %v3511, %v3683
        %v3706 = vadd.f32 %v3512, %v3688
        %v3707 = vld [vmem:[%s5] sm:$0x1]
        %v3709 = vlaneseq
        %v3710 = vshrl.u32 %v3709, 7
        %v3711 = vsub.s32 0, %v3710
        %v3712 = vrot.slane %v3707, %v3711
        %v3714 = vmul.f32 %v3691, %v3712
        %v3715 = vmul.f32 %v3692, %v3712
        %v3716 = vmul.f32 %v3693, %v3712
        %v3717 = vmul.f32 %v3694, %v3712
        %v3718 = vmul.f32 %v3695, %v3712
        %v3719 = vmul.f32 %v3696, %v3712
        %v3720 = vmul.f32 %v3697, %v3712
        %v3721 = vmul.f32 %v3698, %v3712
        %v3722 = vmul.f32 %v3699, %v3712
        %v3723 = vmul.f32 %v3700, %v3712
        %v3724 = vmul.f32 %v3701, %v3712
        %v3725 = vmul.f32 %v3702, %v3712
        %v3726 = vmul.f32 %v3703, %v3712
        %v3727 = vmul.f32 %v3704, %v3712
        %v3728 = vmul.f32 %v3705, %v3712
        %v3729 = vmul.f32 %v3706, %v3712
        %v3730 = vld [vmem:[%s6] sm:$0x1]
        %v3732 = vlaneseq
        %v3733 = vshrl.u32 %v3732, 7
        %v3734 = vsub.s32 0, %v3733
        %v3735 = vrot.slane %v3730, %v3734
        %v3737 = vadd.f32 %v3714, %v3735
        %v3738 = vadd.f32 %v3715, %v3735
        %v3739 = vadd.f32 %v3716, %v3735
        %v3740 = vadd.f32 %v3717, %v3735
        %v3741 = vadd.f32 %v3718, %v3735
        %v3742 = vadd.f32 %v3719, %v3735
        %v3743 = vadd.f32 %v3720, %v3735
        %v3744 = vadd.f32 %v3721, %v3735
        %v3745 = vadd.f32 %v3722, %v3735
        %v3746 = vadd.f32 %v3723, %v3735
        %v3747 = vadd.f32 %v3724, %v3735
        %v3748 = vadd.f32 %v3725, %v3735
        %v3749 = vadd.f32 %v3726, %v3735
        %v3750 = vadd.f32 %v3727, %v3735
        %v3751 = vadd.f32 %v3728, %v3735
        %v3752 = vadd.f32 %v3729, %v3735
        %v3753 = vmul.f32 %v3737, 0.5
        %v3754 = vmul.f32 %v3738, 0.5
        %v3755 = vmul.f32 %v3739, 0.5
        %v3756 = vmul.f32 %v3740, 0.5
        %v3757 = vmul.f32 %v3741, 0.5
        %v3758 = vmul.f32 %v3742, 0.5
        %v3759 = vmul.f32 %v3743, 0.5
        %v3760 = vmul.f32 %v3744, 0.5
        %v3761 = vmul.f32 %v3745, 0.5
        %v3762 = vmul.f32 %v3746, 0.5
        %v3763 = vmul.f32 %v3747, 0.5
        %v3764 = vmul.f32 %v3748, 0.5
        %v3765 = vmul.f32 %v3749, 0.5
        %v3766 = vmul.f32 %v3750, 0.5
        %v3767 = vmul.f32 %v3751, 0.5
        %v3768 = vmul.f32 %v3752, 0.5
        %v3769 = vmul.f32 %v3737, 0.70710677
        %v3770 = vmul.f32 %v3738, 0.70710677
        %v3771 = vmul.f32 %v3739, 0.70710677
        %v3772 = vmul.f32 %v3740, 0.70710677
        %v3773 = vmul.f32 %v3741, 0.70710677
        %v3774 = vmul.f32 %v3742, 0.70710677
        %v3775 = vmul.f32 %v3743, 0.70710677
        %v3776 = vmul.f32 %v3744, 0.70710677
        %v3777 = vmul.f32 %v3745, 0.70710677
        %v3778 = vmul.f32 %v3746, 0.70710677
        %v3779 = vmul.f32 %v3747, 0.70710677
        %v3780 = vmul.f32 %v3748, 0.70710677
        %v3781 = vmul.f32 %v3749, 0.70710677
        %v3782 = vmul.f32 %v3750, 0.70710677
        %v3783 = vmul.f32 %v3751, 0.70710677
        %v3784 = vmul.f32 %v3752, 0.70710677
        %v3785 = verf.f32.pop %v3769
        %v3786 = verf.f32.pop %v3770
        %v3787 = verf.f32.pop %v3771
        %v3788 = verf.f32.pop %v3772
        %v3789 = verf.f32.pop %v3773
        %v3790 = verf.f32.pop %v3774
        %v3791 = verf.f32.pop %v3775
        %v3792 = verf.f32.pop %v3776
        %v3793 = verf.f32.pop %v3777
        %v3794 = verf.f32.pop %v3778
        %v3795 = verf.f32.pop %v3779
        %v3796 = verf.f32.pop %v3780
        %v3797 = verf.f32.pop %v3781
        %v3798 = verf.f32.pop %v3782
        %v3799 = verf.f32.pop %v3783
        %v3800 = verf.f32.pop %v3784
        %v3801 = vadd.f32 %v3785, 1.0
        %v3802 = vadd.f32 %v3786, 1.0
        %v3803 = vadd.f32 %v3787, 1.0
        %v3804 = vadd.f32 %v3788, 1.0
        %v3805 = vadd.f32 %v3789, 1.0
        %v3806 = vadd.f32 %v3790, 1.0
        %v3807 = vadd.f32 %v3791, 1.0
        %v3808 = vadd.f32 %v3792, 1.0
        %v3809 = vadd.f32 %v3793, 1.0
        %v3810 = vadd.f32 %v3794, 1.0
        %v3811 = vadd.f32 %v3795, 1.0
        %v3812 = vadd.f32 %v3796, 1.0
        %v3813 = vadd.f32 %v3797, 1.0
        %v3814 = vadd.f32 %v3798, 1.0
        %v3815 = vadd.f32 %v3799, 1.0
        %v3816 = vadd.f32 %v3800, 1.0
        %v3817 = vmul.f32 %v3753, %v3801
        %v3818 = vmul.f32 %v3754, %v3802
        %v3819 = vmul.f32 %v3755, %v3803
        %v3820 = vmul.f32 %v3756, %v3804
        %v3821 = vmul.f32 %v3757, %v3805
        %v3822 = vmul.f32 %v3758, %v3806
        %v3823 = vmul.f32 %v3759, %v3807
        %v3824 = vmul.f32 %v3760, %v3808
        %v3825 = vmul.f32 %v3761, %v3809
        %v3826 = vmul.f32 %v3762, %v3810
        %v3827 = vmul.f32 %v3763, %v3811
        %v3828 = vmul.f32 %v3764, %v3812
        %v3829 = vmul.f32 %v3765, %v3813
        %v3830 = vmul.f32 %v3766, %v3814
        %v3831 = vmul.f32 %v3767, %v3815
        %v3832 = vmul.f32 %v3768, %v3816
        %v3849 = vcombine.high %v3817, %v3817
        %v3851 = vunpack.c.l.s4 1983009808
        %v3852 = vunpack.c.0.s8 %v3851
        %v3853 = vlaneseq
        %v3854 = vshrl.u32 %v3853, 7
        %v3855 = vsub.s32 %v3852, %v3854
        %v3856 = vrot.slane %v3817, %v3855
        %v3858 = vunpack.c.l.s4 1983009808
        %v3859 = vunpack.c.0.s8 %v3858
        %v3860 = vlaneseq
        %v3861 = vshrl.u32 %v3860, 7
        %v3862 = vsub.s32 %v3859, %v3861
        %v3863 = vrot.slane %v3849, %v3862
        %v3864 = vcombine.high %v3856, %v3856
        %v3865 = vcombine.high %v3863, %v3863
        %v3866 = vcombine.high %v3818, %v3818
        %v3868 = vunpack.c.l.s4 1983009808
        %v3869 = vunpack.c.0.s8 %v3868
        %v3870 = vlaneseq
        %v3871 = vshrl.u32 %v3870, 7
        %v3872 = vsub.s32 %v3869, %v3871
        %v3873 = vrot.slane %v3818, %v3872
        %v3875 = vunpack.c.l.s4 1983009808
        %v3876 = vunpack.c.0.s8 %v3875
        %v3877 = vlaneseq
        %v3878 = vshrl.u32 %v3877, 7
        %v3879 = vsub.s32 %v3876, %v3878
        %v3880 = vrot.slane %v3866, %v3879
        %v3881 = vcombine.high %v3873, %v3873
        %v3882 = vcombine.high %v3880, %v3880
        %v3883 = vcombine.high %v3819, %v3819
        %v3885 = vunpack.c.l.s4 1983009808
        %v3886 = vunpack.c.0.s8 %v3885
        %v3887 = vlaneseq
        %v3888 = vshrl.u32 %v3887, 7
        %v3889 = vsub.s32 %v3886, %v3888
        %v3890 = vrot.slane %v3819, %v3889
        %v3892 = vunpack.c.l.s4 1983009808
        %v3893 = vunpack.c.0.s8 %v3892
        %v3894 = vlaneseq
        %v3895 = vshrl.u32 %v3894, 7
        %v3896 = vsub.s32 %v3893, %v3895
        %v3897 = vrot.slane %v3883, %v3896
        %v3898 = vcombine.high %v3890, %v3890
        %v3899 = vcombine.high %v3897, %v3897
        %v3900 = vcombine.high %v3820, %v3820
        %v3902 = vunpack.c.l.s4 1983009808
        %v3903 = vunpack.c.0.s8 %v3902
        %v3904 = vlaneseq
        %v3905 = vshrl.u32 %v3904, 7
        %v3906 = vsub.s32 %v3903, %v3905
        %v3907 = vrot.slane %v3820, %v3906
        %v3909 = vunpack.c.l.s4 1983009808
        %v3910 = vunpack.c.0.s8 %v3909
        %v3911 = vlaneseq
        %v3912 = vshrl.u32 %v3911, 7
        %v3913 = vsub.s32 %v3910, %v3912
        %v3914 = vrot.slane %v3900, %v3913
        %v3915 = vcombine.high %v3907, %v3907
        %v3916 = vcombine.high %v3914, %v3914
        %v3917 = vcombine.high %v3821, %v3821
        %v3919 = vunpack.c.l.s4 1983009808
        %v3920 = vunpack.c.0.s8 %v3919
        %v3921 = vlaneseq
        %v3922 = vshrl.u32 %v3921, 7
        %v3923 = vsub.s32 %v3920, %v3922
        %v3924 = vrot.slane %v3821, %v3923
        %v3926 = vunpack.c.l.s4 1983009808
        %v3927 = vunpack.c.0.s8 %v3926
        %v3928 = vlaneseq
        %v3929 = vshrl.u32 %v3928, 7
        %v3930 = vsub.s32 %v3927, %v3929
        %v3931 = vrot.slane %v3917, %v3930
        %v3932 = vcombine.high %v3924, %v3924
        %v3933 = vcombine.high %v3931, %v3931
        %v3934 = vcombine.high %v3822, %v3822
        %v3936 = vunpack.c.l.s4 1983009808
        %v3937 = vunpack.c.0.s8 %v3936
        %v3938 = vlaneseq
        %v3939 = vshrl.u32 %v3938, 7
        %v3940 = vsub.s32 %v3937, %v3939
        %v3941 = vrot.slane %v3822, %v3940
        %v3943 = vunpack.c.l.s4 1983009808
        %v3944 = vunpack.c.0.s8 %v3943
        %v3945 = vlaneseq
        %v3946 = vshrl.u32 %v3945, 7
        %v3947 = vsub.s32 %v3944, %v3946
        %v3948 = vrot.slane %v3934, %v3947
        %v3949 = vcombine.high %v3941, %v3941
        %v3950 = vcombine.high %v3948, %v3948
        %v3951 = vcombine.high %v3823, %v3823
        %v3953 = vunpack.c.l.s4 1983009808
        %v3954 = vunpack.c.0.s8 %v3953
        %v3955 = vlaneseq
        %v3956 = vshrl.u32 %v3955, 7
        %v3957 = vsub.s32 %v3954, %v3956
        %v3958 = vrot.slane %v3823, %v3957
        %v3960 = vunpack.c.l.s4 1983009808
        %v3961 = vunpack.c.0.s8 %v3960
        %v3962 = vlaneseq
        %v3963 = vshrl.u32 %v3962, 7
        %v3964 = vsub.s32 %v3961, %v3963
        %v3965 = vrot.slane %v3951, %v3964
        %v3966 = vcombine.high %v3958, %v3958
        %v3967 = vcombine.high %v3965, %v3965
        %v3968 = vcombine.high %v3824, %v3824
        %v3970 = vunpack.c.l.s4 1983009808
        %v3971 = vunpack.c.0.s8 %v3970
        %v3972 = vlaneseq
        %v3973 = vshrl.u32 %v3972, 7
        %v3974 = vsub.s32 %v3971, %v3973
        %v3975 = vrot.slane %v3824, %v3974
        %v3977 = vunpack.c.l.s4 1983009808
        %v3978 = vunpack.c.0.s8 %v3977
        %v3979 = vlaneseq
        %v3980 = vshrl.u32 %v3979, 7
        %v3981 = vsub.s32 %v3978, %v3980
        %v3982 = vrot.slane %v3968, %v3981
        %v3983 = vcombine.high %v3975, %v3975
        %v3984 = vcombine.high %v3982, %v3982
        %v3985 = vcombine.high %v3825, %v3825
        %v3987 = vunpack.c.l.s4 1983009808
        %v3988 = vunpack.c.0.s8 %v3987
        %v3989 = vlaneseq
        %v3990 = vshrl.u32 %v3989, 7
        %v3991 = vsub.s32 %v3988, %v3990
        %v3992 = vrot.slane %v3825, %v3991
        %v3994 = vunpack.c.l.s4 1983009808
        %v3995 = vunpack.c.0.s8 %v3994
        %v3996 = vlaneseq
        %v3997 = vshrl.u32 %v3996, 7
        %v3998 = vsub.s32 %v3995, %v3997
        %v3999 = vrot.slane %v3985, %v3998
        %v4000 = vcombine.high %v3992, %v3992
        %v4001 = vcombine.high %v3999, %v3999
        %v4002 = vcombine.high %v3826, %v3826
        %v4004 = vunpack.c.l.s4 1983009808
        %v4005 = vunpack.c.0.s8 %v4004
        %v4006 = vlaneseq
        %v4007 = vshrl.u32 %v4006, 7
        %v4008 = vsub.s32 %v4005, %v4007
        %v4009 = vrot.slane %v3826, %v4008
        %v4011 = vunpack.c.l.s4 1983009808
        %v4012 = vunpack.c.0.s8 %v4011
        %v4013 = vlaneseq
        %v4014 = vshrl.u32 %v4013, 7
        %v4015 = vsub.s32 %v4012, %v4014
        %v4016 = vrot.slane %v4002, %v4015
        %v4017 = vcombine.high %v4009, %v4009
        %v4018 = vcombine.high %v4016, %v4016
        %v4019 = vcombine.high %v3827, %v3827
        %v4021 = vunpack.c.l.s4 1983009808
        %v4022 = vunpack.c.0.s8 %v4021
        %v4023 = vlaneseq
        %v4024 = vshrl.u32 %v4023, 7
        %v4025 = vsub.s32 %v4022, %v4024
        %v4026 = vrot.slane %v3827, %v4025
        %v4028 = vunpack.c.l.s4 1983009808
        %v4029 = vunpack.c.0.s8 %v4028
        %v4030 = vlaneseq
        %v4031 = vshrl.u32 %v4030, 7
        %v4032 = vsub.s32 %v4029, %v4031
        %v4033 = vrot.slane %v4019, %v4032
        %v4034 = vcombine.high %v4026, %v4026
        %v4035 = vcombine.high %v4033, %v4033
        %v4036 = vcombine.high %v3828, %v3828
        %v4038 = vunpack.c.l.s4 1983009808
        %v4039 = vunpack.c.0.s8 %v4038
        %v4040 = vlaneseq
        %v4041 = vshrl.u32 %v4040, 7
        %v4042 = vsub.s32 %v4039, %v4041
        %v4043 = vrot.slane %v3828, %v4042
        %v4045 = vunpack.c.l.s4 1983009808
        %v4046 = vunpack.c.0.s8 %v4045
        %v4047 = vlaneseq
        %v4048 = vshrl.u32 %v4047, 7
        %v4049 = vsub.s32 %v4046, %v4048
        %v4050 = vrot.slane %v4036, %v4049
        %v4051 = vcombine.high %v4043, %v4043
        %v4052 = vcombine.high %v4050, %v4050
        %v4053 = vcombine.high %v3829, %v3829
        %v4055 = vunpack.c.l.s4 1983009808
        %v4056 = vunpack.c.0.s8 %v4055
        %v4057 = vlaneseq
        %v4058 = vshrl.u32 %v4057, 7
        %v4059 = vsub.s32 %v4056, %v4058
        %v4060 = vrot.slane %v3829, %v4059
        %v4062 = vunpack.c.l.s4 1983009808
        %v4063 = vunpack.c.0.s8 %v4062
        %v4064 = vlaneseq
        %v4065 = vshrl.u32 %v4064, 7
        %v4066 = vsub.s32 %v4063, %v4065
        %v4067 = vrot.slane %v4053, %v4066
        %v4068 = vcombine.high %v4060, %v4060
        %v4069 = vcombine.high %v4067, %v4067
        %v4070 = vcombine.high %v3830, %v3830
        %v4072 = vunpack.c.l.s4 1983009808
        %v4073 = vunpack.c.0.s8 %v4072
        %v4074 = vlaneseq
        %v4075 = vshrl.u32 %v4074, 7
        %v4076 = vsub.s32 %v4073, %v4075
        %v4077 = vrot.slane %v3830, %v4076
        %v4079 = vunpack.c.l.s4 1983009808
        %v4080 = vunpack.c.0.s8 %v4079
        %v4081 = vlaneseq
        %v4082 = vshrl.u32 %v4081, 7
        %v4083 = vsub.s32 %v4080, %v4082
        %v4084 = vrot.slane %v4070, %v4083
        %v4085 = vcombine.high %v4077, %v4077
        %v4086 = vcombine.high %v4084, %v4084
        %v4087 = vcombine.high %v3831, %v3831
        %v4089 = vunpack.c.l.s4 1983009808
        %v4090 = vunpack.c.0.s8 %v4089
        %v4091 = vlaneseq
        %v4092 = vshrl.u32 %v4091, 7
        %v4093 = vsub.s32 %v4090, %v4092
        %v4094 = vrot.slane %v3831, %v4093
        %v4096 = vunpack.c.l.s4 1983009808
        %v4097 = vunpack.c.0.s8 %v4096
        %v4098 = vlaneseq
        %v4099 = vshrl.u32 %v4098, 7
        %v4100 = vsub.s32 %v4097, %v4099
        %v4101 = vrot.slane %v4087, %v4100
        %v4102 = vcombine.high %v4094, %v4094
        %v4103 = vcombine.high %v4101, %v4101
        %v4104 = vcombine.high %v3832, %v3832
        %v4106 = vunpack.c.l.s4 1983009808
        %v4107 = vunpack.c.0.s8 %v4106
        %v4108 = vlaneseq
        %v4109 = vshrl.u32 %v4108, 7
        %v4110 = vsub.s32 %v4107, %v4109
        %v4111 = vrot.slane %v3832, %v4110
        %v4113 = vunpack.c.l.s4 1983009808
        %v4114 = vunpack.c.0.s8 %v4113
        %v4115 = vlaneseq
        %v4116 = vshrl.u32 %v4115, 7
        %v4117 = vsub.s32 %v4114, %v4116
        %v4118 = vrot.slane %v4104, %v4117
        %v4119 = vcombine.high %v4111, %v4111
        %v4120 = vcombine.high %v4118, %v4118
        %v4185 = vsel %vm1592, %v3856, -inf
        %v4186 = vrot.slane %v4185, 4
        %v4187 = vmax.f32 %v4185, %v4186
        %v4188 = vrot.slane %v4187, 2
        %v4189 = vmax.f32 %v4187, %v4188
        %v4190 = vrot.slane %v4189, 1
        %v4191 = vmax.f32 %v4189, %v4190
        %v4192 = vsel %vm1592, %v3864, -inf
        %v4193 = vrot.slane %v4192, 4
        %v4194 = vmax.f32 %v4192, %v4193
        %v4195 = vrot.slane %v4194, 2
        %v4196 = vmax.f32 %v4194, %v4195
        %v4197 = vrot.slane %v4196, 1
        %v4198 = vmax.f32 %v4196, %v4197
        %v4199 = vsel %vm1592, %v3863, -inf
        %v4200 = vrot.slane %v4199, 4
        %v4201 = vmax.f32 %v4199, %v4200
        %v4202 = vrot.slane %v4201, 2
        %v4203 = vmax.f32 %v4201, %v4202
        %v4204 = vrot.slane %v4203, 1
        %v4205 = vmax.f32 %v4203, %v4204
        %v4206 = vsel %vm1592, %v3865, -inf
        %v4207 = vrot.slane %v4206, 4
        %v4208 = vmax.f32 %v4206, %v4207
        %v4209 = vrot.slane %v4208, 2
        %v4210 = vmax.f32 %v4208, %v4209
        %v4211 = vrot.slane %v4210, 1
        %v4212 = vmax.f32 %v4210, %v4211
        %v4213 = vsel %vm1592, %v3873, -inf
        %v4214 = vrot.slane %v4213, 4
        %v4215 = vmax.f32 %v4213, %v4214
        %v4216 = vrot.slane %v4215, 2
        %v4217 = vmax.f32 %v4215, %v4216
        %v4218 = vrot.slane %v4217, 1
        %v4219 = vmax.f32 %v4217, %v4218
        %v4220 = vsel %vm1592, %v3881, -inf
        %v4221 = vrot.slane %v4220, 4
        %v4222 = vmax.f32 %v4220, %v4221
        %v4223 = vrot.slane %v4222, 2
        %v4224 = vmax.f32 %v4222, %v4223
        %v4225 = vrot.slane %v4224, 1
        %v4226 = vmax.f32 %v4224, %v4225
        %v4227 = vsel %vm1592, %v3880, -inf
        %v4228 = vrot.slane %v4227, 4
        %v4229 = vmax.f32 %v4227, %v4228
        %v4230 = vrot.slane %v4229, 2
        %v4231 = vmax.f32 %v4229, %v4230
        %v4232 = vrot.slane %v4231, 1
        %v4233 = vmax.f32 %v4231, %v4232
        %v4234 = vsel %vm1592, %v3882, -inf
        %v4235 = vrot.slane %v4234, 4
        %v4236 = vmax.f32 %v4234, %v4235
        %v4237 = vrot.slane %v4236, 2
        %v4238 = vmax.f32 %v4236, %v4237
        %v4239 = vrot.slane %v4238, 1
        %v4240 = vmax.f32 %v4238, %v4239
        %v4241 = vsel %vm1592, %v3890, -inf
        %v4242 = vrot.slane %v4241, 4
        %v4243 = vmax.f32 %v4241, %v4242
        %v4244 = vrot.slane %v4243, 2
        %v4245 = vmax.f32 %v4243, %v4244
        %v4246 = vrot.slane %v4245, 1
        %v4247 = vmax.f32 %v4245, %v4246
        %v4248 = vsel %vm1592, %v3898, -inf
        %v4249 = vrot.slane %v4248, 4
        %v4250 = vmax.f32 %v4248, %v4249
        %v4251 = vrot.slane %v4250, 2
        %v4252 = vmax.f32 %v4250, %v4251
        %v4253 = vrot.slane %v4252, 1
        %v4254 = vmax.f32 %v4252, %v4253
        %v4255 = vsel %vm1592, %v3897, -inf
        %v4256 = vrot.slane %v4255, 4
        %v4257 = vmax.f32 %v4255, %v4256
        %v4258 = vrot.slane %v4257, 2
        %v4259 = vmax.f32 %v4257, %v4258
        %v4260 = vrot.slane %v4259, 1
        %v4261 = vmax.f32 %v4259, %v4260
        %v4262 = vsel %vm1592, %v3899, -inf
        %v4263 = vrot.slane %v4262, 4
        %v4264 = vmax.f32 %v4262, %v4263
        %v4265 = vrot.slane %v4264, 2
        %v4266 = vmax.f32 %v4264, %v4265
        %v4267 = vrot.slane %v4266, 1
        %v4268 = vmax.f32 %v4266, %v4267
        %v4269 = vsel %vm1592, %v3907, -inf
        %v4270 = vrot.slane %v4269, 4
        %v4271 = vmax.f32 %v4269, %v4270
        %v4272 = vrot.slane %v4271, 2
        %v4273 = vmax.f32 %v4271, %v4272
        %v4274 = vrot.slane %v4273, 1
        %v4275 = vmax.f32 %v4273, %v4274
        %v4276 = vsel %vm1592, %v3915, -inf
        %v4277 = vrot.slane %v4276, 4
        %v4278 = vmax.f32 %v4276, %v4277
        %v4279 = vrot.slane %v4278, 2
        %v4280 = vmax.f32 %v4278, %v4279
        %v4281 = vrot.slane %v4280, 1
        %v4282 = vmax.f32 %v4280, %v4281
        %v4283 = vsel %vm1592, %v3914, -inf
        %v4284 = vrot.slane %v4283, 4
        %v4285 = vmax.f32 %v4283, %v4284
        %v4286 = vrot.slane %v4285, 2
        %v4287 = vmax.f32 %v4285, %v4286
        %v4288 = vrot.slane %v4287, 1
        %v4289 = vmax.f32 %v4287, %v4288
        %v4290 = vsel %vm1592, %v3916, -inf
        %v4291 = vrot.slane %v4290, 4
        %v4292 = vmax.f32 %v4290, %v4291
        %v4293 = vrot.slane %v4292, 2
        %v4294 = vmax.f32 %v4292, %v4293
        %v4295 = vrot.slane %v4294, 1
        %v4296 = vmax.f32 %v4294, %v4295
        %v4297 = vsel %vm1592, %v3924, -inf
        %v4298 = vrot.slane %v4297, 4
        %v4299 = vmax.f32 %v4297, %v4298
        %v4300 = vrot.slane %v4299, 2
        %v4301 = vmax.f32 %v4299, %v4300
        %v4302 = vrot.slane %v4301, 1
        %v4303 = vmax.f32 %v4301, %v4302
        %v4304 = vsel %vm1592, %v3932, -inf
        %v4305 = vrot.slane %v4304, 4
        %v4306 = vmax.f32 %v4304, %v4305
        %v4307 = vrot.slane %v4306, 2
        %v4308 = vmax.f32 %v4306, %v4307
        %v4309 = vrot.slane %v4308, 1
        %v4310 = vmax.f32 %v4308, %v4309
        %v4311 = vsel %vm1592, %v3931, -inf
        %v4312 = vrot.slane %v4311, 4
        %v4313 = vmax.f32 %v4311, %v4312
        %v4314 = vrot.slane %v4313, 2
        %v4315 = vmax.f32 %v4313, %v4314
        %v4316 = vrot.slane %v4315, 1
        %v4317 = vmax.f32 %v4315, %v4316
        %v4318 = vsel %vm1592, %v3933, -inf
        %v4319 = vrot.slane %v4318, 4
        %v4320 = vmax.f32 %v4318, %v4319
        %v4321 = vrot.slane %v4320, 2
        %v4322 = vmax.f32 %v4320, %v4321
        %v4323 = vrot.slane %v4322, 1
        %v4324 = vmax.f32 %v4322, %v4323
        %v4325 = vsel %vm1592, %v3941, -inf
        %v4326 = vrot.slane %v4325, 4
        %v4327 = vmax.f32 %v4325, %v4326
        %v4328 = vrot.slane %v4327, 2
        %v4329 = vmax.f32 %v4327, %v4328
        %v4330 = vrot.slane %v4329, 1
        %v4331 = vmax.f32 %v4329, %v4330
        %v4332 = vsel %vm1592, %v3949, -inf
        %v4333 = vrot.slane %v4332, 4
        %v4334 = vmax.f32 %v4332, %v4333
        %v4335 = vrot.slane %v4334, 2
        %v4336 = vmax.f32 %v4334, %v4335
        %v4337 = vrot.slane %v4336, 1
        %v4338 = vmax.f32 %v4336, %v4337
        %v4339 = vsel %vm1592, %v3948, -inf
        %v4340 = vrot.slane %v4339, 4
        %v4341 = vmax.f32 %v4339, %v4340
        %v4342 = vrot.slane %v4341, 2
        %v4343 = vmax.f32 %v4341, %v4342
        %v4344 = vrot.slane %v4343, 1
        %v4345 = vmax.f32 %v4343, %v4344
        %v4346 = vsel %vm1592, %v3950, -inf
        %v4347 = vrot.slane %v4346, 4
        %v4348 = vmax.f32 %v4346, %v4347
        %v4349 = vrot.slane %v4348, 2
        %v4350 = vmax.f32 %v4348, %v4349
        %v4351 = vrot.slane %v4350, 1
        %v4352 = vmax.f32 %v4350, %v4351
        %v4353 = vsel %vm1592, %v3958, -inf
        %v4354 = vrot.slane %v4353, 4
        %v4355 = vmax.f32 %v4353, %v4354
        %v4356 = vrot.slane %v4355, 2
        %v4357 = vmax.f32 %v4355, %v4356
        %v4358 = vrot.slane %v4357, 1
        %v4359 = vmax.f32 %v4357, %v4358
        %v4360 = vsel %vm1592, %v3966, -inf
        %v4361 = vrot.slane %v4360, 4
        %v4362 = vmax.f32 %v4360, %v4361
        %v4363 = vrot.slane %v4362, 2
        %v4364 = vmax.f32 %v4362, %v4363
        %v4365 = vrot.slane %v4364, 1
        %v4366 = vmax.f32 %v4364, %v4365
        %v4367 = vsel %vm1592, %v3965, -inf
        %v4368 = vrot.slane %v4367, 4
        %v4369 = vmax.f32 %v4367, %v4368
        %v4370 = vrot.slane %v4369, 2
        %v4371 = vmax.f32 %v4369, %v4370
        %v4372 = vrot.slane %v4371, 1
        %v4373 = vmax.f32 %v4371, %v4372
        %v4374 = vsel %vm1592, %v3967, -inf
        %v4375 = vrot.slane %v4374, 4
        %v4376 = vmax.f32 %v4374, %v4375
        %v4377 = vrot.slane %v4376, 2
        %v4378 = vmax.f32 %v4376, %v4377
        %v4379 = vrot.slane %v4378, 1
        %v4380 = vmax.f32 %v4378, %v4379
        %v4381 = vsel %vm1592, %v3975, -inf
        %v4382 = vrot.slane %v4381, 4
        %v4383 = vmax.f32 %v4381, %v4382
        %v4384 = vrot.slane %v4383, 2
        %v4385 = vmax.f32 %v4383, %v4384
        %v4386 = vrot.slane %v4385, 1
        %v4387 = vmax.f32 %v4385, %v4386
        %v4388 = vsel %vm1592, %v3983, -inf
        %v4389 = vrot.slane %v4388, 4
        %v4390 = vmax.f32 %v4388, %v4389
        %v4391 = vrot.slane %v4390, 2
        %v4392 = vmax.f32 %v4390, %v4391
        %v4393 = vrot.slane %v4392, 1
        %v4394 = vmax.f32 %v4392, %v4393
        %v4395 = vsel %vm1592, %v3982, -inf
        %v4396 = vrot.slane %v4395, 4
        %v4397 = vmax.f32 %v4395, %v4396
        %v4398 = vrot.slane %v4397, 2
        %v4399 = vmax.f32 %v4397, %v4398
        %v4400 = vrot.slane %v4399, 1
        %v4401 = vmax.f32 %v4399, %v4400
        %v4402 = vsel %vm1592, %v3984, -inf
        %v4403 = vrot.slane %v4402, 4
        %v4404 = vmax.f32 %v4402, %v4403
        %v4405 = vrot.slane %v4404, 2
        %v4406 = vmax.f32 %v4404, %v4405
        %v4407 = vrot.slane %v4406, 1
        %v4408 = vmax.f32 %v4406, %v4407
        %v4409 = vsel %vm1592, %v3992, -inf
        %v4410 = vrot.slane %v4409, 4
        %v4411 = vmax.f32 %v4409, %v4410
        %v4412 = vrot.slane %v4411, 2
        %v4413 = vmax.f32 %v4411, %v4412
        %v4414 = vrot.slane %v4413, 1
        %v4415 = vmax.f32 %v4413, %v4414
        %v4416 = vsel %vm1592, %v4000, -inf
        %v4417 = vrot.slane %v4416, 4
        %v4418 = vmax.f32 %v4416, %v4417
        %v4419 = vrot.slane %v4418, 2
        %v4420 = vmax.f32 %v4418, %v4419
        %v4421 = vrot.slane %v4420, 1
        %v4422 = vmax.f32 %v4420, %v4421
        %v4423 = vsel %vm1592, %v3999, -inf
        %v4424 = vrot.slane %v4423, 4
        %v4425 = vmax.f32 %v4423, %v4424
        %v4426 = vrot.slane %v4425, 2
        %v4427 = vmax.f32 %v4425, %v4426
        %v4428 = vrot.slane %v4427, 1
        %v4429 = vmax.f32 %v4427, %v4428
        %v4430 = vsel %vm1592, %v4001, -inf
        %v4431 = vrot.slane %v4430, 4
        %v4432 = vmax.f32 %v4430, %v4431
        %v4433 = vrot.slane %v4432, 2
        %v4434 = vmax.f32 %v4432, %v4433
        %v4435 = vrot.slane %v4434, 1
        %v4436 = vmax.f32 %v4434, %v4435
        %v4437 = vsel %vm1592, %v4009, -inf
        %v4438 = vrot.slane %v4437, 4
        %v4439 = vmax.f32 %v4437, %v4438
        %v4440 = vrot.slane %v4439, 2
        %v4441 = vmax.f32 %v4439, %v4440
        %v4442 = vrot.slane %v4441, 1
        %v4443 = vmax.f32 %v4441, %v4442
        %v4444 = vsel %vm1592, %v4017, -inf
        %v4445 = vrot.slane %v4444, 4
        %v4446 = vmax.f32 %v4444, %v4445
        %v4447 = vrot.slane %v4446, 2
        %v4448 = vmax.f32 %v4446, %v4447
        %v4449 = vrot.slane %v4448, 1
        %v4450 = vmax.f32 %v4448, %v4449
        %v4451 = vsel %vm1592, %v4016, -inf
        %v4452 = vrot.slane %v4451, 4
        %v4453 = vmax.f32 %v4451, %v4452
        %v4454 = vrot.slane %v4453, 2
        %v4455 = vmax.f32 %v4453, %v4454
        %v4456 = vrot.slane %v4455, 1
        %v4457 = vmax.f32 %v4455, %v4456
        %v4458 = vsel %vm1592, %v4018, -inf
        %v4459 = vrot.slane %v4458, 4
        %v4460 = vmax.f32 %v4458, %v4459
        %v4461 = vrot.slane %v4460, 2
        %v4462 = vmax.f32 %v4460, %v4461
        %v4463 = vrot.slane %v4462, 1
        %v4464 = vmax.f32 %v4462, %v4463
        %v4465 = vsel %vm1592, %v4026, -inf
        %v4466 = vrot.slane %v4465, 4
        %v4467 = vmax.f32 %v4465, %v4466
        %v4468 = vrot.slane %v4467, 2
        %v4469 = vmax.f32 %v4467, %v4468
        %v4470 = vrot.slane %v4469, 1
        %v4471 = vmax.f32 %v4469, %v4470
        %v4472 = vsel %vm1592, %v4034, -inf
        %v4473 = vrot.slane %v4472, 4
        %v4474 = vmax.f32 %v4472, %v4473
        %v4475 = vrot.slane %v4474, 2
        %v4476 = vmax.f32 %v4474, %v4475
        %v4477 = vrot.slane %v4476, 1
        %v4478 = vmax.f32 %v4476, %v4477
        %v4479 = vsel %vm1592, %v4033, -inf
        %v4480 = vrot.slane %v4479, 4
        %v4481 = vmax.f32 %v4479, %v4480
        %v4482 = vrot.slane %v4481, 2
        %v4483 = vmax.f32 %v4481, %v4482
        %v4484 = vrot.slane %v4483, 1
        %v4485 = vmax.f32 %v4483, %v4484
        %v4486 = vsel %vm1592, %v4035, -inf
        %v4487 = vrot.slane %v4486, 4
        %v4488 = vmax.f32 %v4486, %v4487
        %v4489 = vrot.slane %v4488, 2
        %v4490 = vmax.f32 %v4488, %v4489
        %v4491 = vrot.slane %v4490, 1
        %v4492 = vmax.f32 %v4490, %v4491
        %v4493 = vsel %vm1592, %v4043, -inf
        %v4494 = vrot.slane %v4493, 4
        %v4495 = vmax.f32 %v4493, %v4494
        %v4496 = vrot.slane %v4495, 2
        %v4497 = vmax.f32 %v4495, %v4496
        %v4498 = vrot.slane %v4497, 1
        %v4499 = vmax.f32 %v4497, %v4498
        %v4500 = vsel %vm1592, %v4051, -inf
        %v4501 = vrot.slane %v4500, 4
        %v4502 = vmax.f32 %v4500, %v4501
        %v4503 = vrot.slane %v4502, 2
        %v4504 = vmax.f32 %v4502, %v4503
        %v4505 = vrot.slane %v4504, 1
        %v4506 = vmax.f32 %v4504, %v4505
        %v4507 = vsel %vm1592, %v4050, -inf
        %v4508 = vrot.slane %v4507, 4
        %v4509 = vmax.f32 %v4507, %v4508
        %v4510 = vrot.slane %v4509, 2
        %v4511 = vmax.f32 %v4509, %v4510
        %v4512 = vrot.slane %v4511, 1
        %v4513 = vmax.f32 %v4511, %v4512
        %v4514 = vsel %vm1592, %v4052, -inf
        %v4515 = vrot.slane %v4514, 4
        %v4516 = vmax.f32 %v4514, %v4515
        %v4517 = vrot.slane %v4516, 2
        %v4518 = vmax.f32 %v4516, %v4517
        %v4519 = vrot.slane %v4518, 1
        %v4520 = vmax.f32 %v4518, %v4519
        %v4521 = vsel %vm1592, %v4060, -inf
        %v4522 = vrot.slane %v4521, 4
        %v4523 = vmax.f32 %v4521, %v4522
        %v4524 = vrot.slane %v4523, 2
        %v4525 = vmax.f32 %v4523, %v4524
        %v4526 = vrot.slane %v4525, 1
        %v4527 = vmax.f32 %v4525, %v4526
        %v4528 = vsel %vm1592, %v4068, -inf
        %v4529 = vrot.slane %v4528, 4
        %v4530 = vmax.f32 %v4528, %v4529
        %v4531 = vrot.slane %v4530, 2
        %v4532 = vmax.f32 %v4530, %v4531
        %v4533 = vrot.slane %v4532, 1
        %v4534 = vmax.f32 %v4532, %v4533
        %v4535 = vsel %vm1592, %v4067, -inf
        %v4536 = vrot.slane %v4535, 4
        %v4537 = vmax.f32 %v4535, %v4536
        %v4538 = vrot.slane %v4537, 2
        %v4539 = vmax.f32 %v4537, %v4538
        %v4540 = vrot.slane %v4539, 1
        %v4541 = vmax.f32 %v4539, %v4540
        %v4542 = vsel %vm1592, %v4069, -inf
        %v4543 = vrot.slane %v4542, 4
        %v4544 = vmax.f32 %v4542, %v4543
        %v4545 = vrot.slane %v4544, 2
        %v4546 = vmax.f32 %v4544, %v4545
        %v4547 = vrot.slane %v4546, 1
        %v4548 = vmax.f32 %v4546, %v4547
        %v4549 = vsel %vm1592, %v4077, -inf
        %v4550 = vrot.slane %v4549, 4
        %v4551 = vmax.f32 %v4549, %v4550
        %v4552 = vrot.slane %v4551, 2
        %v4553 = vmax.f32 %v4551, %v4552
        %v4554 = vrot.slane %v4553, 1
        %v4555 = vmax.f32 %v4553, %v4554
        %v4556 = vsel %vm1592, %v4085, -inf
        %v4557 = vrot.slane %v4556, 4
        %v4558 = vmax.f32 %v4556, %v4557
        %v4559 = vrot.slane %v4558, 2
        %v4560 = vmax.f32 %v4558, %v4559
        %v4561 = vrot.slane %v4560, 1
        %v4562 = vmax.f32 %v4560, %v4561
        %v4563 = vsel %vm1592, %v4084, -inf
        %v4564 = vrot.slane %v4563, 4
        %v4565 = vmax.f32 %v4563, %v4564
        %v4566 = vrot.slane %v4565, 2
        %v4567 = vmax.f32 %v4565, %v4566
        %v4568 = vrot.slane %v4567, 1
        %v4569 = vmax.f32 %v4567, %v4568
        %v4570 = vsel %vm1592, %v4086, -inf
        %v4571 = vrot.slane %v4570, 4
        %v4572 = vmax.f32 %v4570, %v4571
        %v4573 = vrot.slane %v4572, 2
        %v4574 = vmax.f32 %v4572, %v4573
        %v4575 = vrot.slane %v4574, 1
        %v4576 = vmax.f32 %v4574, %v4575
        %v4577 = vsel %vm1592, %v4094, -inf
        %v4578 = vrot.slane %v4577, 4
        %v4579 = vmax.f32 %v4577, %v4578
        %v4580 = vrot.slane %v4579, 2
        %v4581 = vmax.f32 %v4579, %v4580
        %v4582 = vrot.slane %v4581, 1
        %v4583 = vmax.f32 %v4581, %v4582
        %v4584 = vsel %vm1592, %v4102, -inf
        %v4585 = vrot.slane %v4584, 4
        %v4586 = vmax.f32 %v4584, %v4585
        %v4587 = vrot.slane %v4586, 2
        %v4588 = vmax.f32 %v4586, %v4587
        %v4589 = vrot.slane %v4588, 1
        %v4590 = vmax.f32 %v4588, %v4589
        %v4591 = vsel %vm1592, %v4101, -inf
        %v4592 = vrot.slane %v4591, 4
        %v4593 = vmax.f32 %v4591, %v4592
        %v4594 = vrot.slane %v4593, 2
        %v4595 = vmax.f32 %v4593, %v4594
        %v4596 = vrot.slane %v4595, 1
        %v4597 = vmax.f32 %v4595, %v4596
        %v4598 = vsel %vm1592, %v4103, -inf
        %v4599 = vrot.slane %v4598, 4
        %v4600 = vmax.f32 %v4598, %v4599
        %v4601 = vrot.slane %v4600, 2
        %v4602 = vmax.f32 %v4600, %v4601
        %v4603 = vrot.slane %v4602, 1
        %v4604 = vmax.f32 %v4602, %v4603
        %v4605 = vsel %vm1592, %v4111, -inf
        %v4606 = vrot.slane %v4605, 4
        %v4607 = vmax.f32 %v4605, %v4606
        %v4608 = vrot.slane %v4607, 2
        %v4609 = vmax.f32 %v4607, %v4608
        %v4610 = vrot.slane %v4609, 1
        %v4611 = vmax.f32 %v4609, %v4610
        %v4612 = vsel %vm1592, %v4119, -inf
        %v4613 = vrot.slane %v4612, 4
        %v4614 = vmax.f32 %v4612, %v4613
        %v4615 = vrot.slane %v4614, 2
        %v4616 = vmax.f32 %v4614, %v4615
        %v4617 = vrot.slane %v4616, 1
        %v4618 = vmax.f32 %v4616, %v4617
        %v4619 = vsel %vm1592, %v4118, -inf
        %v4620 = vrot.slane %v4619, 4
        %v4621 = vmax.f32 %v4619, %v4620
        %v4622 = vrot.slane %v4621, 2
        %v4623 = vmax.f32 %v4621, %v4622
        %v4624 = vrot.slane %v4623, 1
        %v4625 = vmax.f32 %v4623, %v4624
        %v4626 = vsel %vm1592, %v4120, -inf
        %v4627 = vrot.slane %v4626, 4
        %v4628 = vmax.f32 %v4626, %v4627
        %v4629 = vrot.slane %v4628, 2
        %v4630 = vmax.f32 %v4628, %v4629
        %v4631 = vrot.slane %v4630, 1
        %v4632 = vmax.f32 %v4630, %v4631
        %v4697 = vsel %vm2619, %v4198, %v4191
        %v4698 = vsel %vm2621, %v4205, %v4697
        %v4699 = vsel %vm2623, %v4212, %v4698
        %v4700 = vsel %vm2625, %v4219, %v4699
        %v4701 = vsel %vm2627, %v4226, %v4700
        %v4702 = vsel %vm2629, %v4233, %v4701
        %v4703 = vsel %vm2631, %v4240, %v4702
        %v4704 = vsel %vm2619, %v4254, %v4247
        %v4705 = vsel %vm2621, %v4261, %v4704
        %v4706 = vsel %vm2623, %v4268, %v4705
        %v4707 = vsel %vm2625, %v4275, %v4706
        %v4708 = vsel %vm2627, %v4282, %v4707
        %v4709 = vsel %vm2629, %v4289, %v4708
        %v4710 = vsel %vm2631, %v4296, %v4709
        %v4711 = vsel %vm2619, %v4310, %v4303
        %v4712 = vsel %vm2621, %v4317, %v4711
        %v4713 = vsel %vm2623, %v4324, %v4712
        %v4714 = vsel %vm2625, %v4331, %v4713
        %v4715 = vsel %vm2627, %v4338, %v4714
        %v4716 = vsel %vm2629, %v4345, %v4715
        %v4717 = vsel %vm2631, %v4352, %v4716
        %v4718 = vsel %vm2619, %v4366, %v4359
        %v4719 = vsel %vm2621, %v4373, %v4718
        %v4720 = vsel %vm2623, %v4380, %v4719
        %v4721 = vsel %vm2625, %v4387, %v4720
        %v4722 = vsel %vm2627, %v4394, %v4721
        %v4723 = vsel %vm2629, %v4401, %v4722
        %v4724 = vsel %vm2631, %v4408, %v4723
        %v4725 = vsel %vm2619, %v4422, %v4415
        %v4726 = vsel %vm2621, %v4429, %v4725
        %v4727 = vsel %vm2623, %v4436, %v4726
        %v4728 = vsel %vm2625, %v4443, %v4727
        %v4729 = vsel %vm2627, %v4450, %v4728
        %v4730 = vsel %vm2629, %v4457, %v4729
        %v4731 = vsel %vm2631, %v4464, %v4730
        %v4732 = vsel %vm2619, %v4478, %v4471
        %v4733 = vsel %vm2621, %v4485, %v4732
        %v4734 = vsel %vm2623, %v4492, %v4733
        %v4735 = vsel %vm2625, %v4499, %v4734
        %v4736 = vsel %vm2627, %v4506, %v4735
        %v4737 = vsel %vm2629, %v4513, %v4736
        %v4738 = vsel %vm2631, %v4520, %v4737
        %v4739 = vsel %vm2619, %v4534, %v4527
        %v4740 = vsel %vm2621, %v4541, %v4739
        %v4741 = vsel %vm2623, %v4548, %v4740
        %v4742 = vsel %vm2625, %v4555, %v4741
        %v4743 = vsel %vm2627, %v4562, %v4742
        %v4744 = vsel %vm2629, %v4569, %v4743
        %v4745 = vsel %vm2631, %v4576, %v4744
        %v4746 = vsel %vm2619, %v4590, %v4583
        %v4747 = vsel %vm2621, %v4597, %v4746
        %v4748 = vsel %vm2623, %v4604, %v4747
        %v4749 = vsel %vm2625, %v4611, %v4748
        %v4750 = vsel %vm2627, %v4618, %v4749
        %v4751 = vsel %vm2629, %v4625, %v4750
        %v4752 = vsel %vm2631, %v4632, %v4751
        %4761 = vst [vmem:[%s286] sm:$0xff] %v4703
        %4762 = vst [vmem:[%s286 + $0x8] sm:$0xff] %v4710
        %4763 = vst [vmem:[%s286 + $0x10] sm:$0xff] %v4717
        %4764 = vst [vmem:[%s286 + $0x18] sm:$0xff] %v4724
        %4765 = vst [vmem:[%s286 + $0x20] sm:$0xff] %v4731
        %4766 = vst [vmem:[%s286 + $0x28] sm:$0xff] %v4738
        %4767 = vst [vmem:[%s286 + $0x30] sm:$0xff] %v4745
        %4768 = vst [vmem:[%s286 + $0x38] sm:$0xff] %v4752
        %s4769 = sand.u32 %s182, 1
        %s4770 = scalar_lea.sflag [#allocation5], %s4769
        %s4771 = sand.u32 %s182, 1
        %s4772 = smul.addr %s4771, 64
        %s4773 = scalar_lea.vmem [#allocation6], %s4772
        // Predicated region
        $region53: #{tpu_custom_call.1} parent=47 // pred_check
          %p4774 = pneg %p192
        $region54: #{tpu_custom_call.1} parent=47 // pred_check_branch
          %4776 = sbr.rel (%p4774) target = $region56
        $region55: #{tpu_custom_call.1} parent=47 // pred_region
          %s4778 = ssub.s32 1024, 1024
          %4779 = vsyncadd %s4770, %s4778
          %s4780 = smul.addr %s22, 8
          %s4781 = smul.addr %s4780, 128
          %s4782 = scalar_lea.hbm %s7, %s4781
          %s4783 = sshll.u32 %s4773, 4
          %s4784 = int_to_ptr.vmem [resolvable:$true] %s4783
          %4789 = dma.vmem_to_hbm [thread:$0]  %s4784, 1024, %s4782, %s4770, 128, 128, 8
        $region56: #{tpu_custom_call.1} parent=47 // pred_fallthru
          _
      $region48: #{tpu_custom_call.1} parent=5 // pred_fallthru
        _
      %p4790 = scmp.le.s32.totalorder 2, %s17
      // Predicated region
      $region57: #{tpu_custom_call.1} parent=5 // pred_check
        %p4791 = pneg %p4790
      $region58: #{tpu_custom_call.1} parent=5 // pred_check_branch
        %4793 = sbr.rel (%p4791) target = $region60
      $region59: #{tpu_custom_call.1} parent=5 // pred_region
        %s4794 = ssub.s32 %s17, 2
        // Predicated region
        $region61: #{tpu_custom_call.1} parent=59 // pred_check
          %p4795 = pneg %p198
        $region62: #{tpu_custom_call.1} parent=59 // pred_check_branch
          %4797 = sbr.rel (%p4795) target = $region64
        $region63: #{tpu_custom_call.1} parent=59 // pred_region
          %s4798 = sand.u32 %s183, 1
          %s4799 = scalar_lea.sflag [#allocation5], %s4798
          %s4800 = sand.u32 %s183, 1
          %s4801 = smul.addr %s4800, 64
          %s4802 = scalar_lea.vmem [#allocation6], %s4801
          %4803 = dma.done %s4799, 1024
        $region64: #{tpu_custom_call.1} parent=59 // pred_fallthru
          _
      $region60: #{tpu_custom_call.1} parent=5 // pred_fallthru
        _
    $region6: #{tpu_custom_call.1} parent=1 // loop_footer
      %s21 = sadd.s32 1, %s17
    $region7: #{tpu_custom_call.1} parent=1 // loop_footer_branch
      %16 = sbr.rel target = $region3
    $region8: #{tpu_custom_call.1} parent=1 // loop_exit
      _
    %4804 = vsyncpa [#allocation4], 1
    %s4805 = scalar_lea.sflag [#allocation4], 1
    %4806 = vsyncpa %s4805, 1
    %4807 = vsyncpa [#allocation5], 1
    %s4808 = scalar_lea.sflag [#allocation5], 1
    %4809 = vsyncpa %s4808, 1

</llo_original>
